<compile_context>
chip_gen: v7x
topology: tpu7x:2x2x1
jax: 0.10.0
libtpu: 0.0.40
codegen_flags: <defaults>
</compile_context>

<pallas_src>
import jax
import jax.numpy as jnp
from jax.experimental import pallas as pl
from jax.experimental.pallas import tpu as pltpu

K_CHEB = 5


def _dot(a, b):
    """Single-pass bf16 MXU matmul with f32 accumulation."""
    return jnp.dot(a.astype(jnp.bfloat16), b.astype(jnp.bfloat16),
                   preferred_element_type=jnp.float32)


def multi_adj_net_kernel(xs_ref, l_ref, l2_ref, pool_ref,
                         w1_ref, b1_ref, w2_ref, b2_ref,
                         wfc_ref, bfc_ref, out_ref):
    n2 = xs_ref.shape[0]          # 2N (fwd rows 0:N, rev rows N:2N)
    n = n2 // 2
    l = l_ref[...]                # [2N, 2N]  blockdiag(L_fwd, L_rev)
    l2 = l2_ref[...]              # [2N, 2N]  2 * L (pre-scaled in wrapper)
    xs = xs_ref[...]              # [2N, F0p] stacked [x; x]

    # ---- layer 1: one block-diag Chebyshev recurrence for both branches ----
    z0 = xs
    z1 = _dot(l, z0)
    z2 = _dot(l2, z1) - z0
    z3 = _dot(l2, z2) - z1
    z4 = _dot(l2, z3) - z2
    zcat = jnp.concatenate([z0, z1, z2, z3, z4], axis=-1)      # [2N, K*F0p]
    res1 = _dot(zcat, w1_ref[...])                             # [2N, 2*64]

    # h[:, :64] = fwd branch (top rows / left cols of res1),
    # h[:, 64:] = rev branch (bottom rows / right cols) — lane-select, no concat relayout.
    h_half = b1_ref.shape[-1] // 2
    lane1 = jax.lax.broadcasted_iota(jnp.int32, (n, b1_ref.shape[-1]), 1)
    h = jnp.maximum(jnp.where(lane1 < h_half, res1[:n, :], res1[n:, :])
                    + b1_ref[...], 0.0)                        # [N, 128]
    hs = jnp.concatenate([h, h], axis=0)                       # [2N, 128] stacked

    # ---- layer 2: same structure at 128 input features ----
    y1 = _dot(l, hs)
    y2 = _dot(l2, y1) - hs
    y3 = _dot(l2, y2) - y1
    y4 = _dot(l2, y3) - y2
    ycat = jnp.concatenate([hs, y1, y2, y3, y4], axis=-1)      # [2N, K*128]
    res2 = _dot(ycat, w2_ref[...])                             # [2N, 2*256]

    # Keep fwd output (top-left quadrant) and rev output (bottom-right), zero the
    # rest; one [G,2N]@[2N,512] matmul with the doubled pool matrix then yields
    # the pooled concat([y_fwd, y_rev]) directly (no [N,512] h2 materialization).
    o_full = b2_ref.shape[-1]
    o_half = o_full // 2
    row = jax.lax.broadcasted_iota(jnp.int32, (n2, o_full), 0)
    lane2 = jax.lax.broadcasted_iota(jnp.int32, (n2, o_full), 1)
    keep = (lane2 < o_half) == (row < n)
    act = jnp.where(keep, jnp.maximum(res2 + b2_ref[...], 0.0), 0.0)
    pooled = _dot(pool_ref[...], act)                          # [G, 512]

    # fully connected + log_softmax
    logits = _dot(pooled, wfc_ref[...]) + bfc_ref[...]         # [G, C]
    m = jnp.max(logits, axis=-1, keepdims=True)
    s = logits - m
    lse = jnp.log(jnp.sum(jnp.exp(s), axis=-1, keepdims=True))
    out_ref[...] = s - lse


@jax.jit
def multi_adj_net_forward(x_pad, l_fwd, l_rev, pool, params):
    n, f0p = x_pad.shape
    g = pool.shape[0]
    c = params["bfc"].shape[-1]
    n2 = 2 * n

    # ---- parameter / operand plumbing (outside the kernel) ----
    l_blk = jnp.zeros((n2, n2), jnp.float32)
    l_blk = l_blk.at[:n, :n].set(l_fwd).at[n:, n:].set(l_rev)
    l_blk2 = 2.0 * l_blk
    xs = jnp.concatenate([x_pad, x_pad], axis=0)                       # [2N, F0p]
    pool2 = jnp.concatenate([pool, pool], axis=1)                      # [G, 2N]
    w1 = jnp.concatenate([params["w11"].reshape(K_CHEB * f0p, -1),
                          params["w12"].reshape(K_CHEB * f0p, -1)], axis=1)   # [K*F0p, 128]
    b1 = jnp.concatenate([params["b11"], params["b12"]], axis=-1)      # [1, 128]
    w2 = jnp.concatenate([params["w21"].reshape(K_CHEB * 128, -1),
                          params["w22"].reshape(K_CHEB * 128, -1)], axis=1)   # [K*128, 512]
    b2 = jnp.concatenate([params["b21"], params["b22"]], axis=-1)      # [1, 512]

    inputs = (xs, l_blk, l_blk2, pool2, w1, b1, w2, b2,
              params["wfc"], params["bfc"])

    # advisory cost estimate so XLA schedules the glue around the custom call
    flops = 2 * (4 * n2 * n2 * f0p                      # layer-1 recurrence
                 + n2 * (K_CHEB * f0p) * w1.shape[1]    # layer-1 fused projection
                 + 4 * n2 * n2 * w1.shape[1]            # layer-2 recurrence
                 + n2 * (K_CHEB * w1.shape[1]) * w2.shape[1]
                 + g * n2 * w2.shape[1]                 # pooling
                 + g * w2.shape[1] * c)                 # fc
    bytes_accessed = sum(int(a.size) * a.dtype.itemsize for a in inputs) + g * c * 4
    cost = pl.CostEstimate(flops=flops, transcendentals=g * c,
                           bytes_accessed=bytes_accessed)

    vmem_specs = [pl.BlockSpec(memory_space=pltpu.MemorySpace.VMEM)
                  for _ in inputs]
    return pl.pallas_call(
        multi_adj_net_kernel,
        out_shape=jax.ShapeDtypeStruct((g, c), jnp.float32),
        in_specs=vmem_specs,
        out_specs=pl.BlockSpec(memory_space=pltpu.MemorySpace.VMEM),
        cost_estimate=cost,
    )(*inputs)


# ----------------------------- glue (plain JAX) -----------------------------

def cheb_operator(edge_index, num_nodes):
    """Dense scaled Laplacian L_hat = -D^{-1/2} A D^{-1/2} (PyG ChebConv, sym,
    lambda_max=2). out[target] = sum_{edges src->target} w_e * x[src]."""
    src, dst = edge_index[0], edge_index[1]
    deg = jnp.zeros((num_nodes,), jnp.float32).at[src].add(1.0)
    dinv = jnp.where(deg > 0, jax.lax.rsqrt(deg), 0.0)
    w = -dinv[src] * dinv[dst]
    return jnp.zeros((num_nodes, num_nodes), jnp.float32).at[dst, src].add(w)


def init_params(key, n_features_pad, n_classes):
    def glorot(k, shape):
        fan_in, fan_out = shape[-2], shape[-1]
        lim = (6.0 / (fan_in + fan_out)) ** 0.5
        return jax.random.uniform(k, shape, jnp.float32, -lim, lim)

    ks = jax.random.split(key, 10)
    # first-layer weights: true fan-in is 1, zero-padded to n_features_pad
    w11_raw = glorot(ks[0], (K_CHEB, 1, 64))
    w12_raw = glorot(ks[1], (K_CHEB, 1, 64))
    w11 = jnp.zeros((K_CHEB, n_features_pad, 64), jnp.float32).at[:, :1, :].set(w11_raw)
    w12 = jnp.zeros((K_CHEB, n_features_pad, 64), jnp.float32).at[:, :1, :].set(w12_raw)
    return {
        "w11": w11, "b11": 0.1 * glorot(ks[2], (1, 64)),
        "w12": w12, "b12": 0.1 * glorot(ks[3], (1, 64)),
        "w21": glorot(ks[4], (K_CHEB, 128, 256)), "b21": 0.1 * glorot(ks[5], (1, 256)),
        "w22": glorot(ks[6], (K_CHEB, 128, 256)), "b22": 0.1 * glorot(ks[7], (1, 256)),
        "wfc": glorot(ks[8], (512, n_classes)),   "bfc": 0.1 * glorot(ks[9], (1, n_classes)),
    }


def reference_forward(x_pad, lf, lr, pool, p):
    """Pure-JAX reference (same bf16-operand / f32-accumulate matmul numerics)."""
    def cheb(L, x, w, b):
        zs = [x, _dot(L, x)]
        for _ in range(2, K_CHEB):
            zs.append(2.0 * _dot(L, zs[-1]) - zs[-2])
        return sum(_dot(z, w[k]) for k, z in enumerate(zs)) + b

    x1 = jax.nn.relu(cheb(lf, x_pad, p["w11"], p["b11"]))
    x2 = jax.nn.relu(cheb(lr, x_pad, p["w12"], p["b12"]))
    h = jnp.concatenate([x1, x2], axis=-1)
    y1 = jax.nn.relu(cheb(lf, h, p["w21"], p["b21"]))
    y2 = jax.nn.relu(cheb(lr, h, p["w22"], p["b22"]))
    h2 = jnp.concatenate([y1, y2], axis=-1)
    logits = _dot(_dot(pool, h2), p["wfc"]) + p["bfc"]
    return jax.nn.log_softmax(logits, axis=-1)


if __name__ == "__main__":
    N_GRAPHS = 2
    NODES_PER_GRAPH = 32
    N = N_GRAPHS * NODES_PER_GRAPH          # 64 nodes total
    N_FEATURES = 1
    F_PAD = 8                               # lane-friendly zero padding of feature dim
    N_CLASSES = 4

    key = jax.random.PRNGKey(0)
    k_x, k_p = jax.random.split(key)

    # Node features [N, 1], zero-padded to [N, 8].
    x = jax.random.normal(k_x, (N, N_FEATURES), jnp.float32)
    x_pad = jnp.zeros((N, F_PAD), jnp.float32).at[:, :N_FEATURES].set(x)

    # Directed chain edges inside each graph (block-diagonal adjacency).
    srcs, dsts = [], []
    for g in range(N_GRAPHS):
        base = g * NODES_PER_GRAPH
        for i in range(NODES_PER_GRAPH - 1):
            srcs.append(base + i)
            dsts.append(base + i + 1)
    edge_index = jnp.array([srcs, dsts], dtype=jnp.int32)          # [2, E]
    edge_index_rev = edge_index[::-1]                              # edge_index[[1, 0]]

    # Batch assignment and (pre-normalized) mean-pooling matrix [G, N].
    batch = jnp.repeat(jnp.arange(N_GRAPHS, dtype=jnp.int32), NODES_PER_GRAPH)
    pool = (jax.nn.one_hot(batch, N_GRAPHS, dtype=jnp.float32).T
            / float(NODES_PER_GRAPH))

    l_fwd = cheb_operator(edge_index, N)
    l_rev = cheb_operator(edge_index_rev, N)

    params = init_params(k_p, F_PAD, N_CLASSES)

    out = multi_adj_net_forward(x_pad, l_fwd, l_rev, pool, params)
    out = jax.block_until_ready(out)

    ref = reference_forward(x_pad, l_fwd, l_rev, pool, params)
    assert out.shape == (N_GRAPHS, N_CLASSES)
    assert jnp.allclose(out, ref, atol=2e-3, rtol=2e-3), (out, ref)
    # rows of log_softmax must exponentiate-sum to 1
    assert jnp.allclose(jnp.sum(jnp.exp(out), axis=-1), 1.0, atol=1e-4)

    print("KERNEL_OK")
</pallas_src>

<mosaic_0001>
module attributes {stable_mosaic.version = 11 : i64} {
  func.func @multi_adj_net_kernel(%arg0: memref<128x8xf32, #tpu.memory_space<vmem>>, %arg1: memref<128x128xf32, #tpu.memory_space<vmem>>, %arg2: memref<128x128xf32, #tpu.memory_space<vmem>>, %arg3: memref<2x128xf32, #tpu.memory_space<vmem>>, %arg4: memref<40x128xf32, #tpu.memory_space<vmem>>, %arg5: memref<1x128xf32, #tpu.memory_space<vmem>>, %arg6: memref<640x512xf32, #tpu.memory_space<vmem>>, %arg7: memref<1x512xf32, #tpu.memory_space<vmem>>, %arg8: memref<512x4xf32, #tpu.memory_space<vmem>>, %arg9: memref<1x4xf32, #tpu.memory_space<vmem>>, %arg10: memref<2x4xf32, #tpu.memory_space<vmem>>) attributes {dimension_semantics = [], scalar_prefetch = 0 : i64, scratch_operands = 0 : i64, tpu.core_type = #tpu.core_type<tc>} {
    %c0 = arith.constant 0 : index
    %c0_0 = arith.constant 0 : index
    %0 = vector.load %arg1[%c0, %c0_0] : memref<128x128xf32, #tpu.memory_space<vmem>>, vector<128x128xf32>
    %c0_1 = arith.constant 0 : index
    %c0_2 = arith.constant 0 : index
    %1 = vector.load %arg2[%c0_1, %c0_2] : memref<128x128xf32, #tpu.memory_space<vmem>>, vector<128x128xf32>
    %c0_3 = arith.constant 0 : index
    %c0_4 = arith.constant 0 : index
    %2 = vector.load %arg0[%c0_3, %c0_4] : memref<128x8xf32, #tpu.memory_space<vmem>>, vector<128x8xf32>
    %3 = arith.truncf %0 : vector<128x128xf32> to vector<128x128xbf16>
    %4 = arith.truncf %2 : vector<128x8xf32> to vector<128x8xbf16>
    %cst = arith.constant dense<0.000000e+00> : vector<128x8xf32>
    %5 = tpu.matmul %3, %4, %cst {dimension_numbers = #tpu.dot_dimension_numbers<[1], [0], [0], [1], [0, 0, 1, 1], [], []>} : vector<128x128xbf16>, vector<128x8xbf16>, vector<128x8xf32> -> vector<128x8xf32>
    %6 = arith.truncf %1 : vector<128x128xf32> to vector<128x128xbf16>
    %7 = arith.truncf %5 : vector<128x8xf32> to vector<128x8xbf16>
    %cst_5 = arith.constant dense<0.000000e+00> : vector<128x8xf32>
    %8 = tpu.matmul %6, %7, %cst_5 {dimension_numbers = #tpu.dot_dimension_numbers<[1], [0], [0], [1], [0, 0, 1, 1], [], []>} : vector<128x128xbf16>, vector<128x8xbf16>, vector<128x8xf32> -> vector<128x8xf32>
    %9 = arith.subf %8, %2 : vector<128x8xf32>
    %10 = arith.truncf %1 : vector<128x128xf32> to vector<128x128xbf16>
    %11 = arith.truncf %9 : vector<128x8xf32> to vector<128x8xbf16>
    %cst_6 = arith.constant dense<0.000000e+00> : vector<128x8xf32>
    %12 = tpu.matmul %10, %11, %cst_6 {dimension_numbers = #tpu.dot_dimension_numbers<[1], [0], [0], [1], [0, 0, 1, 1], [], []>} : vector<128x128xbf16>, vector<128x8xbf16>, vector<128x8xf32> -> vector<128x8xf32>
    %13 = arith.subf %12, %5 : vector<128x8xf32>
    %14 = arith.truncf %1 : vector<128x128xf32> to vector<128x128xbf16>
    %15 = arith.truncf %13 : vector<128x8xf32> to vector<128x8xbf16>
    %cst_7 = arith.constant dense<0.000000e+00> : vector<128x8xf32>
    %16 = tpu.matmul %14, %15, %cst_7 {dimension_numbers = #tpu.dot_dimension_numbers<[1], [0], [0], [1], [0, 0, 1, 1], [], []>} : vector<128x128xbf16>, vector<128x8xbf16>, vector<128x8xf32> -> vector<128x8xf32>
    %17 = arith.subf %16, %9 : vector<128x8xf32>
    %18 = tpu.concatenate %2, %5, %9, %13, %17 in 1 : vector<128x8xf32>, vector<128x8xf32>, vector<128x8xf32>, vector<128x8xf32>, vector<128x8xf32> -> vector<128x40xf32>
    %c0_8 = arith.constant 0 : index
    %c0_9 = arith.constant 0 : index
    %19 = vector.load %arg4[%c0_8, %c0_9] : memref<40x128xf32, #tpu.memory_space<vmem>>, vector<40x128xf32>
    %20 = arith.truncf %18 : vector<128x40xf32> to vector<128x40xbf16>
    %21 = arith.truncf %19 : vector<40x128xf32> to vector<40x128xbf16>
    %cst_10 = arith.constant dense<0.000000e+00> : vector<128x128xf32>
    %22 = tpu.matmul %20, %21, %cst_10 {dimension_numbers = #tpu.dot_dimension_numbers<[1], [0], [0], [1], [0, 0, 1, 1], [], []>} : vector<128x40xbf16>, vector<40x128xbf16>, vector<128x128xf32> -> vector<128x128xf32>
    %23 = tpu.iota {dimensions = array<i32: 1>} : vector<64x128xi32>
    %c64_i32 = arith.constant 64 : i32
    %24 = vector.broadcast %c64_i32 : i32 to vector<64x128xi32>
    %25 = arith.cmpi slt, %23, %24 : vector<64x128xi32>
    %26 = vector.extract_strided_slice %22 {offsets = [0, 0], sizes = [64, 128], strides = [1, 1]} : vector<128x128xf32> to vector<64x128xf32>
    %27 = vector.extract_strided_slice %22 {offsets = [64, 0], sizes = [64, 128], strides = [1, 1]} : vector<128x128xf32> to vector<64x128xf32>
    %28 = arith.select %25, %26, %27 : vector<64x128xi1>, vector<64x128xf32>
    %c0_11 = arith.constant 0 : index
    %c0_12 = arith.constant 0 : index
    %29 = vector.load %arg5[%c0_11, %c0_12] : memref<1x128xf32, #tpu.memory_space<vmem>>, vector<1x128xf32>
    %30 = vector.broadcast %29 : vector<1x128xf32> to vector<64x128xf32>
    %31 = arith.addf %28, %30 : vector<64x128xf32>
    %cst_13 = arith.constant 0.000000e+00 : f32
    %32 = vector.broadcast %cst_13 : f32 to vector<64x128xf32>
    %33 = arith.maximumf %31, %32 : vector<64x128xf32>
    %34 = tpu.concatenate %33, %33 in 0 : vector<64x128xf32>, vector<64x128xf32> -> vector<128x128xf32>
    %35 = arith.truncf %0 : vector<128x128xf32> to vector<128x128xbf16>
    %36 = arith.truncf %34 : vector<128x128xf32> to vector<128x128xbf16>
    %cst_14 = arith.constant dense<0.000000e+00> : vector<128x128xf32>
    %37 = tpu.matmul %35, %36, %cst_14 {dimension_numbers = #tpu.dot_dimension_numbers<[1], [0], [0], [1], [0, 0, 1, 1], [], []>} : vector<128x128xbf16>, vector<128x128xbf16>, vector<128x128xf32> -> vector<128x128xf32>
    %38 = arith.truncf %1 : vector<128x128xf32> to vector<128x128xbf16>
    %39 = arith.truncf %37 : vector<128x128xf32> to vector<128x128xbf16>
    %cst_15 = arith.constant dense<0.000000e+00> : vector<128x128xf32>
    %40 = tpu.matmul %38, %39, %cst_15 {dimension_numbers = #tpu.dot_dimension_numbers<[1], [0], [0], [1], [0, 0, 1, 1], [], []>} : vector<128x128xbf16>, vector<128x128xbf16>, vector<128x128xf32> -> vector<128x128xf32>
    %41 = arith.subf %40, %34 : vector<128x128xf32>
    %42 = arith.truncf %1 : vector<128x128xf32> to vector<128x128xbf16>
    %43 = arith.truncf %41 : vector<128x128xf32> to vector<128x128xbf16>
    %cst_16 = arith.constant dense<0.000000e+00> : vector<128x128xf32>
    %44 = tpu.matmul %42, %43, %cst_16 {dimension_numbers = #tpu.dot_dimension_numbers<[1], [0], [0], [1], [0, 0, 1, 1], [], []>} : vector<128x128xbf16>, vector<128x128xbf16>, vector<128x128xf32> -> vector<128x128xf32>
    %45 = arith.subf %44, %37 : vector<128x128xf32>
    %46 = arith.truncf %1 : vector<128x128xf32> to vector<128x128xbf16>
    %47 = arith.truncf %45 : vector<128x128xf32> to vector<128x128xbf16>
    %cst_17 = arith.constant dense<0.000000e+00> : vector<128x128xf32>
    %48 = tpu.matmul %46, %47, %cst_17 {dimension_numbers = #tpu.dot_dimension_numbers<[1], [0], [0], [1], [0, 0, 1, 1], [], []>} : vector<128x128xbf16>, vector<128x128xbf16>, vector<128x128xf32> -> vector<128x128xf32>
    %49 = arith.subf %48, %41 : vector<128x128xf32>
    %50 = tpu.concatenate %34, %37, %41, %45, %49 in 1 : vector<128x128xf32>, vector<128x128xf32>, vector<128x128xf32>, vector<128x128xf32>, vector<128x128xf32> -> vector<128x640xf32>
    %c0_18 = arith.constant 0 : index
    %c0_19 = arith.constant 0 : index
    %51 = vector.load %arg6[%c0_18, %c0_19] : memref<640x512xf32, #tpu.memory_space<vmem>>, vector<640x512xf32>
    %52 = arith.truncf %50 : vector<128x640xf32> to vector<128x640xbf16>
    %53 = arith.truncf %51 : vector<640x512xf32> to vector<640x512xbf16>
    %cst_20 = arith.constant dense<0.000000e+00> : vector<128x512xf32>
    %54 = tpu.matmul %52, %53, %cst_20 {dimension_numbers = #tpu.dot_dimension_numbers<[1], [0], [0], [1], [0, 0, 1, 1], [], []>} : vector<128x640xbf16>, vector<640x512xbf16>, vector<128x512xf32> -> vector<128x512xf32>
    %55 = tpu.iota {dimensions = array<i32: 0>} : vector<128x512xi32>
    %56 = tpu.iota {dimensions = array<i32: 1>} : vector<128x512xi32>
    %c256_i32 = arith.constant 256 : i32
    %57 = vector.broadcast %c256_i32 : i32 to vector<128x512xi32>
    %58 = arith.cmpi slt, %56, %57 : vector<128x512xi32>
    %c64_i32_21 = arith.constant 64 : i32
    %59 = vector.broadcast %c64_i32_21 : i32 to vector<128x512xi32>
    %60 = arith.cmpi slt, %55, %59 : vector<128x512xi32>
    %61 = arith.xori %58, %60 : vector<128x512xi1>
    %cst_22 = arith.constant dense<true> : vector<128x512xi1>
    %62 = arith.xori %61, %cst_22 : vector<128x512xi1>
    %c0_23 = arith.constant 0 : index
    %c0_24 = arith.constant 0 : index
    %63 = vector.load %arg7[%c0_23, %c0_24] : memref<1x512xf32, #tpu.memory_space<vmem>>, vector<1x512xf32>
    %64 = vector.broadcast %63 : vector<1x512xf32> to vector<128x512xf32>
    %65 = arith.addf %54, %64 : vector<128x512xf32>
    %cst_25 = arith.constant 0.000000e+00 : f32
    %66 = vector.broadcast %cst_25 : f32 to vector<128x512xf32>
    %67 = arith.maximumf %65, %66 : vector<128x512xf32>
    %cst_26 = arith.constant 0.000000e+00 : f32
    %68 = vector.broadcast %cst_26 : f32 to vector<128x512xf32>
    %69 = arith.select %62, %67, %68 : vector<128x512xi1>, vector<128x512xf32>
    %c0_27 = arith.constant 0 : index
    %c0_28 = arith.constant 0 : index
    %70 = vector.load %arg3[%c0_27, %c0_28] : memref<2x128xf32, #tpu.memory_space<vmem>>, vector<2x128xf32>
    %71 = arith.truncf %70 : vector<2x128xf32> to vector<2x128xbf16>
    %72 = arith.truncf %69 : vector<128x512xf32> to vector<128x512xbf16>
    %cst_29 = arith.constant dense<0.000000e+00> : vector<2x512xf32>
    %73 = tpu.matmul %71, %72, %cst_29 {dimension_numbers = #tpu.dot_dimension_numbers<[1], [0], [0], [1], [0, 0, 1, 1], [], []>} : vector<2x128xbf16>, vector<128x512xbf16>, vector<2x512xf32> -> vector<2x512xf32>
    %c0_30 = arith.constant 0 : index
    %c0_31 = arith.constant 0 : index
    %74 = vector.load %arg8[%c0_30, %c0_31] : memref<512x4xf32, #tpu.memory_space<vmem>>, vector<512x4xf32>
    %75 = arith.truncf %73 : vector<2x512xf32> to vector<2x512xbf16>
    %76 = arith.truncf %74 : vector<512x4xf32> to vector<512x4xbf16>
    %cst_32 = arith.constant dense<0.000000e+00> : vector<2x4xf32>
    %77 = tpu.matmul %75, %76, %cst_32 {dimension_numbers = #tpu.dot_dimension_numbers<[1], [0], [0], [1], [0, 0, 1, 1], [], []>} : vector<2x512xbf16>, vector<512x4xbf16>, vector<2x4xf32> -> vector<2x4xf32>
    %c0_33 = arith.constant 0 : index
    %c0_34 = arith.constant 0 : index
    %78 = vector.load %arg9[%c0_33, %c0_34] : memref<1x4xf32, #tpu.memory_space<vmem>>, vector<1x4xf32>
    %79 = vector.broadcast %78 : vector<1x4xf32> to vector<2x4xf32>
    %80 = arith.addf %77, %79 : vector<2x4xf32>
    %cst_35 = arith.constant dense<0xFF800000> : vector<2xf32>
    %81 = vector.multi_reduction <maximumf>, %80, %cst_35 [1] : vector<2x4xf32> to vector<2xf32>
    %82 = vector.shape_cast %81 : vector<2xf32> to vector<2x1xf32>
    %83 = vector.broadcast %82 : vector<2x1xf32> to vector<2x4xf32>
    %84 = arith.subf %80, %83 : vector<2x4xf32>
    %85 = math.exp %84 : vector<2x4xf32>
    %cst_36 = arith.constant dense<0.000000e+00> : vector<2xf32>
    %86 = vector.multi_reduction <add>, %85, %cst_36 [1] : vector<2x4xf32> to vector<2xf32>
    %87 = vector.shape_cast %86 : vector<2xf32> to vector<2x1xf32>
    %88 = math.log %87 : vector<2x1xf32>
    %89 = vector.broadcast %88 : vector<2x1xf32> to vector<2x4xf32>
    %90 = arith.subf %84, %89 : vector<2x4xf32>
    %c0_37 = arith.constant 0 : index
    %c0_38 = arith.constant 0 : index
    %91 = vector.load %arg10[%c0_37, %c0_38] : memref<2x4xf32, #tpu.memory_space<vmem>>, vector<2x4xf32>
    tpu.vector_store %arg10[%c0_37, %c0_38], %90 {strides = array<i32>} : memref<2x4xf32, #tpu.memory_space<vmem>>, vector<2x4xf32>,
    return
  }
}

</mosaic_0001>

<llo_original>
// kernel: multi_adj_net_forward.1
$region0: #{multi_adj_net_forward.1}
  #allocation0 [shape = 'u32[]', space=smem, size = 0x4, offset = 0x4, fixed_abs, tag = 'smem constant byte address 0x4 - core index']
  #allocation1 [shape = 'u32[144,128]{1,0:T(1,128)}', space=vmem, size = 0x12000, scoped, tag = 'internal scratch']
  %s0 = inlined_call_operand.vmem [shape: f32[128,8], index: 0, kind: input, shape index: {}]
  %s1 = inlined_call_operand.vmem [shape: f32[128,128], index: 1, kind: input, shape index: {}]
  %s2 = inlined_call_operand.vmem [shape: f32[128,128], index: 2, kind: input, shape index: {}]
  %s3 = inlined_call_operand.vmem [shape: f32[2,128], index: 3, kind: input, shape index: {}]
  %s4 = inlined_call_operand.vmem [shape: f32[40,128], index: 4, kind: input, shape index: {}]
  %s5 = inlined_call_operand.vmem [shape: f32[1,128], index: 5, kind: input, shape index: {}]
  %s6 = inlined_call_operand.vmem [shape: f32[640,512], index: 6, kind: input, shape index: {}]
  %s7 = inlined_call_operand.vmem [shape: f32[1,512], index: 7, kind: input, shape index: {}]
  %s8 = inlined_call_operand.vmem [shape: f32[512,4], index: 8, kind: input, shape index: {}]
  %s9 = inlined_call_operand.vmem [shape: f32[1,4], index: 9, kind: input, shape index: {}]
  %s10 = inlined_call_operand.hbm [shape: f32[2,4], index: 10, kind: output, shape index: {}]
  %s11 = sld [smem:[#allocation0]]
  $region50: #{multi_adj_net_forward.1} parent=0
    _
  %s13 = ssub.s32 1, %s11
  %s14 = scalar_select 0, %s13, %s11
  $region1: #{multi_adj_net_forward.1} parent=0
    #allocation2 [shape = 'u8[1024]{0}', space=vmem, size = 0x400, scoped, tag = 'output window, operand 0, single buffered']
    #allocation3 [shape = 's32[1]{0}', space=sflag, size = 0x4, scoped, tag = 'scoped memory for multi_adj_net_forward.1']
    %15 = vsyncpa [#allocation3], 0
    // Predicated region
    $region2: #{multi_adj_net_forward.1} parent=1 // pred_check
      _
    $region3: #{multi_adj_net_forward.1} parent=1 // pred_check_branch
      %17 = sbr.rel (0) target = $region5
    $region4: #{multi_adj_net_forward.1} parent=1 // pred_region
      _
    $region5: #{multi_adj_net_forward.1} parent=1 // pred_fallthru
      _
    // Predicated region
    $region6: #{multi_adj_net_forward.1} parent=1 // pred_check
      _
    $region7: #{multi_adj_net_forward.1} parent=1 // pred_check_branch
      %19 = sbr.rel (0) target = $region9
    $region8: #{multi_adj_net_forward.1} parent=1 // pred_region
      _
    $region9: #{multi_adj_net_forward.1} parent=1 // pred_fallthru
      _
    // Predicated region
    $region10: #{multi_adj_net_forward.1} parent=1 // pred_check
      _
    $region11: #{multi_adj_net_forward.1} parent=1 // pred_check_branch
      %21 = sbr.rel (0) target = $region13
    $region12: #{multi_adj_net_forward.1} parent=1 // pred_region
      _
    $region13: #{multi_adj_net_forward.1} parent=1 // pred_fallthru
      _
    // Predicated region
    $region14: #{multi_adj_net_forward.1} parent=1 // pred_check
      _
    $region15: #{multi_adj_net_forward.1} parent=1 // pred_check_branch
      %23 = sbr.rel (0) target = $region17
    $region16: #{multi_adj_net_forward.1} parent=1 // pred_region
      _
    $region17: #{multi_adj_net_forward.1} parent=1 // pred_fallthru
      _
    // Predicated region
    $region18: #{multi_adj_net_forward.1} parent=1 // pred_check
      _
    $region19: #{multi_adj_net_forward.1} parent=1 // pred_check_branch
      %25 = sbr.rel (0) target = $region21
    $region20: #{multi_adj_net_forward.1} parent=1 // pred_region
      _
    $region21: #{multi_adj_net_forward.1} parent=1 // pred_fallthru
      _
    // Predicated region
    $region22: #{multi_adj_net_forward.1} parent=1 // pred_check
      _
    $region23: #{multi_adj_net_forward.1} parent=1 // pred_check_branch
      %27 = sbr.rel (0) target = $region25
    $region24: #{multi_adj_net_forward.1} parent=1 // pred_region
      _
    $region25: #{multi_adj_net_forward.1} parent=1 // pred_fallthru
      _
    // Predicated region
    $region26: #{multi_adj_net_forward.1} parent=1 // pred_check
      _
    $region27: #{multi_adj_net_forward.1} parent=1 // pred_check_branch
      %29 = sbr.rel (0) target = $region29
    $region28: #{multi_adj_net_forward.1} parent=1 // pred_region
      _
    $region29: #{multi_adj_net_forward.1} parent=1 // pred_fallthru
      _
    // Predicated region
    $region30: #{multi_adj_net_forward.1} parent=1 // pred_check
      _
    $region31: #{multi_adj_net_forward.1} parent=1 // pred_check_branch
      %31 = sbr.rel (0) target = $region33
    $region32: #{multi_adj_net_forward.1} parent=1 // pred_region
      _
    $region33: #{multi_adj_net_forward.1} parent=1 // pred_fallthru
      _
    // Predicated region
    $region34: #{multi_adj_net_forward.1} parent=1 // pred_check
      _
    $region35: #{multi_adj_net_forward.1} parent=1 // pred_check_branch
      %33 = sbr.rel (0) target = $region37
    $region36: #{multi_adj_net_forward.1} parent=1 // pred_region
      _
    $region37: #{multi_adj_net_forward.1} parent=1 // pred_fallthru
      _
    // Predicated region
    $region38: #{multi_adj_net_forward.1} parent=1 // pred_check
      _
    $region39: #{multi_adj_net_forward.1} parent=1 // pred_check_branch
      %35 = sbr.rel (0) target = $region41
    $region40: #{multi_adj_net_forward.1} parent=1 // pred_region
      _
    $region41: #{multi_adj_net_forward.1} parent=1 // pred_fallthru
      _
    %v37 = vld [vmem:[%s1] sm:$0xff]
    %v38 = vld [vmem:[%s1 + $0x8] sm:$0xff]
    %v39 = vld [vmem:[%s1 + $0x10] sm:$0xff]
    %v40 = vld [vmem:[%s1 + $0x18] sm:$0xff]
    %v41 = vld [vmem:[%s1 + $0x20] sm:$0xff]
    %v42 = vld [vmem:[%s1 + $0x28] sm:$0xff]
    %v43 = vld [vmem:[%s1 + $0x30] sm:$0xff]
    %v44 = vld [vmem:[%s1 + $0x38] sm:$0xff]
    %v45 = vld [vmem:[%s1 + $0x40] sm:$0xff]
    %v46 = vld [vmem:[%s1 + $0x48] sm:$0xff]
    %v47 = vld [vmem:[%s1 + $0x50] sm:$0xff]
    %v48 = vld [vmem:[%s1 + $0x58] sm:$0xff]
    %v49 = vld [vmem:[%s1 + $0x60] sm:$0xff]
    %v50 = vld [vmem:[%s1 + $0x68] sm:$0xff]
    %v51 = vld [vmem:[%s1 + $0x70] sm:$0xff]
    %v52 = vld [vmem:[%s1 + $0x78] sm:$0xff]
    %v53 = vld [vmem:[%s2] sm:$0xff]
    %v54 = vld [vmem:[%s2 + $0x8] sm:$0xff]
    %v55 = vld [vmem:[%s2 + $0x10] sm:$0xff]
    %v56 = vld [vmem:[%s2 + $0x18] sm:$0xff]
    %v57 = vld [vmem:[%s2 + $0x20] sm:$0xff]
    %v58 = vld [vmem:[%s2 + $0x28] sm:$0xff]
    %v59 = vld [vmem:[%s2 + $0x30] sm:$0xff]
    %v60 = vld [vmem:[%s2 + $0x38] sm:$0xff]
    %v61 = vld [vmem:[%s2 + $0x40] sm:$0xff]
    %v62 = vld [vmem:[%s2 + $0x48] sm:$0xff]
    %v63 = vld [vmem:[%s2 + $0x50] sm:$0xff]
    %v64 = vld [vmem:[%s2 + $0x58] sm:$0xff]
    %v65 = vld [vmem:[%s2 + $0x60] sm:$0xff]
    %v66 = vld [vmem:[%s2 + $0x68] sm:$0xff]
    %v67 = vld [vmem:[%s2 + $0x70] sm:$0xff]
    %v68 = vld [vmem:[%s2 + $0x78] sm:$0xff]
    %v69 = vld [vmem:[%s0] sm:$0xff]
    %v70 = vld [vmem:[%s0 + $0x8] sm:$0xff]
    %v71 = vld [vmem:[%s0 + $0x10] sm:$0xff]
    %v72 = vld [vmem:[%s0 + $0x18] sm:$0xff]
    %v73 = vld [vmem:[%s0 + $0x20] sm:$0xff]
    %v74 = vld [vmem:[%s0 + $0x28] sm:$0xff]
    %v75 = vld [vmem:[%s0 + $0x30] sm:$0xff]
    %v76 = vld [vmem:[%s0 + $0x38] sm:$0xff]
    %v77 = vld [vmem:[%s0 + $0x40] sm:$0xff]
    %v78 = vld [vmem:[%s0 + $0x48] sm:$0xff]
    %v79 = vld [vmem:[%s0 + $0x50] sm:$0xff]
    %v80 = vld [vmem:[%s0 + $0x58] sm:$0xff]
    %v81 = vld [vmem:[%s0 + $0x60] sm:$0xff]
    %v82 = vld [vmem:[%s0 + $0x68] sm:$0xff]
    %v83 = vld [vmem:[%s0 + $0x70] sm:$0xff]
    %v84 = vld [vmem:[%s0 + $0x78] sm:$0xff]
    %v85 = vpack.c.bf16 %v38, %v37
    %v86 = vpack.c.bf16 %v40, %v39
    %v87 = vpack.c.bf16 %v42, %v41
    %v88 = vpack.c.bf16 %v44, %v43
    %v89 = vpack.c.bf16 %v46, %v45
    %v90 = vpack.c.bf16 %v48, %v47
    %v91 = vpack.c.bf16 %v50, %v49
    %v92 = vpack.c.bf16 %v52, %v51
    %v93 = vpack.c.bf16 %v70, %v69
    %v94 = vpack.c.bf16 %v72, %v71
    %v95 = vpack.c.bf16 %v74, %v73
    %v96 = vpack.c.bf16 %v76, %v75
    %v97 = vpack.c.bf16 %v78, %v77
    %v98 = vpack.c.bf16 %v80, %v79
    %v99 = vpack.c.bf16 %v82, %v81
    %v100 = vpack.c.bf16 %v84, %v83
    %101 = vmatprep.subr.bf16.mxu0 0
    %102 = vmatpush1.bf16.msra.mxu0 %v93
    %103 = vmatprep.subr.bf16.mxu0 0
    %104 = vmatpush1.bf16.msra.mxu0 %v94
    %105 = vmatprep.subr.bf16.mxu0 0
    %106 = vmatpush1.bf16.msra.mxu0 %v95
    %107 = vmatprep.subr.bf16.mxu0 0
    %108 = vmatpush1.bf16.msra.mxu0 %v96
    %109 = vmatprep.subr.bf16.mxu0 0
    %110 = vmatpush1.bf16.msra.mxu0 %v97
    %111 = vmatprep.subr.bf16.mxu0 0
    %112 = vmatpush1.bf16.msra.mxu0 %v98
    %113 = vmatprep.subr.bf16.mxu0 0
    %114 = vmatpush1.bf16.msra.mxu0 %v99
    %115 = vmatprep.subr.bf16.mxu0 0
    %116 = vmatpush1.bf16.msra.mxu0 %v100
    %117 = vmatprep.subr.bf16.mxu0 0
    %118 = vmatpush1.bf16.msra.mxu0 0
    %119 = vmatprep.subr.bf16.mxu0 0
    %120 = vmatpush1.bf16.msra.mxu0 0
    %121 = vmatprep.subr.bf16.mxu0 0
    %122 = vmatpush1.bf16.msra.mxu0 0
    %123 = vmatprep.subr.bf16.mxu0 0
    %124 = vmatpush1.bf16.msra.mxu0 0
    %125 = vmatprep.subr.bf16.mxu0 0
    %126 = vmatpush1.bf16.msra.mxu0 0
    %127 = vmatprep.subr.bf16.mxu0 0
    %128 = vmatpush1.bf16.msra.mxu0 0
    %129 = vmatprep.subr.bf16.mxu0 0
    %130 = vmatpush1.bf16.msra.mxu0 0
    %131 = vmatprep.subr.bf16.mxu0 0
    %132 = vmatpush1.bf16.msra.mxu0 0
    %133 = vmatprep.mubr.bf16.mxu0 0
    %134 = vmatmul.mubr.bf16.gmra.mrb[0].mxu0 %v85
    %v135 = vpop.f32.mrb[0].mxu0
    %v136 = vadd.f32 0.0, %v135
    %v137 = vpop.f32.mrb[0].mxu0
    %v138 = vpop.f32.mrb[0].mxu0
    %v139 = vadd.f32 0.0, %v138
    %v140 = vpop.f32.mrb[0].mxu0
    %141 = vmatprep.mubr.bf16.mxu0 0
    %142 = vmatmul.mubr.bf16.gmra.mrb[0].mxu0 %v86
    %v143 = vpop.f32.mrb[0].mxu0
    %v144 = vadd.f32 0.0, %v143
    %v145 = vpop.f32.mrb[0].mxu0
    %v146 = vpop.f32.mrb[0].mxu0
    %v147 = vadd.f32 0.0, %v146
    %v148 = vpop.f32.mrb[0].mxu0
    %149 = vmatprep.mubr.bf16.mxu0 0
    %150 = vmatmul.mubr.bf16.gmra.mrb[0].mxu0 %v87
    %v151 = vpop.f32.mrb[0].mxu0
    %v152 = vadd.f32 0.0, %v151
    %v153 = vpop.f32.mrb[0].mxu0
    %v154 = vpop.f32.mrb[0].mxu0
    %v155 = vadd.f32 0.0, %v154
    %v156 = vpop.f32.mrb[0].mxu0
    %157 = vmatprep.mubr.bf16.mxu0 0
    %158 = vmatmul.mubr.bf16.gmra.mrb[0].mxu0 %v88
    %v159 = vpop.f32.mrb[0].mxu0
    %v160 = vadd.f32 0.0, %v159
    %v161 = vpop.f32.mrb[0].mxu0
    %v162 = vpop.f32.mrb[0].mxu0
    %v163 = vadd.f32 0.0, %v162
    %v164 = vpop.f32.mrb[0].mxu0
    %165 = vmatprep.mubr.bf16.mxu0 0
    %166 = vmatmul.mubr.bf16.gmra.mrb[0].mxu0 %v89
    %v167 = vpop.f32.mrb[0].mxu0
    %v168 = vadd.f32 0.0, %v167
    %v169 = vpop.f32.mrb[0].mxu0
    %v170 = vpop.f32.mrb[0].mxu0
    %v171 = vadd.f32 0.0, %v170
    %v172 = vpop.f32.mrb[0].mxu0
    %173 = vmatprep.mubr.bf16.mxu0 0
    %174 = vmatmul.mubr.bf16.gmra.mrb[0].mxu0 %v90
    %v175 = vpop.f32.mrb[0].mxu0
    %v176 = vadd.f32 0.0, %v175
    %v177 = vpop.f32.mrb[0].mxu0
    %v178 = vpop.f32.mrb[0].mxu0
    %v179 = vadd.f32 0.0, %v178
    %v180 = vpop.f32.mrb[0].mxu0
    %181 = vmatprep.mubr.bf16.mxu0 0
    %182 = vmatmul.mubr.bf16.gmra.mrb[0].mxu0 %v91
    %v183 = vpop.f32.mrb[0].mxu0
    %v184 = vadd.f32 0.0, %v183
    %v185 = vpop.f32.mrb[0].mxu0
    %v186 = vpop.f32.mrb[0].mxu0
    %v187 = vadd.f32 0.0, %v186
    %v188 = vpop.f32.mrb[0].mxu0
    %189 = vmatprep.mubr.bf16.mxu0 0
    %190 = vmatmul.mubr.bf16.gmra.mrb[0].mxu0 %v92
    %v191 = vpop.f32.mrb[0].mxu0
    %v192 = vadd.f32 0.0, %v191
    %v193 = vpop.f32.mrb[0].mxu0
    %v194 = vpop.f32.mrb[0].mxu0
    %v195 = vadd.f32 0.0, %v194
    %v196 = vpop.f32.mrb[0].mxu0
    %197 = vdwg.mxu0
    %v198 = vpack.c.bf16 %v54, %v53
    %v199 = vpack.c.bf16 %v56, %v55
    %v200 = vpack.c.bf16 %v58, %v57
    %v201 = vpack.c.bf16 %v60, %v59
    %v202 = vpack.c.bf16 %v62, %v61
    %v203 = vpack.c.bf16 %v64, %v63
    %v204 = vpack.c.bf16 %v66, %v65
    %v205 = vpack.c.bf16 %v68, %v67
    %v206 = vpack.c.bf16 %v139, %v136
    %v207 = vpack.c.bf16 %v147, %v144
    %v208 = vpack.c.bf16 %v155, %v152
    %v209 = vpack.c.bf16 %v163, %v160
    %v210 = vpack.c.bf16 %v171, %v168
    %v211 = vpack.c.bf16 %v179, %v176
    %v212 = vpack.c.bf16 %v187, %v184
    %v213 = vpack.c.bf16 %v195, %v192
    %214 = vmatprep.subr.bf16.mxu0 0
    %215 = vmatpush1.bf16.msra.mxu0 %v206
    %216 = vmatprep.subr.bf16.mxu0 0
    %217 = vmatpush1.bf16.msra.mxu0 %v207
    %218 = vmatprep.subr.bf16.mxu0 0
    %219 = vmatpush1.bf16.msra.mxu0 %v208
    %220 = vmatprep.subr.bf16.mxu0 0
    %221 = vmatpush1.bf16.msra.mxu0 %v209
    %222 = vmatprep.subr.bf16.mxu0 0
    %223 = vmatpush1.bf16.msra.mxu0 %v210
    %224 = vmatprep.subr.bf16.mxu0 0
    %225 = vmatpush1.bf16.msra.mxu0 %v211
    %226 = vmatprep.subr.bf16.mxu0 0
    %227 = vmatpush1.bf16.msra.mxu0 %v212
    %228 = vmatprep.subr.bf16.mxu0 0
    %229 = vmatpush1.bf16.msra.mxu0 %v213
    %230 = vmatprep.subr.bf16.mxu0 0
    %231 = vmatpush1.bf16.msra.mxu0 0
    %232 = vmatprep.subr.bf16.mxu0 0
    %233 = vmatpush1.bf16.msra.mxu0 0
    %234 = vmatprep.subr.bf16.mxu0 0
    %235 = vmatpush1.bf16.msra.mxu0 0
    %236 = vmatprep.subr.bf16.mxu0 0
    %237 = vmatpush1.bf16.msra.mxu0 0
    %238 = vmatprep.subr.bf16.mxu0 0
    %239 = vmatpush1.bf16.msra.mxu0 0
    %240 = vmatprep.subr.bf16.mxu0 0
    %241 = vmatpush1.bf16.msra.mxu0 0
    %242 = vmatprep.subr.bf16.mxu0 0
    %243 = vmatpush1.bf16.msra.mxu0 0
    %244 = vmatprep.subr.bf16.mxu0 0
    %245 = vmatpush1.bf16.msra.mxu0 0
    %246 = vmatprep.mubr.bf16.mxu0 0
    %247 = vmatmul.mubr.bf16.gmra.mrb[0].mxu0 %v198
    %v248 = vpop.f32.mrb[0].mxu0
    %v249 = vadd.f32 0.0, %v248
    %v250 = vpop.f32.mrb[0].mxu0
    %v251 = vpop.f32.mrb[0].mxu0
    %v252 = vadd.f32 0.0, %v251
    %v253 = vpop.f32.mrb[0].mxu0
    %254 = vmatprep.mubr.bf16.mxu0 0
    %255 = vmatmul.mubr.bf16.gmra.mrb[0].mxu0 %v199
    %v256 = vpop.f32.mrb[0].mxu0
    %v257 = vadd.f32 0.0, %v256
    %v258 = vpop.f32.mrb[0].mxu0
    %v259 = vpop.f32.mrb[0].mxu0
    %v260 = vadd.f32 0.0, %v259
    %v261 = vpop.f32.mrb[0].mxu0
    %262 = vmatprep.mubr.bf16.mxu0 0
    %263 = vmatmul.mubr.bf16.gmra.mrb[0].mxu0 %v200
    %v264 = vpop.f32.mrb[0].mxu0
    %v265 = vadd.f32 0.0, %v264
    %v266 = vpop.f32.mrb[0].mxu0
    %v267 = vpop.f32.mrb[0].mxu0
    %v268 = vadd.f32 0.0, %v267
    %v269 = vpop.f32.mrb[0].mxu0
    %270 = vmatprep.mubr.bf16.mxu0 0
    %271 = vmatmul.mubr.bf16.gmra.mrb[0].mxu0 %v201
    %v272 = vpop.f32.mrb[0].mxu0
    %v273 = vadd.f32 0.0, %v272
    %v274 = vpop.f32.mrb[0].mxu0
    %v275 = vpop.f32.mrb[0].mxu0
    %v276 = vadd.f32 0.0, %v275
    %v277 = vpop.f32.mrb[0].mxu0
    %278 = vmatprep.mubr.bf16.mxu0 0
    %279 = vmatmul.mubr.bf16.gmra.mrb[0].mxu0 %v202
    %v280 = vpop.f32.mrb[0].mxu0
    %v281 = vadd.f32 0.0, %v280
    %v282 = vpop.f32.mrb[0].mxu0
    %v283 = vpop.f32.mrb[0].mxu0
    %v284 = vadd.f32 0.0, %v283
    %v285 = vpop.f32.mrb[0].mxu0
    %286 = vmatprep.mubr.bf16.mxu0 0
    %287 = vmatmul.mubr.bf16.gmra.mrb[0].mxu0 %v203
    %v288 = vpop.f32.mrb[0].mxu0
    %v289 = vadd.f32 0.0, %v288
    %v290 = vpop.f32.mrb[0].mxu0
    %v291 = vpop.f32.mrb[0].mxu0
    %v292 = vadd.f32 0.0, %v291
    %v293 = vpop.f32.mrb[0].mxu0
    %294 = vmatprep.mubr.bf16.mxu0 0
    %295 = vmatmul.mubr.bf16.gmra.mrb[0].mxu0 %v204
    %v296 = vpop.f32.mrb[0].mxu0
    %v297 = vadd.f32 0.0, %v296
    %v298 = vpop.f32.mrb[0].mxu0
    %v299 = vpop.f32.mrb[0].mxu0
    %v300 = vadd.f32 0.0, %v299
    %v301 = vpop.f32.mrb[0].mxu0
    %302 = vmatprep.mubr.bf16.mxu0 0
    %303 = vmatmul.mubr.bf16.gmra.mrb[0].mxu0 %v205
    %v304 = vpop.f32.mrb[0].mxu0
    %v305 = vadd.f32 0.0, %v304
    %v306 = vpop.f32.mrb[0].mxu0
    %v307 = vpop.f32.mrb[0].mxu0
    %v308 = vadd.f32 0.0, %v307
    %v309 = vpop.f32.mrb[0].mxu0
    %310 = vdwg.mxu0
    %v311 = vsub.f32 %v249, %v69
    %v312 = vsub.f32 %v252, %v70
    %v313 = vsub.f32 %v257, %v71
    %v314 = vsub.f32 %v260, %v72
    %v315 = vsub.f32 %v265, %v73
    %v316 = vsub.f32 %v268, %v74
    %v317 = vsub.f32 %v273, %v75
    %v318 = vsub.f32 %v276, %v76
    %v319 = vsub.f32 %v281, %v77
    %v320 = vsub.f32 %v284, %v78
    %v321 = vsub.f32 %v289, %v79
    %v322 = vsub.f32 %v292, %v80
    %v323 = vsub.f32 %v297, %v81
    %v324 = vsub.f32 %v300, %v82
    %v325 = vsub.f32 %v305, %v83
    %v326 = vsub.f32 %v308, %v84
    %v327 = vpack.c.bf16 %v312, %v311
    %v328 = vpack.c.bf16 %v314, %v313
    %v329 = vpack.c.bf16 %v316, %v315
    %v330 = vpack.c.bf16 %v318, %v317
    %v331 = vpack.c.bf16 %v320, %v319
    %v332 = vpack.c.bf16 %v322, %v321
    %v333 = vpack.c.bf16 %v324, %v323
    %v334 = vpack.c.bf16 %v326, %v325
    %335 = vmatprep.subr.bf16.mxu0 0
    %336 = vmatpush1.bf16.msra.mxu0 %v327
    %337 = vmatprep.subr.bf16.mxu0 0
    %338 = vmatpush1.bf16.msra.mxu0 %v328
    %339 = vmatprep.subr.bf16.mxu0 0
    %340 = vmatpush1.bf16.msra.mxu0 %v329
    %341 = vmatprep.subr.bf16.mxu0 0
    %342 = vmatpush1.bf16.msra.mxu0 %v330
    %343 = vmatprep.subr.bf16.mxu0 0
    %344 = vmatpush1.bf16.msra.mxu0 %v331
    %345 = vmatprep.subr.bf16.mxu0 0
    %346 = vmatpush1.bf16.msra.mxu0 %v332
    %347 = vmatprep.subr.bf16.mxu0 0
    %348 = vmatpush1.bf16.msra.mxu0 %v333
    %349 = vmatprep.subr.bf16.mxu0 0
    %350 = vmatpush1.bf16.msra.mxu0 %v334
    %351 = vmatprep.subr.bf16.mxu0 0
    %352 = vmatpush1.bf16.msra.mxu0 0
    %353 = vmatprep.subr.bf16.mxu0 0
    %354 = vmatpush1.bf16.msra.mxu0 0
    %355 = vmatprep.subr.bf16.mxu0 0
    %356 = vmatpush1.bf16.msra.mxu0 0
    %357 = vmatprep.subr.bf16.mxu0 0
    %358 = vmatpush1.bf16.msra.mxu0 0
    %359 = vmatprep.subr.bf16.mxu0 0
    %360 = vmatpush1.bf16.msra.mxu0 0
    %361 = vmatprep.subr.bf16.mxu0 0
    %362 = vmatpush1.bf16.msra.mxu0 0
    %363 = vmatprep.subr.bf16.mxu0 0
    %364 = vmatpush1.bf16.msra.mxu0 0
    %365 = vmatprep.subr.bf16.mxu0 0
    %366 = vmatpush1.bf16.msra.mxu0 0
    %367 = vmatprep.mubr.bf16.mxu0 0
    %368 = vmatmul.mubr.bf16.gmra.mrb[0].mxu0 %v198
    %v369 = vpop.f32.mrb[0].mxu0
    %v370 = vadd.f32 0.0, %v369
    %v371 = vpop.f32.mrb[0].mxu0
    %v372 = vpop.f32.mrb[0].mxu0
    %v373 = vadd.f32 0.0, %v372
    %v374 = vpop.f32.mrb[0].mxu0
    %375 = vmatprep.mubr.bf16.mxu0 0
    %376 = vmatmul.mubr.bf16.gmra.mrb[0].mxu0 %v199
    %v377 = vpop.f32.mrb[0].mxu0
    %v378 = vadd.f32 0.0, %v377
    %v379 = vpop.f32.mrb[0].mxu0
    %v380 = vpop.f32.mrb[0].mxu0
    %v381 = vadd.f32 0.0, %v380
    %v382 = vpop.f32.mrb[0].mxu0
    %383 = vmatprep.mubr.bf16.mxu0 0
    %384 = vmatmul.mubr.bf16.gmra.mrb[0].mxu0 %v200
    %v385 = vpop.f32.mrb[0].mxu0
    %v386 = vadd.f32 0.0, %v385
    %v387 = vpop.f32.mrb[0].mxu0
    %v388 = vpop.f32.mrb[0].mxu0
    %v389 = vadd.f32 0.0, %v388
    %v390 = vpop.f32.mrb[0].mxu0
    %391 = vmatprep.mubr.bf16.mxu0 0
    %392 = vmatmul.mubr.bf16.gmra.mrb[0].mxu0 %v201
    %v393 = vpop.f32.mrb[0].mxu0
    %v394 = vadd.f32 0.0, %v393
    %v395 = vpop.f32.mrb[0].mxu0
    %v396 = vpop.f32.mrb[0].mxu0
    %v397 = vadd.f32 0.0, %v396
    %v398 = vpop.f32.mrb[0].mxu0
    %399 = vmatprep.mubr.bf16.mxu0 0
    %400 = vmatmul.mubr.bf16.gmra.mrb[0].mxu0 %v202
    %v401 = vpop.f32.mrb[0].mxu0
    %v402 = vadd.f32 0.0, %v401
    %v403 = vpop.f32.mrb[0].mxu0
    %v404 = vpop.f32.mrb[0].mxu0
    %v405 = vadd.f32 0.0, %v404
    %v406 = vpop.f32.mrb[0].mxu0
    %407 = vmatprep.mubr.bf16.mxu0 0
    %408 = vmatmul.mubr.bf16.gmra.mrb[0].mxu0 %v203
    %v409 = vpop.f32.mrb[0].mxu0
    %v410 = vadd.f32 0.0, %v409
    %v411 = vpop.f32.mrb[0].mxu0
    %v412 = vpop.f32.mrb[0].mxu0
    %v413 = vadd.f32 0.0, %v412
    %v414 = vpop.f32.mrb[0].mxu0
    %415 = vmatprep.mubr.bf16.mxu0 0
    %416 = vmatmul.mubr.bf16.gmra.mrb[0].mxu0 %v204
    %v417 = vpop.f32.mrb[0].mxu0
    %v418 = vadd.f32 0.0, %v417
    %v419 = vpop.f32.mrb[0].mxu0
    %v420 = vpop.f32.mrb[0].mxu0
    %v421 = vadd.f32 0.0, %v420
    %v422 = vpop.f32.mrb[0].mxu0
    %423 = vmatprep.mubr.bf16.mxu0 0
    %424 = vmatmul.mubr.bf16.gmra.mrb[0].mxu0 %v205
    %v425 = vpop.f32.mrb[0].mxu0
    %v426 = vadd.f32 0.0, %v425
    %v427 = vpop.f32.mrb[0].mxu0
    %v428 = vpop.f32.mrb[0].mxu0
    %v429 = vadd.f32 0.0, %v428
    %v430 = vpop.f32.mrb[0].mxu0
    %431 = vdwg.mxu0
    %v432 = vsub.f32 %v370, %v136
    %v433 = vsub.f32 %v373, %v139
    %v434 = vsub.f32 %v378, %v144
    %v435 = vsub.f32 %v381, %v147
    %v436 = vsub.f32 %v386, %v152
    %v437 = vsub.f32 %v389, %v155
    %v438 = vsub.f32 %v394, %v160
    %v439 = vsub.f32 %v397, %v163
    %v440 = vsub.f32 %v402, %v168
    %v441 = vsub.f32 %v405, %v171
    %v442 = vsub.f32 %v410, %v176
    %v443 = vsub.f32 %v413, %v179
    %v444 = vsub.f32 %v418, %v184
    %v445 = vsub.f32 %v421, %v187
    %v446 = vsub.f32 %v426, %v192
    %v447 = vsub.f32 %v429, %v195
    %v448 = vpack.c.bf16 %v433, %v432
    %v449 = vpack.c.bf16 %v435, %v434
    %v450 = vpack.c.bf16 %v437, %v436
    %v451 = vpack.c.bf16 %v439, %v438
    %v452 = vpack.c.bf16 %v441, %v440
    %v453 = vpack.c.bf16 %v443, %v442
    %v454 = vpack.c.bf16 %v445, %v444
    %v455 = vpack.c.bf16 %v447, %v446
    %456 = vmatprep.subr.bf16.mxu0 0
    %457 = vmatpush1.bf16.msra.mxu0 %v448
    %458 = vmatprep.subr.bf16.mxu0 0
    %459 = vmatpush1.bf16.msra.mxu0 %v449
    %460 = vmatprep.subr.bf16.mxu0 0
    %461 = vmatpush1.bf16.msra.mxu0 %v450
    %462 = vmatprep.subr.bf16.mxu0 0
    %463 = vmatpush1.bf16.msra.mxu0 %v451
    %464 = vmatprep.subr.bf16.mxu0 0
    %465 = vmatpush1.bf16.msra.mxu0 %v452
    %466 = vmatprep.subr.bf16.mxu0 0
    %467 = vmatpush1.bf16.msra.mxu0 %v453
    %468 = vmatprep.subr.bf16.mxu0 0
    %469 = vmatpush1.bf16.msra.mxu0 %v454
    %470 = vmatprep.subr.bf16.mxu0 0
    %471 = vmatpush1.bf16.msra.mxu0 %v455
    %472 = vmatprep.subr.bf16.mxu0 0
    %473 = vmatpush1.bf16.msra.mxu0 0
    %474 = vmatprep.subr.bf16.mxu0 0
    %475 = vmatpush1.bf16.msra.mxu0 0
    %476 = vmatprep.subr.bf16.mxu0 0
    %477 = vmatpush1.bf16.msra.mxu0 0
    %478 = vmatprep.subr.bf16.mxu0 0
    %479 = vmatpush1.bf16.msra.mxu0 0
    %480 = vmatprep.subr.bf16.mxu0 0
    %481 = vmatpush1.bf16.msra.mxu0 0
    %482 = vmatprep.subr.bf16.mxu0 0
    %483 = vmatpush1.bf16.msra.mxu0 0
    %484 = vmatprep.subr.bf16.mxu0 0
    %485 = vmatpush1.bf16.msra.mxu0 0
    %486 = vmatprep.subr.bf16.mxu0 0
    %487 = vmatpush1.bf16.msra.mxu0 0
    %488 = vmatprep.mubr.bf16.mxu0 0
    %489 = vmatmul.mubr.bf16.gmra.mrb[0].mxu0 %v198
    %v490 = vpop.f32.mrb[0].mxu0
    %v491 = vadd.f32 0.0, %v490
    %v492 = vpop.f32.mrb[0].mxu0
    %v493 = vpop.f32.mrb[0].mxu0
    %v494 = vadd.f32 0.0, %v493
    %v495 = vpop.f32.mrb[0].mxu0
    %496 = vmatprep.mubr.bf16.mxu0 0
    %497 = vmatmul.mubr.bf16.gmra.mrb[0].mxu0 %v199
    %v498 = vpop.f32.mrb[0].mxu0
    %v499 = vadd.f32 0.0, %v498
    %v500 = vpop.f32.mrb[0].mxu0
    %v501 = vpop.f32.mrb[0].mxu0
    %v502 = vadd.f32 0.0, %v501
    %v503 = vpop.f32.mrb[0].mxu0
    %504 = vmatprep.mubr.bf16.mxu0 0
    %505 = vmatmul.mubr.bf16.gmra.mrb[0].mxu0 %v200
    %v506 = vpop.f32.mrb[0].mxu0
    %v507 = vadd.f32 0.0, %v506
    %v508 = vpop.f32.mrb[0].mxu0
    %v509 = vpop.f32.mrb[0].mxu0
    %v510 = vadd.f32 0.0, %v509
    %v511 = vpop.f32.mrb[0].mxu0
    %512 = vmatprep.mubr.bf16.mxu0 0
    %513 = vmatmul.mubr.bf16.gmra.mrb[0].mxu0 %v201
    %v514 = vpop.f32.mrb[0].mxu0
    %v515 = vadd.f32 0.0, %v514
    %v516 = vpop.f32.mrb[0].mxu0
    %v517 = vpop.f32.mrb[0].mxu0
    %v518 = vadd.f32 0.0, %v517
    %v519 = vpop.f32.mrb[0].mxu0
    %520 = vmatprep.mubr.bf16.mxu0 0
    %521 = vmatmul.mubr.bf16.gmra.mrb[0].mxu0 %v202
    %v522 = vpop.f32.mrb[0].mxu0
    %v523 = vadd.f32 0.0, %v522
    %v524 = vpop.f32.mrb[0].mxu0
    %v525 = vpop.f32.mrb[0].mxu0
    %v526 = vadd.f32 0.0, %v525
    %v527 = vpop.f32.mrb[0].mxu0
    %528 = vmatprep.mubr.bf16.mxu0 0
    %529 = vmatmul.mubr.bf16.gmra.mrb[0].mxu0 %v203
    %v530 = vpop.f32.mrb[0].mxu0
    %v531 = vadd.f32 0.0, %v530
    %v532 = vpop.f32.mrb[0].mxu0
    %v533 = vpop.f32.mrb[0].mxu0
    %v534 = vadd.f32 0.0, %v533
    %v535 = vpop.f32.mrb[0].mxu0
    %536 = vmatprep.mubr.bf16.mxu0 0
    %537 = vmatmul.mubr.bf16.gmra.mrb[0].mxu0 %v204
    %v538 = vpop.f32.mrb[0].mxu0
    %v539 = vadd.f32 0.0, %v538
    %v540 = vpop.f32.mrb[0].mxu0
    %v541 = vpop.f32.mrb[0].mxu0
    %v542 = vadd.f32 0.0, %v541
    %v543 = vpop.f32.mrb[0].mxu0
    %544 = vmatprep.mubr.bf16.mxu0 0
    %545 = vmatmul.mubr.bf16.gmra.mrb[0].mxu0 %v205
    %v546 = vpop.f32.mrb[0].mxu0
    %v547 = vadd.f32 0.0, %v546
    %v548 = vpop.f32.mrb[0].mxu0
    %v549 = vpop.f32.mrb[0].mxu0
    %v550 = vadd.f32 0.0, %v549
    %v551 = vpop.f32.mrb[0].mxu0
    %552 = vdwg.mxu0
    %v553 = vsub.f32 %v491, %v311
    %v554 = vsub.f32 %v494, %v312
    %v555 = vsub.f32 %v499, %v313
    %v556 = vsub.f32 %v502, %v314
    %v557 = vsub.f32 %v507, %v315
    %v558 = vsub.f32 %v510, %v316
    %v559 = vsub.f32 %v515, %v317
    %v560 = vsub.f32 %v518, %v318
    %v561 = vsub.f32 %v523, %v319
    %v562 = vsub.f32 %v526, %v320
    %v563 = vsub.f32 %v531, %v321
    %v564 = vsub.f32 %v534, %v322
    %v565 = vsub.f32 %v539, %v323
    %v566 = vsub.f32 %v542, %v324
    %v567 = vsub.f32 %v547, %v325
    %v568 = vsub.f32 %v550, %v326
    %585 = vrot.lane.b32.xlu0 %v136, 8
    %v586 = vpop.permute.xlu0 %585
    %587 = vrot.lane.b32.xlu0 %v139, 8
    %v588 = vpop.permute.xlu0 %587
    %589 = vrot.lane.b32.xlu0 %v144, 8
    %v590 = vpop.permute.xlu0 %589
    %591 = vrot.lane.b32.xlu0 %v147, 8
    %v592 = vpop.permute.xlu0 %591
    %593 = vrot.lane.b32.xlu0 %v152, 8
    %v594 = vpop.permute.xlu0 %593
    %595 = vrot.lane.b32.xlu0 %v155, 8
    %v596 = vpop.permute.xlu0 %595
    %597 = vrot.lane.b32.xlu0 %v160, 8
    %v598 = vpop.permute.xlu0 %597
    %599 = vrot.lane.b32.xlu0 %v163, 8
    %v600 = vpop.permute.xlu0 %599
    %601 = vrot.lane.b32.xlu0 %v168, 8
    %v602 = vpop.permute.xlu0 %601
    %603 = vrot.lane.b32.xlu0 %v171, 8
    %v604 = vpop.permute.xlu0 %603
    %605 = vrot.lane.b32.xlu0 %v176, 8
    %v606 = vpop.permute.xlu0 %605
    %607 = vrot.lane.b32.xlu0 %v179, 8
    %v608 = vpop.permute.xlu0 %607
    %609 = vrot.lane.b32.xlu0 %v184, 8
    %v610 = vpop.permute.xlu0 %609
    %611 = vrot.lane.b32.xlu0 %v187, 8
    %v612 = vpop.permute.xlu0 %611
    %613 = vrot.lane.b32.xlu0 %v192, 8
    %v614 = vpop.permute.xlu0 %613
    %615 = vrot.lane.b32.xlu0 %v195, 8
    %v616 = vpop.permute.xlu0 %615
    %649 = vrot.lane.b32.xlu0 %v311, 16
    %v650 = vpop.permute.xlu0 %649
    %651 = vrot.lane.b32.xlu0 %v312, 16
    %v652 = vpop.permute.xlu0 %651
    %653 = vrot.lane.b32.xlu0 %v313, 16
    %v654 = vpop.permute.xlu0 %653
    %655 = vrot.lane.b32.xlu0 %v314, 16
    %v656 = vpop.permute.xlu0 %655
    %657 = vrot.lane.b32.xlu0 %v315, 16
    %v658 = vpop.permute.xlu0 %657
    %659 = vrot.lane.b32.xlu0 %v316, 16
    %v660 = vpop.permute.xlu0 %659
    %661 = vrot.lane.b32.xlu0 %v317, 16
    %v662 = vpop.permute.xlu0 %661
    %663 = vrot.lane.b32.xlu0 %v318, 16
    %v664 = vpop.permute.xlu0 %663
    %665 = vrot.lane.b32.xlu0 %v319, 16
    %v666 = vpop.permute.xlu0 %665
    %667 = vrot.lane.b32.xlu0 %v320, 16
    %v668 = vpop.permute.xlu0 %667
    %669 = vrot.lane.b32.xlu0 %v321, 16
    %v670 = vpop.permute.xlu0 %669
    %671 = vrot.lane.b32.xlu0 %v322, 16
    %v672 = vpop.permute.xlu0 %671
    %673 = vrot.lane.b32.xlu0 %v323, 16
    %v674 = vpop.permute.xlu0 %673
    %675 = vrot.lane.b32.xlu0 %v324, 16
    %v676 = vpop.permute.xlu0 %675
    %677 = vrot.lane.b32.xlu0 %v325, 16
    %v678 = vpop.permute.xlu0 %677
    %679 = vrot.lane.b32.xlu0 %v326, 16
    %v680 = vpop.permute.xlu0 %679
    %713 = vrot.lane.b32.xlu0 %v432, 24
    %v714 = vpop.permute.xlu0 %713
    %715 = vrot.lane.b32.xlu0 %v433, 24
    %v716 = vpop.permute.xlu0 %715
    %717 = vrot.lane.b32.xlu0 %v434, 24
    %v718 = vpop.permute.xlu0 %717
    %719 = vrot.lane.b32.xlu0 %v435, 24
    %v720 = vpop.permute.xlu0 %719
    %721 = vrot.lane.b32.xlu0 %v436, 24
    %v722 = vpop.permute.xlu0 %721
    %723 = vrot.lane.b32.xlu0 %v437, 24
    %v724 = vpop.permute.xlu0 %723
    %725 = vrot.lane.b32.xlu0 %v438, 24
    %v726 = vpop.permute.xlu0 %725
    %727 = vrot.lane.b32.xlu0 %v439, 24
    %v728 = vpop.permute.xlu0 %727
    %729 = vrot.lane.b32.xlu0 %v440, 24
    %v730 = vpop.permute.xlu0 %729
    %731 = vrot.lane.b32.xlu0 %v441, 24
    %v732 = vpop.permute.xlu0 %731
    %733 = vrot.lane.b32.xlu0 %v442, 24
    %v734 = vpop.permute.xlu0 %733
    %735 = vrot.lane.b32.xlu0 %v443, 24
    %v736 = vpop.permute.xlu0 %735
    %737 = vrot.lane.b32.xlu0 %v444, 24
    %v738 = vpop.permute.xlu0 %737
    %739 = vrot.lane.b32.xlu0 %v445, 24
    %v740 = vpop.permute.xlu0 %739
    %741 = vrot.lane.b32.xlu0 %v446, 24
    %v742 = vpop.permute.xlu0 %741
    %743 = vrot.lane.b32.xlu0 %v447, 24
    %v744 = vpop.permute.xlu0 %743
    %777 = vrot.lane.b32.xlu0 %v553, 32
    %v778 = vpop.permute.xlu0 %777
    %779 = vrot.lane.b32.xlu0 %v554, 32
    %v780 = vpop.permute.xlu0 %779
    %781 = vrot.lane.b32.xlu0 %v555, 32
    %v782 = vpop.permute.xlu0 %781
    %783 = vrot.lane.b32.xlu0 %v556, 32
    %v784 = vpop.permute.xlu0 %783
    %785 = vrot.lane.b32.xlu0 %v557, 32
    %v786 = vpop.permute.xlu0 %785
    %787 = vrot.lane.b32.xlu0 %v558, 32
    %v788 = vpop.permute.xlu0 %787
    %789 = vrot.lane.b32.xlu0 %v559, 32
    %v790 = vpop.permute.xlu0 %789
    %791 = vrot.lane.b32.xlu0 %v560, 32
    %v792 = vpop.permute.xlu0 %791
    %793 = vrot.lane.b32.xlu0 %v561, 32
    %v794 = vpop.permute.xlu0 %793
    %795 = vrot.lane.b32.xlu0 %v562, 32
    %v796 = vpop.permute.xlu0 %795
    %797 = vrot.lane.b32.xlu0 %v563, 32
    %v798 = vpop.permute.xlu0 %797
    %799 = vrot.lane.b32.xlu0 %v564, 32
    %v800 = vpop.permute.xlu0 %799
    %801 = vrot.lane.b32.xlu0 %v565, 32
    %v802 = vpop.permute.xlu0 %801
    %803 = vrot.lane.b32.xlu0 %v566, 32
    %v804 = vpop.permute.xlu0 %803
    %805 = vrot.lane.b32.xlu0 %v567, 32
    %v806 = vpop.permute.xlu0 %805
    %807 = vrot.lane.b32.xlu0 %v568, 32
    %v808 = vpop.permute.xlu0 %807
    %vm825 = vcmask 64512
    %v826 = vsel %vm825, %v69, %v586
    %v827 = vsel %vm825, %v70, %v588
    %v828 = vsel %vm825, %v71, %v590
    %v829 = vsel %vm825, %v72, %v592
    %v830 = vsel %vm825, %v73, %v594
    %v831 = vsel %vm825, %v74, %v596
    %v832 = vsel %vm825, %v75, %v598
    %v833 = vsel %vm825, %v76, %v600
    %v834 = vsel %vm825, %v77, %v602
    %v835 = vsel %vm825, %v78, %v604
    %v836 = vsel %vm825, %v79, %v606
    %v837 = vsel %vm825, %v80, %v608
    %v838 = vsel %vm825, %v81, %v610
    %v839 = vsel %vm825, %v82, %v612
    %v840 = vsel %vm825, %v83, %v614
    %v841 = vsel %vm825, %v84, %v616
    %vm842 = vcmask 130048
    %v843 = vsel %vm842, %v826, %v650
    %v844 = vsel %vm842, %v827, %v652
    %v845 = vsel %vm842, %v828, %v654
    %v846 = vsel %vm842, %v829, %v656
    %v847 = vsel %vm842, %v830, %v658
    %v848 = vsel %vm842, %v831, %v660
    %v849 = vsel %vm842, %v832, %v662
    %v850 = vsel %vm842, %v833, %v664
    %v851 = vsel %vm842, %v834, %v666
    %v852 = vsel %vm842, %v835, %v668
    %v853 = vsel %vm842, %v836, %v670
    %v854 = vsel %vm842, %v837, %v672
    %v855 = vsel %vm842, %v838, %v674
    %v856 = vsel %vm842, %v839, %v676
    %v857 = vsel %vm842, %v840, %v678
    %v858 = vsel %vm842, %v841, %v680
    %vm859 = vcmask 195584
    %v860 = vsel %vm859, %v843, %v714
    %v861 = vsel %vm859, %v844, %v716
    %v862 = vsel %vm859, %v845, %v718
    %v863 = vsel %vm859, %v846, %v720
    %v864 = vsel %vm859, %v847, %v722
    %v865 = vsel %vm859, %v848, %v724
    %v866 = vsel %vm859, %v849, %v726
    %v867 = vsel %vm859, %v850, %v728
    %v868 = vsel %vm859, %v851, %v730
    %v869 = vsel %vm859, %v852, %v732
    %v870 = vsel %vm859, %v853, %v734
    %v871 = vsel %vm859, %v854, %v736
    %v872 = vsel %vm859, %v855, %v738
    %v873 = vsel %vm859, %v856, %v740
    %v874 = vsel %vm859, %v857, %v742
    %v875 = vsel %vm859, %v858, %v744
    %vm876 = vcmask 261120
    %v877 = vsel %vm876, %v860, %v778
    %v878 = vsel %vm876, %v861, %v780
    %v879 = vsel %vm876, %v862, %v782
    %v880 = vsel %vm876, %v863, %v784
    %v881 = vsel %vm876, %v864, %v786
    %v882 = vsel %vm876, %v865, %v788
    %v883 = vsel %vm876, %v866, %v790
    %v884 = vsel %vm876, %v867, %v792
    %v885 = vsel %vm876, %v868, %v794
    %v886 = vsel %vm876, %v869, %v796
    %v887 = vsel %vm876, %v870, %v798
    %v888 = vsel %vm876, %v871, %v800
    %v889 = vsel %vm876, %v872, %v802
    %v890 = vsel %vm876, %v873, %v804
    %v891 = vsel %vm876, %v874, %v806
    %v892 = vsel %vm876, %v875, %v808
    %v893 = vld [vmem:[%s4] sm:$0xff]
    %v894 = vld [vmem:[%s4 + $0x8] sm:$0xff]
    %v895 = vld [vmem:[%s4 + $0x10] sm:$0xff]
    %v896 = vld [vmem:[%s4 + $0x18] sm:$0xff]
    %v897 = vld [vmem:[%s4 + $0x20] sm:$0xff]
    %v898 = vpack.c.bf16 %v878, %v877
    %v899 = vpack.c.bf16 %v880, %v879
    %v900 = vpack.c.bf16 %v882, %v881
    %v901 = vpack.c.bf16 %v884, %v883
    %v902 = vpack.c.bf16 %v886, %v885
    %v903 = vpack.c.bf16 %v888, %v887
    %v904 = vpack.c.bf16 %v890, %v889
    %v905 = vpack.c.bf16 %v892, %v891
    %v906 = vpack.c.bf16 %v894, %v893
    %v907 = vpack.c.bf16 %v896, %v895
    %v908 = vpack.c.bf16 %v897, %v897
    %vm909 = vcmask 326656
    %v911 = vsel %vm909, %v898, 0
    %v914 = vsel %vm909, %v899, 0
    %v917 = vsel %vm909, %v900, 0
    %v920 = vsel %vm909, %v901, 0
    %v923 = vsel %vm909, %v902, 0
    %v926 = vsel %vm909, %v903, 0
    %v929 = vsel %vm909, %v904, 0
    %v932 = vsel %vm909, %v905, 0
    %vm934 = vcmask 1043456
    %v936 = vsel %vm934, %v908, 0
    %938 = vmatprep.subr.bf16.mxu0 0
    %939 = vmatpush1.bf16.msra.mxu0 %v906
    %940 = vmatprep.subr.bf16.mxu0 0
    %941 = vmatpush1.bf16.msra.mxu0 %v907
    %942 = vmatprep.subr.bf16.mxu0 0
    %943 = vmatpush1.bf16.msra.mxu0 %v936
    %944 = vmatprep.subr.bf16.mxu0 0
    %945 = vmatpush1.bf16.msra.mxu0 0
    %946 = vmatprep.subr.bf16.mxu0 0
    %947 = vmatpush1.bf16.msra.mxu0 0
    %948 = vmatprep.subr.bf16.mxu0 0
    %949 = vmatpush1.bf16.msra.mxu0 0
    %950 = vmatprep.subr.bf16.mxu0 0
    %951 = vmatpush1.bf16.msra.mxu0 0
    %952 = vmatprep.subr.bf16.mxu0 0
    %953 = vmatpush1.bf16.msra.mxu0 0
    %954 = vmatprep.subr.bf16.mxu0 0
    %955 = vmatpush1.bf16.msra.mxu0 0
    %956 = vmatprep.subr.bf16.mxu0 0
    %957 = vmatpush1.bf16.msra.mxu0 0
    %958 = vmatprep.subr.bf16.mxu0 0
    %959 = vmatpush1.bf16.msra.mxu0 0
    %960 = vmatprep.subr.bf16.mxu0 0
    %961 = vmatpush1.bf16.msra.mxu0 0
    %962 = vmatprep.subr.bf16.mxu0 0
    %963 = vmatpush1.bf16.msra.mxu0 0
    %964 = vmatprep.subr.bf16.mxu0 0
    %965 = vmatpush1.bf16.msra.mxu0 0
    %966 = vmatprep.subr.bf16.mxu0 0
    %967 = vmatpush1.bf16.msra.mxu0 0
    %968 = vmatprep.subr.bf16.mxu0 0
    %969 = vmatpush1.bf16.msra.mxu0 0
    %970 = vmatprep.mubr.bf16.mxu0 0
    %971 = vmatmul.mubr.bf16.gmra.mrb[0].mxu0 %v911
    %v972 = vpop.f32.mrb[0].mxu0
    %v973 = vadd.f32 0.0, %v972
    %v974 = vpop.f32.mrb[0].mxu0
    %v975 = vpop.f32.mrb[0].mxu0
    %v976 = vadd.f32 0.0, %v975
    %v977 = vpop.f32.mrb[0].mxu0
    %978 = vmatprep.mubr.bf16.mxu0 0
    %979 = vmatmul.mubr.bf16.gmra.mrb[0].mxu0 %v914
    %v980 = vpop.f32.mrb[0].mxu0
    %v981 = vadd.f32 0.0, %v980
    %v982 = vpop.f32.mrb[0].mxu0
    %v983 = vpop.f32.mrb[0].mxu0
    %v984 = vadd.f32 0.0, %v983
    %v985 = vpop.f32.mrb[0].mxu0
    %986 = vmatprep.mubr.bf16.mxu0 0
    %987 = vmatmul.mubr.bf16.gmra.mrb[0].mxu0 %v917
    %v988 = vpop.f32.mrb[0].mxu0
    %v989 = vadd.f32 0.0, %v988
    %v990 = vpop.f32.mrb[0].mxu0
    %v991 = vpop.f32.mrb[0].mxu0
    %v992 = vadd.f32 0.0, %v991
    %v993 = vpop.f32.mrb[0].mxu0
    %994 = vmatprep.mubr.bf16.mxu0 0
    %995 = vmatmul.mubr.bf16.gmra.mrb[0].mxu0 %v920
    %v996 = vpop.f32.mrb[0].mxu0
    %v997 = vadd.f32 0.0, %v996
    %v998 = vpop.f32.mrb[0].mxu0
    %v999 = vpop.f32.mrb[0].mxu0
    %v1000 = vadd.f32 0.0, %v999
    %v1001 = vpop.f32.mrb[0].mxu0
    %1002 = vmatprep.mubr.bf16.mxu0 0
    %1003 = vmatmul.mubr.bf16.gmra.mrb[0].mxu0 %v923
    %v1004 = vpop.f32.mrb[0].mxu0
    %v1005 = vadd.f32 0.0, %v1004
    %v1006 = vpop.f32.mrb[0].mxu0
    %v1007 = vpop.f32.mrb[0].mxu0
    %v1008 = vadd.f32 0.0, %v1007
    %v1009 = vpop.f32.mrb[0].mxu0
    %1010 = vmatprep.mubr.bf16.mxu0 0
    %1011 = vmatmul.mubr.bf16.gmra.mrb[0].mxu0 %v926
    %v1012 = vpop.f32.mrb[0].mxu0
    %v1013 = vadd.f32 0.0, %v1012
    %v1014 = vpop.f32.mrb[0].mxu0
    %v1015 = vpop.f32.mrb[0].mxu0
    %v1016 = vadd.f32 0.0, %v1015
    %v1017 = vpop.f32.mrb[0].mxu0
    %1018 = vmatprep.mubr.bf16.mxu0 0
    %1019 = vmatmul.mubr.bf16.gmra.mrb[0].mxu0 %v929
    %v1020 = vpop.f32.mrb[0].mxu0
    %v1021 = vadd.f32 0.0, %v1020
    %v1022 = vpop.f32.mrb[0].mxu0
    %v1023 = vpop.f32.mrb[0].mxu0
    %v1024 = vadd.f32 0.0, %v1023
    %v1025 = vpop.f32.mrb[0].mxu0
    %1026 = vmatprep.mubr.bf16.mxu0 0
    %1027 = vmatmul.mubr.bf16.gmra.mrb[0].mxu0 %v932
    %v1028 = vpop.f32.mrb[0].mxu0
    %v1029 = vadd.f32 0.0, %v1028
    %v1030 = vpop.f32.mrb[0].mxu0
    %v1031 = vpop.f32.mrb[0].mxu0
    %v1032 = vadd.f32 0.0, %v1031
    %v1033 = vpop.f32.mrb[0].mxu0
    %1034 = vdwg.mxu0
    %v1035 = vlaneseq
    %v1036 = vand.u32 %v1035, 127
    %vm1037 = vcmp.lt.s32.totalorder %v1036, 64
    %v1038 = vsel %vm1037, %v973, %v1005
    %v1039 = vsel %vm1037, %v976, %v1008
    %v1040 = vsel %vm1037, %v981, %v1013
    %v1041 = vsel %vm1037, %v984, %v1016
    %v1042 = vsel %vm1037, %v989, %v1021
    %v1043 = vsel %vm1037, %v992, %v1024
    %v1044 = vsel %vm1037, %v997, %v1029
    %v1045 = vsel %vm1037, %v1000, %v1032
    %v1046 = vld [vmem:[%s5] sm:$0x1]
    %v1048 = vlaneseq
    %v1049 = vshrl.u32 %v1048, 7
    %v1050 = vsub.s32 0, %v1049
    %v1051 = vrot.slane %v1046, %v1050
    %v1053 = vadd.f32 %v1038, %v1051
    %v1054 = vadd.f32 %v1039, %v1051
    %v1055 = vadd.f32 %v1040, %v1051
    %v1056 = vadd.f32 %v1041, %v1051
    %v1057 = vadd.f32 %v1042, %v1051
    %v1058 = vadd.f32 %v1043, %v1051
    %v1059 = vadd.f32 %v1044, %v1051
    %v1060 = vadd.f32 %v1045, %v1051
    %v1061 = vmax.f32 %v1053, 0.0
    %v1062 = vmax.f32 %v1054, 0.0
    %v1063 = vmax.f32 %v1055, 0.0
    %v1064 = vmax.f32 %v1056, 0.0
    %v1065 = vmax.f32 %v1057, 0.0
    %v1066 = vmax.f32 %v1058, 0.0
    %v1067 = vmax.f32 %v1059, 0.0
    %v1068 = vmax.f32 %v1060, 0.0
    %v1069 = vpack.c.bf16 %v1062, %v1061
    %v1070 = vpack.c.bf16 %v1064, %v1063
    %v1071 = vpack.c.bf16 %v1066, %v1065
    %v1072 = vpack.c.bf16 %v1068, %v1067
    %1073 = vmatprep.subr.bf16.mxu0 0
    %1074 = vmatpush1.bf16.msra.mxu0 %v1069
    %1075 = vmatprep.subr.bf16.mxu0 0
    %1076 = vmatpush1.bf16.msra.mxu0 %v1070
    %1077 = vmatprep.subr.bf16.mxu0 0
    %1078 = vmatpush1.bf16.msra.mxu0 %v1071
    %1079 = vmatprep.subr.bf16.mxu0 0
    %1080 = vmatpush1.bf16.msra.mxu0 %v1072
    %1081 = vmatprep.subr.bf16.mxu0 0
    %1082 = vmatpush1.bf16.msra.mxu0 %v1069
    %1083 = vmatprep.subr.bf16.mxu0 0
    %1084 = vmatpush1.bf16.msra.mxu0 %v1070
    %1085 = vmatprep.subr.bf16.mxu0 0
    %1086 = vmatpush1.bf16.msra.mxu0 %v1071
    %1087 = vmatprep.subr.bf16.mxu0 0
    %1088 = vmatpush1.bf16.msra.mxu0 %v1072
    %1089 = vmatprep.subr.bf16.mxu0 0
    %1090 = vmatpush1.bf16.msra.mxu0 0
    %1091 = vmatprep.subr.bf16.mxu0 0
    %1092 = vmatpush1.bf16.msra.mxu0 0
    %1093 = vmatprep.subr.bf16.mxu0 0
    %1094 = vmatpush1.bf16.msra.mxu0 0
    %1095 = vmatprep.subr.bf16.mxu0 0
    %1096 = vmatpush1.bf16.msra.mxu0 0
    %1097 = vmatprep.subr.bf16.mxu0 0
    %1098 = vmatpush1.bf16.msra.mxu0 0
    %1099 = vmatprep.subr.bf16.mxu0 0
    %1100 = vmatpush1.bf16.msra.mxu0 0
    %1101 = vmatprep.subr.bf16.mxu0 0
    %1102 = vmatpush1.bf16.msra.mxu0 0
    %1103 = vmatprep.subr.bf16.mxu0 0
    %1104 = vmatpush1.bf16.msra.mxu0 0
    %1105 = vmatprep.mubr.bf16.mxu0 0
    %1106 = vmatmul.mubr.bf16.gmra.mrb[0].mxu0 %v85
    %v1107 = vpop.f32.mrb[0].mxu0
    %v1108 = vadd.f32 0.0, %v1107
    %v1109 = vpop.f32.mrb[0].mxu0
    %v1110 = vpop.f32.mrb[0].mxu0
    %v1111 = vadd.f32 0.0, %v1110
    %v1112 = vpop.f32.mrb[0].mxu0
    %1113 = vmatprep.mubr.bf16.mxu0 0
    %1114 = vmatmul.mubr.bf16.gmra.mrb[0].mxu0 %v86
    %v1115 = vpop.f32.mrb[0].mxu0
    %v1116 = vadd.f32 0.0, %v1115
    %v1117 = vpop.f32.mrb[0].mxu0
    %v1118 = vpop.f32.mrb[0].mxu0
    %v1119 = vadd.f32 0.0, %v1118
    %v1120 = vpop.f32.mrb[0].mxu0
    %1121 = vmatprep.mubr.bf16.mxu0 0
    %1122 = vmatmul.mubr.bf16.gmra.mrb[0].mxu0 %v87
    %v1123 = vpop.f32.mrb[0].mxu0
    %v1124 = vadd.f32 0.0, %v1123
    %v1125 = vpop.f32.mrb[0].mxu0
    %v1126 = vpop.f32.mrb[0].mxu0
    %v1127 = vadd.f32 0.0, %v1126
    %v1128 = vpop.f32.mrb[0].mxu0
    %1129 = vmatprep.mubr.bf16.mxu0 0
    %1130 = vmatmul.mubr.bf16.gmra.mrb[0].mxu0 %v88
    %v1131 = vpop.f32.mrb[0].mxu0
    %v1132 = vadd.f32 0.0, %v1131
    %v1133 = vpop.f32.mrb[0].mxu0
    %v1134 = vpop.f32.mrb[0].mxu0
    %v1135 = vadd.f32 0.0, %v1134
    %v1136 = vpop.f32.mrb[0].mxu0
    %1137 = vmatprep.mubr.bf16.mxu0 0
    %1138 = vmatmul.mubr.bf16.gmra.mrb[0].mxu0 %v89
    %v1139 = vpop.f32.mrb[0].mxu0
    %v1140 = vadd.f32 0.0, %v1139
    %v1141 = vpop.f32.mrb[0].mxu0
    %v1142 = vpop.f32.mrb[0].mxu0
    %v1143 = vadd.f32 0.0, %v1142
    %v1144 = vpop.f32.mrb[0].mxu0
    %1145 = vmatprep.mubr.bf16.mxu0 0
    %1146 = vmatmul.mubr.bf16.gmra.mrb[0].mxu0 %v90
    %v1147 = vpop.f32.mrb[0].mxu0
    %v1148 = vadd.f32 0.0, %v1147
    %v1149 = vpop.f32.mrb[0].mxu0
    %v1150 = vpop.f32.mrb[0].mxu0
    %v1151 = vadd.f32 0.0, %v1150
    %v1152 = vpop.f32.mrb[0].mxu0
    %1153 = vmatprep.mubr.bf16.mxu0 0
    %1154 = vmatmul.mubr.bf16.gmra.mrb[0].mxu0 %v91
    %v1155 = vpop.f32.mrb[0].mxu0
    %v1156 = vadd.f32 0.0, %v1155
    %v1157 = vpop.f32.mrb[0].mxu0
    %v1158 = vpop.f32.mrb[0].mxu0
    %v1159 = vadd.f32 0.0, %v1158
    %v1160 = vpop.f32.mrb[0].mxu0
    %1161 = vmatprep.mubr.bf16.mxu0 0
    %1162 = vmatmul.mubr.bf16.gmra.mrb[0].mxu0 %v92
    %v1163 = vpop.f32.mrb[0].mxu0
    %v1164 = vadd.f32 0.0, %v1163
    %v1165 = vpop.f32.mrb[0].mxu0
    %v1166 = vpop.f32.mrb[0].mxu0
    %v1167 = vadd.f32 0.0, %v1166
    %v1168 = vpop.f32.mrb[0].mxu0
    %1169 = vdwg.mxu0
    %v1170 = vpack.c.bf16 %v1111, %v1108
    %v1171 = vpack.c.bf16 %v1119, %v1116
    %v1172 = vpack.c.bf16 %v1127, %v1124
    %v1173 = vpack.c.bf16 %v1135, %v1132
    %v1174 = vpack.c.bf16 %v1143, %v1140
    %v1175 = vpack.c.bf16 %v1151, %v1148
    %v1176 = vpack.c.bf16 %v1159, %v1156
    %v1177 = vpack.c.bf16 %v1167, %v1164
    %1178 = vmatprep.subr.bf16.mxu0 0
    %1179 = vmatpush1.bf16.msra.mxu0 %v1170
    %1180 = vmatprep.subr.bf16.mxu0 0
    %1181 = vmatpush1.bf16.msra.mxu0 %v1171
    %1182 = vmatprep.subr.bf16.mxu0 0
    %1183 = vmatpush1.bf16.msra.mxu0 %v1172
    %1184 = vmatprep.subr.bf16.mxu0 0
    %1185 = vmatpush1.bf16.msra.mxu0 %v1173
    %1186 = vmatprep.subr.bf16.mxu0 0
    %1187 = vmatpush1.bf16.msra.mxu0 %v1174
    %1188 = vmatprep.subr.bf16.mxu0 0
    %1189 = vmatpush1.bf16.msra.mxu0 %v1175
    %1190 = vmatprep.subr.bf16.mxu0 0
    %1191 = vmatpush1.bf16.msra.mxu0 %v1176
    %1192 = vmatprep.subr.bf16.mxu0 0
    %1193 = vmatpush1.bf16.msra.mxu0 %v1177
    %1194 = vmatprep.subr.bf16.mxu0 0
    %1195 = vmatpush1.bf16.msra.mxu0 0
    %1196 = vmatprep.subr.bf16.mxu0 0
    %1197 = vmatpush1.bf16.msra.mxu0 0
    %1198 = vmatprep.subr.bf16.mxu0 0
    %1199 = vmatpush1.bf16.msra.mxu0 0
    %1200 = vmatprep.subr.bf16.mxu0 0
    %1201 = vmatpush1.bf16.msra.mxu0 0
    %1202 = vmatprep.subr.bf16.mxu0 0
    %1203 = vmatpush1.bf16.msra.mxu0 0
    %1204 = vmatprep.subr.bf16.mxu0 0
    %1205 = vmatpush1.bf16.msra.mxu0 0
    %1206 = vmatprep.subr.bf16.mxu0 0
    %1207 = vmatpush1.bf16.msra.mxu0 0
    %1208 = vmatprep.subr.bf16.mxu0 0
    %1209 = vmatpush1.bf16.msra.mxu0 0
    %1210 = vmatprep.mubr.bf16.mxu0 0
    %1211 = vmatmul.mubr.bf16.gmra.mrb[0].mxu0 %v198
    %v1212 = vpop.f32.mrb[0].mxu0
    %v1213 = vadd.f32 0.0, %v1212
    %v1214 = vpop.f32.mrb[0].mxu0
    %v1215 = vpop.f32.mrb[0].mxu0
    %v1216 = vadd.f32 0.0, %v1215
    %v1217 = vpop.f32.mrb[0].mxu0
    %1218 = vmatprep.mubr.bf16.mxu0 0
    %1219 = vmatmul.mubr.bf16.gmra.mrb[0].mxu0 %v199
    %v1220 = vpop.f32.mrb[0].mxu0
    %v1221 = vadd.f32 0.0, %v1220
    %v1222 = vpop.f32.mrb[0].mxu0
    %v1223 = vpop.f32.mrb[0].mxu0
    %v1224 = vadd.f32 0.0, %v1223
    %v1225 = vpop.f32.mrb[0].mxu0
    %1226 = vmatprep.mubr.bf16.mxu0 0
    %1227 = vmatmul.mubr.bf16.gmra.mrb[0].mxu0 %v200
    %v1228 = vpop.f32.mrb[0].mxu0
    %v1229 = vadd.f32 0.0, %v1228
    %v1230 = vpop.f32.mrb[0].mxu0
    %v1231 = vpop.f32.mrb[0].mxu0
    %v1232 = vadd.f32 0.0, %v1231
    %v1233 = vpop.f32.mrb[0].mxu0
    %1234 = vmatprep.mubr.bf16.mxu0 0
    %1235 = vmatmul.mubr.bf16.gmra.mrb[0].mxu0 %v201
    %v1236 = vpop.f32.mrb[0].mxu0
    %v1237 = vadd.f32 0.0, %v1236
    %v1238 = vpop.f32.mrb[0].mxu0
    %v1239 = vpop.f32.mrb[0].mxu0
    %v1240 = vadd.f32 0.0, %v1239
    %v1241 = vpop.f32.mrb[0].mxu0
    %1242 = vmatprep.mubr.bf16.mxu0 0
    %1243 = vmatmul.mubr.bf16.gmra.mrb[0].mxu0 %v202
    %v1244 = vpop.f32.mrb[0].mxu0
    %v1245 = vadd.f32 0.0, %v1244
    %v1246 = vpop.f32.mrb[0].mxu0
    %v1247 = vpop.f32.mrb[0].mxu0
    %v1248 = vadd.f32 0.0, %v1247
    %v1249 = vpop.f32.mrb[0].mxu0
    %1250 = vmatprep.mubr.bf16.mxu0 0
    %1251 = vmatmul.mubr.bf16.gmra.mrb[0].mxu0 %v203
    %v1252 = vpop.f32.mrb[0].mxu0
    %v1253 = vadd.f32 0.0, %v1252
    %v1254 = vpop.f32.mrb[0].mxu0
    %v1255 = vpop.f32.mrb[0].mxu0
    %v1256 = vadd.f32 0.0, %v1255
    %v1257 = vpop.f32.mrb[0].mxu0
    %1258 = vmatprep.mubr.bf16.mxu0 0
    %1259 = vmatmul.mubr.bf16.gmra.mrb[0].mxu0 %v204
    %v1260 = vpop.f32.mrb[0].mxu0
    %v1261 = vadd.f32 0.0, %v1260
    %v1262 = vpop.f32.mrb[0].mxu0
    %v1263 = vpop.f32.mrb[0].mxu0
    %v1264 = vadd.f32 0.0, %v1263
    %v1265 = vpop.f32.mrb[0].mxu0
    %1266 = vmatprep.mubr.bf16.mxu0 0
    %1267 = vmatmul.mubr.bf16.gmra.mrb[0].mxu0 %v205
    %v1268 = vpop.f32.mrb[0].mxu0
    %v1269 = vadd.f32 0.0, %v1268
    %v1270 = vpop.f32.mrb[0].mxu0
    %v1271 = vpop.f32.mrb[0].mxu0
    %v1272 = vadd.f32 0.0, %v1271
    %v1273 = vpop.f32.mrb[0].mxu0
    %1274 = vdwg.mxu0
    %v1275 = vsub.f32 %v1213, %v1061
    %v1276 = vsub.f32 %v1216, %v1062
    %v1277 = vsub.f32 %v1221, %v1063
    %v1278 = vsub.f32 %v1224, %v1064
    %v1279 = vsub.f32 %v1229, %v1065
    %v1280 = vsub.f32 %v1232, %v1066
    %v1281 = vsub.f32 %v1237, %v1067
    %v1282 = vsub.f32 %v1240, %v1068
    %v1283 = vsub.f32 %v1245, %v1061
    %v1284 = vsub.f32 %v1248, %v1062
    %v1285 = vsub.f32 %v1253, %v1063
    %v1286 = vsub.f32 %v1256, %v1064
    %v1287 = vsub.f32 %v1261, %v1065
    %v1288 = vsub.f32 %v1264, %v1066
    %v1289 = vsub.f32 %v1269, %v1067
    %v1290 = vsub.f32 %v1272, %v1068
    %v1291 = vpack.c.bf16 %v1276, %v1275
    %v1292 = vpack.c.bf16 %v1278, %v1277
    %v1293 = vpack.c.bf16 %v1280, %v1279
    %v1294 = vpack.c.bf16 %v1282, %v1281
    %v1295 = vpack.c.bf16 %v1284, %v1283
    %v1296 = vpack.c.bf16 %v1286, %v1285
    %v1297 = vpack.c.bf16 %v1288, %v1287
    %v1298 = vpack.c.bf16 %v1290, %v1289
    %1299 = vmatprep.subr.bf16.mxu0 0
    %1300 = vmatpush1.bf16.msra.mxu0 %v1291
    %1301 = vmatprep.subr.bf16.mxu0 0
    %1302 = vmatpush1.bf16.msra.mxu0 %v1292
    %1303 = vmatprep.subr.bf16.mxu0 0
    %1304 = vmatpush1.bf16.msra.mxu0 %v1293
    %1305 = vmatprep.subr.bf16.mxu0 0
    %1306 = vmatpush1.bf16.msra.mxu0 %v1294
    %1307 = vmatprep.subr.bf16.mxu0 0
    %1308 = vmatpush1.bf16.msra.mxu0 %v1295
    %1309 = vmatprep.subr.bf16.mxu0 0
    %1310 = vmatpush1.bf16.msra.mxu0 %v1296
    %1311 = vmatprep.subr.bf16.mxu0 0
    %1312 = vmatpush1.bf16.msra.mxu0 %v1297
    %1313 = vmatprep.subr.bf16.mxu0 0
    %1314 = vmatpush1.bf16.msra.mxu0 %v1298
    %1315 = vmatprep.subr.bf16.mxu0 0
    %1316 = vmatpush1.bf16.msra.mxu0 0
    %1317 = vmatprep.subr.bf16.mxu0 0
    %1318 = vmatpush1.bf16.msra.mxu0 0
    %1319 = vmatprep.subr.bf16.mxu0 0
    %1320 = vmatpush1.bf16.msra.mxu0 0
    %1321 = vmatprep.subr.bf16.mxu0 0
    %1322 = vmatpush1.bf16.msra.mxu0 0
    %1323 = vmatprep.subr.bf16.mxu0 0
    %1324 = vmatpush1.bf16.msra.mxu0 0
    %1325 = vmatprep.subr.bf16.mxu0 0
    %1326 = vmatpush1.bf16.msra.mxu0 0
    %1327 = vmatprep.subr.bf16.mxu0 0
    %1328 = vmatpush1.bf16.msra.mxu0 0
    %1329 = vmatprep.subr.bf16.mxu0 0
    %1330 = vmatpush1.bf16.msra.mxu0 0
    %1331 = vmatprep.mubr.bf16.mxu0 0
    %1332 = vmatmul.mubr.bf16.gmra.mrb[0].mxu0 %v198
    %v1333 = vpop.f32.mrb[0].mxu0
    %v1334 = vadd.f32 0.0, %v1333
    %v1335 = vpop.f32.mrb[0].mxu0
    %v1336 = vpop.f32.mrb[0].mxu0
    %v1337 = vadd.f32 0.0, %v1336
    %v1338 = vpop.f32.mrb[0].mxu0
    %1339 = vmatprep.mubr.bf16.mxu0 0
    %1340 = vmatmul.mubr.bf16.gmra.mrb[0].mxu0 %v199
    %v1341 = vpop.f32.mrb[0].mxu0
    %v1342 = vadd.f32 0.0, %v1341
    %v1343 = vpop.f32.mrb[0].mxu0
    %v1344 = vpop.f32.mrb[0].mxu0
    %v1345 = vadd.f32 0.0, %v1344
    %v1346 = vpop.f32.mrb[0].mxu0
    %1347 = vmatprep.mubr.bf16.mxu0 0
    %1348 = vmatmul.mubr.bf16.gmra.mrb[0].mxu0 %v200
    %v1349 = vpop.f32.mrb[0].mxu0
    %v1350 = vadd.f32 0.0, %v1349
    %v1351 = vpop.f32.mrb[0].mxu0
    %v1352 = vpop.f32.mrb[0].mxu0
    %v1353 = vadd.f32 0.0, %v1352
    %v1354 = vpop.f32.mrb[0].mxu0
    %1355 = vmatprep.mubr.bf16.mxu0 0
    %1356 = vmatmul.mubr.bf16.gmra.mrb[0].mxu0 %v201
    %v1357 = vpop.f32.mrb[0].mxu0
    %v1358 = vadd.f32 0.0, %v1357
    %v1359 = vpop.f32.mrb[0].mxu0
    %v1360 = vpop.f32.mrb[0].mxu0
    %v1361 = vadd.f32 0.0, %v1360
    %v1362 = vpop.f32.mrb[0].mxu0
    %1363 = vmatprep.mubr.bf16.mxu0 0
    %1364 = vmatmul.mubr.bf16.gmra.mrb[0].mxu0 %v202
    %v1365 = vpop.f32.mrb[0].mxu0
    %v1366 = vadd.f32 0.0, %v1365
    %v1367 = vpop.f32.mrb[0].mxu0
    %v1368 = vpop.f32.mrb[0].mxu0
    %v1369 = vadd.f32 0.0, %v1368
    %v1370 = vpop.f32.mrb[0].mxu0
    %1371 = vmatprep.mubr.bf16.mxu0 0
    %1372 = vmatmul.mubr.bf16.gmra.mrb[0].mxu0 %v203
    %v1373 = vpop.f32.mrb[0].mxu0
    %v1374 = vadd.f32 0.0, %v1373
    %v1375 = vpop.f32.mrb[0].mxu0
    %v1376 = vpop.f32.mrb[0].mxu0
    %v1377 = vadd.f32 0.0, %v1376
    %v1378 = vpop.f32.mrb[0].mxu0
    %1379 = vmatprep.mubr.bf16.mxu0 0
    %1380 = vmatmul.mubr.bf16.gmra.mrb[0].mxu0 %v204
    %v1381 = vpop.f32.mrb[0].mxu0
    %v1382 = vadd.f32 0.0, %v1381
    %v1383 = vpop.f32.mrb[0].mxu0
    %v1384 = vpop.f32.mrb[0].mxu0
    %v1385 = vadd.f32 0.0, %v1384
    %v1386 = vpop.f32.mrb[0].mxu0
    %1387 = vmatprep.mubr.bf16.mxu0 0
    %1388 = vmatmul.mubr.bf16.gmra.mrb[0].mxu0 %v205
    %v1389 = vpop.f32.mrb[0].mxu0
    %v1390 = vadd.f32 0.0, %v1389
    %v1391 = vpop.f32.mrb[0].mxu0
    %v1392 = vpop.f32.mrb[0].mxu0
    %v1393 = vadd.f32 0.0, %v1392
    %v1394 = vpop.f32.mrb[0].mxu0
    %1395 = vdwg.mxu0
    %v1396 = vsub.f32 %v1334, %v1108
    %v1397 = vsub.f32 %v1337, %v1111
    %v1398 = vsub.f32 %v1342, %v1116
    %v1399 = vsub.f32 %v1345, %v1119
    %v1400 = vsub.f32 %v1350, %v1124
    %v1401 = vsub.f32 %v1353, %v1127
    %v1402 = vsub.f32 %v1358, %v1132
    %v1403 = vsub.f32 %v1361, %v1135
    %v1404 = vsub.f32 %v1366, %v1140
    %v1405 = vsub.f32 %v1369, %v1143
    %v1406 = vsub.f32 %v1374, %v1148
    %v1407 = vsub.f32 %v1377, %v1151
    %v1408 = vsub.f32 %v1382, %v1156
    %v1409 = vsub.f32 %v1385, %v1159
    %v1410 = vsub.f32 %v1390, %v1164
    %v1411 = vsub.f32 %v1393, %v1167
    %v1412 = vpack.c.bf16 %v1397, %v1396
    %v1413 = vpack.c.bf16 %v1399, %v1398
    %v1414 = vpack.c.bf16 %v1401, %v1400
    %v1415 = vpack.c.bf16 %v1403, %v1402
    %v1416 = vpack.c.bf16 %v1405, %v1404
    %v1417 = vpack.c.bf16 %v1407, %v1406
    %v1418 = vpack.c.bf16 %v1409, %v1408
    %v1419 = vpack.c.bf16 %v1411, %v1410
    %1420 = vmatprep.subr.bf16.mxu0 0
    %1421 = vmatpush1.bf16.msra.mxu0 %v1412
    %1422 = vmatprep.subr.bf16.mxu0 0
    %1423 = vmatpush1.bf16.msra.mxu0 %v1413
    %1424 = vmatprep.subr.bf16.mxu0 0
    %1425 = vmatpush1.bf16.msra.mxu0 %v1414
    %1426 = vmatprep.subr.bf16.mxu0 0
    %1427 = vmatpush1.bf16.msra.mxu0 %v1415
    %1428 = vmatprep.subr.bf16.mxu0 0
    %1429 = vmatpush1.bf16.msra.mxu0 %v1416
    %1430 = vmatprep.subr.bf16.mxu0 0
    %1431 = vmatpush1.bf16.msra.mxu0 %v1417
    %1432 = vmatprep.subr.bf16.mxu0 0
    %1433 = vmatpush1.bf16.msra.mxu0 %v1418
    %1434 = vmatprep.subr.bf16.mxu0 0
    %1435 = vmatpush1.bf16.msra.mxu0 %v1419
    %1436 = vmatprep.subr.bf16.mxu0 0
    %1437 = vmatpush1.bf16.msra.mxu0 0
    %1438 = vmatprep.subr.bf16.mxu0 0
    %1439 = vmatpush1.bf16.msra.mxu0 0
    %1440 = vmatprep.subr.bf16.mxu0 0
    %1441 = vmatpush1.bf16.msra.mxu0 0
    %1442 = vmatprep.subr.bf16.mxu0 0
    %1443 = vmatpush1.bf16.msra.mxu0 0
    %1444 = vmatprep.subr.bf16.mxu0 0
    %1445 = vmatpush1.bf16.msra.mxu0 0
    %1446 = vmatprep.subr.bf16.mxu0 0
    %1447 = vmatpush1.bf16.msra.mxu0 0
    %1448 = vmatprep.subr.bf16.mxu0 0
    %1449 = vmatpush1.bf16.msra.mxu0 0
    %1450 = vmatprep.subr.bf16.mxu0 0
    %1451 = vmatpush1.bf16.msra.mxu0 0
    %1452 = vmatprep.mubr.bf16.mxu0 0
    %1453 = vmatmul.mubr.bf16.gmra.mrb[0].mxu0 %v198
    %v1454 = vpop.f32.mrb[0].mxu0
    %v1455 = vadd.f32 0.0, %v1454
    %v1456 = vpop.f32.mrb[0].mxu0
    %v1457 = vpop.f32.mrb[0].mxu0
    %v1458 = vadd.f32 0.0, %v1457
    %v1459 = vpop.f32.mrb[0].mxu0
    %1460 = vmatprep.mubr.bf16.mxu0 0
    %1461 = vmatmul.mubr.bf16.gmra.mrb[0].mxu0 %v199
    %v1462 = vpop.f32.mrb[0].mxu0
    %v1463 = vadd.f32 0.0, %v1462
    %v1464 = vpop.f32.mrb[0].mxu0
    %v1465 = vpop.f32.mrb[0].mxu0
    %v1466 = vadd.f32 0.0, %v1465
    %v1467 = vpop.f32.mrb[0].mxu0
    %1468 = vmatprep.mubr.bf16.mxu0 0
    %1469 = vmatmul.mubr.bf16.gmra.mrb[0].mxu0 %v200
    %v1470 = vpop.f32.mrb[0].mxu0
    %v1471 = vadd.f32 0.0, %v1470
    %v1472 = vpop.f32.mrb[0].mxu0
    %v1473 = vpop.f32.mrb[0].mxu0
    %v1474 = vadd.f32 0.0, %v1473
    %v1475 = vpop.f32.mrb[0].mxu0
    %1476 = vmatprep.mubr.bf16.mxu0 0
    %1477 = vmatmul.mubr.bf16.gmra.mrb[0].mxu0 %v201
    %v1478 = vpop.f32.mrb[0].mxu0
    %v1479 = vadd.f32 0.0, %v1478
    %v1480 = vpop.f32.mrb[0].mxu0
    %v1481 = vpop.f32.mrb[0].mxu0
    %v1482 = vadd.f32 0.0, %v1481
    %v1483 = vpop.f32.mrb[0].mxu0
    %1484 = vmatprep.mubr.bf16.mxu0 0
    %1485 = vmatmul.mubr.bf16.gmra.mrb[0].mxu0 %v202
    %v1486 = vpop.f32.mrb[0].mxu0
    %v1487 = vadd.f32 0.0, %v1486
    %v1488 = vpop.f32.mrb[0].mxu0
    %v1489 = vpop.f32.mrb[0].mxu0
    %v1490 = vadd.f32 0.0, %v1489
    %v1491 = vpop.f32.mrb[0].mxu0
    %1492 = vmatprep.mubr.bf16.mxu0 0
    %1493 = vmatmul.mubr.bf16.gmra.mrb[0].mxu0 %v203
    %v1494 = vpop.f32.mrb[0].mxu0
    %v1495 = vadd.f32 0.0, %v1494
    %v1496 = vpop.f32.mrb[0].mxu0
    %v1497 = vpop.f32.mrb[0].mxu0
    %v1498 = vadd.f32 0.0, %v1497
    %v1499 = vpop.f32.mrb[0].mxu0
    %1500 = vmatprep.mubr.bf16.mxu0 0
    %1501 = vmatmul.mubr.bf16.gmra.mrb[0].mxu0 %v204
    %v1502 = vpop.f32.mrb[0].mxu0
    %v1503 = vadd.f32 0.0, %v1502
    %v1504 = vpop.f32.mrb[0].mxu0
    %v1505 = vpop.f32.mrb[0].mxu0
    %v1506 = vadd.f32 0.0, %v1505
    %v1507 = vpop.f32.mrb[0].mxu0
    %1508 = vmatprep.mubr.bf16.mxu0 0
    %1509 = vmatmul.mubr.bf16.gmra.mrb[0].mxu0 %v205
    %v1510 = vpop.f32.mrb[0].mxu0
    %v1511 = vadd.f32 0.0, %v1510
    %v1512 = vpop.f32.mrb[0].mxu0
    %v1513 = vpop.f32.mrb[0].mxu0
    %v1514 = vadd.f32 0.0, %v1513
    %v1515 = vpop.f32.mrb[0].mxu0
    %1516 = vdwg.mxu0
    %v1517 = vsub.f32 %v1455, %v1275
    %v1518 = vsub.f32 %v1458, %v1276
    %v1519 = vsub.f32 %v1463, %v1277
    %v1520 = vsub.f32 %v1466, %v1278
    %v1521 = vsub.f32 %v1471, %v1279
    %v1522 = vsub.f32 %v1474, %v1280
    %v1523 = vsub.f32 %v1479, %v1281
    %v1524 = vsub.f32 %v1482, %v1282
    %v1525 = vsub.f32 %v1487, %v1283
    %v1526 = vsub.f32 %v1490, %v1284
    %v1527 = vsub.f32 %v1495, %v1285
    %v1528 = vsub.f32 %v1498, %v1286
    %v1529 = vsub.f32 %v1503, %v1287
    %v1530 = vsub.f32 %v1506, %v1288
    %v1531 = vsub.f32 %v1511, %v1289
    %v1532 = vsub.f32 %v1514, %v1290
    %v1533 = vld [vmem:[%s6] sm:$0xff]
    %v1534 = vld [vmem:[%s6 + $0x8] sm:$0xff]
    %v1535 = vld [vmem:[%s6 + $0x10] sm:$0xff]
    %v1536 = vld [vmem:[%s6 + $0x18] sm:$0xff]
    %v1537 = vld [vmem:[%s6 + $0x20] sm:$0xff]
    %v1538 = vld [vmem:[%s6 + $0x28] sm:$0xff]
    %v1539 = vld [vmem:[%s6 + $0x30] sm:$0xff]
    %v1540 = vld [vmem:[%s6 + $0x38] sm:$0xff]
    %v1541 = vld [vmem:[%s6 + $0x40] sm:$0xff]
    %v1542 = vld [vmem:[%s6 + $0x48] sm:$0xff]
    %v1543 = vld [vmem:[%s6 + $0x50] sm:$0xff]
    %v1544 = vld [vmem:[%s6 + $0x58] sm:$0xff]
    %v1545 = vld [vmem:[%s6 + $0x60] sm:$0xff]
    %v1546 = vld [vmem:[%s6 + $0x68] sm:$0xff]
    %v1547 = vld [vmem:[%s6 + $0x70] sm:$0xff]
    %v1548 = vld [vmem:[%s6 + $0x78] sm:$0xff]
    %v1549 = vld [vmem:[%s6 + $0x80] sm:$0xff]
    %v1550 = vld [vmem:[%s6 + $0x88] sm:$0xff]
    %v1551 = vld [vmem:[%s6 + $0x90] sm:$0xff]
    %v1552 = vld [vmem:[%s6 + $0x98] sm:$0xff]
    %v1553 = vld [vmem:[%s6 + $0xa0] sm:$0xff]
    %v1554 = vld [vmem:[%s6 + $0xa8] sm:$0xff]
    %v1555 = vld [vmem:[%s6 + $0xb0] sm:$0xff]
    %v1556 = vld [vmem:[%s6 + $0xb8] sm:$0xff]
    %v1557 = vld [vmem:[%s6 + $0xc0] sm:$0xff]
    %v1558 = vld [vmem:[%s6 + $0xc8] sm:$0xff]
    %v1559 = vld [vmem:[%s6 + $0xd0] sm:$0xff]
    %v1560 = vld [vmem:[%s6 + $0xd8] sm:$0xff]
    %v1561 = vld [vmem:[%s6 + $0xe0] sm:$0xff]
    %v1562 = vld [vmem:[%s6 + $0xe8] sm:$0xff]
    %v1563 = vld [vmem:[%s6 + $0xf0] sm:$0xff]
    %v1564 = vld [vmem:[%s6 + $0xf8] sm:$0xff]
    %v1565 = vld [vmem:[%s6 + $0x100] sm:$0xff]
    %v1566 = vld [vmem:[%s6 + $0x108] sm:$0xff]
    %v1567 = vld [vmem:[%s6 + $0x110] sm:$0xff]
    %v1568 = vld [vmem:[%s6 + $0x118] sm:$0xff]
    %v1569 = vld [vmem:[%s6 + $0x120] sm:$0xff]
    %v1570 = vld [vmem:[%s6 + $0x128] sm:$0xff]
    %v1571 = vld [vmem:[%s6 + $0x130] sm:$0xff]
    %v1572 = vld [vmem:[%s6 + $0x138] sm:$0xff]
    %v1573 = vld [vmem:[%s6 + $0x140] sm:$0xff]
    %v1574 = vld [vmem:[%s6 + $0x148] sm:$0xff]
    %v1575 = vld [vmem:[%s6 + $0x150] sm:$0xff]
    %v1576 = vld [vmem:[%s6 + $0x158] sm:$0xff]
    %v1577 = vld [vmem:[%s6 + $0x160] sm:$0xff]
    %v1578 = vld [vmem:[%s6 + $0x168] sm:$0xff]
    %v1579 = vld [vmem:[%s6 + $0x170] sm:$0xff]
    %v1580 = vld [vmem:[%s6 + $0x178] sm:$0xff]
    %v1581 = vld [vmem:[%s6 + $0x180] sm:$0xff]
    %v1582 = vld [vmem:[%s6 + $0x188] sm:$0xff]
    %v1583 = vld [vmem:[%s6 + $0x190] sm:$0xff]
    %v1584 = vld [vmem:[%s6 + $0x198] sm:$0xff]
    %v1585 = vld [vmem:[%s6 + $0x1a0] sm:$0xff]
    %v1586 = vld [vmem:[%s6 + $0x1a8] sm:$0xff]
    %v1587 = vld [vmem:[%s6 + $0x1b0] sm:$0xff]
    %v1588 = vld [vmem:[%s6 + $0x1b8] sm:$0xff]
    %v1589 = vld [vmem:[%s6 + $0x1c0] sm:$0xff]
    %v1590 = vld [vmem:[%s6 + $0x1c8] sm:$0xff]
    %v1591 = vld [vmem:[%s6 + $0x1d0] sm:$0xff]
    %v1592 = vld [vmem:[%s6 + $0x1d8] sm:$0xff]
    %v1593 = vld [vmem:[%s6 + $0x1e0] sm:$0xff]
    %v1594 = vld [vmem:[%s6 + $0x1e8] sm:$0xff]
    %v1595 = vld [vmem:[%s6 + $0x1f0] sm:$0xff]
    %v1596 = vld [vmem:[%s6 + $0x1f8] sm:$0xff]
    %v1597 = vld [vmem:[%s6 + $0x200] sm:$0xff]
    %v1598 = vld [vmem:[%s6 + $0x208] sm:$0xff]
    %v1599 = vld [vmem:[%s6 + $0x210] sm:$0xff]
    %v1600 = vld [vmem:[%s6 + $0x218] sm:$0xff]
    %v1601 = vld [vmem:[%s6 + $0x220] sm:$0xff]
    %v1602 = vld [vmem:[%s6 + $0x228] sm:$0xff]
    %v1603 = vld [vmem:[%s6 + $0x230] sm:$0xff]
    %v1604 = vld [vmem:[%s6 + $0x238] sm:$0xff]
    %v1605 = vld [vmem:[%s6 + $0x240] sm:$0xff]
    %v1606 = vld [vmem:[%s6 + $0x248] sm:$0xff]
    %v1607 = vld [vmem:[%s6 + $0x250] sm:$0xff]
    %v1608 = vld [vmem:[%s6 + $0x258] sm:$0xff]
    %v1609 = vld [vmem:[%s6 + $0x260] sm:$0xff]
    %v1610 = vld [vmem:[%s6 + $0x268] sm:$0xff]
    %v1611 = vld [vmem:[%s6 + $0x270] sm:$0xff]
    %v1612 = vld [vmem:[%s6 + $0x278] sm:$0xff]
    %v1613 = vld [vmem:[%s6 + $0x280] sm:$0xff]
    %v1614 = vld [vmem:[%s6 + $0x288] sm:$0xff]
    %v1615 = vld [vmem:[%s6 + $0x290] sm:$0xff]
    %v1616 = vld [vmem:[%s6 + $0x298] sm:$0xff]
    %v1617 = vld [vmem:[%s6 + $0x2a0] sm:$0xff]
    %v1618 = vld [vmem:[%s6 + $0x2a8] sm:$0xff]
    %v1619 = vld [vmem:[%s6 + $0x2b0] sm:$0xff]
    %v1620 = vld [vmem:[%s6 + $0x2b8] sm:$0xff]
    %v1621 = vld [vmem:[%s6 + $0x2c0] sm:$0xff]
    %v1622 = vld [vmem:[%s6 + $0x2c8] sm:$0xff]
    %v1623 = vld [vmem:[%s6 + $0x2d0] sm:$0xff]
    %v1624 = vld [vmem:[%s6 + $0x2d8] sm:$0xff]
    %v1625 = vld [vmem:[%s6 + $0x2e0] sm:$0xff]
    %v1626 = vld [vmem:[%s6 + $0x2e8] sm:$0xff]
    %v1627 = vld [vmem:[%s6 + $0x2f0] sm:$0xff]
    %v1628 = vld [vmem:[%s6 + $0x2f8] sm:$0xff]
    %v1629 = vld [vmem:[%s6 + $0x300] sm:$0xff]
    %v1630 = vld [vmem:[%s6 + $0x308] sm:$0xff]
    %v1631 = vld [vmem:[%s6 + $0x310] sm:$0xff]
    %v1632 = vld [vmem:[%s6 + $0x318] sm:$0xff]
    %v1633 = vld [vmem:[%s6 + $0x320] sm:$0xff]
    %v1634 = vld [vmem:[%s6 + $0x328] sm:$0xff]
    %v1635 = vld [vmem:[%s6 + $0x330] sm:$0xff]
    %v1636 = vld [vmem:[%s6 + $0x338] sm:$0xff]
    %v1637 = vld [vmem:[%s6 + $0x340] sm:$0xff]
    %v1638 = vld [vmem:[%s6 + $0x348] sm:$0xff]
    %v1639 = vld [vmem:[%s6 + $0x350] sm:$0xff]
    %v1640 = vld [vmem:[%s6 + $0x358] sm:$0xff]
    %v1641 = vld [vmem:[%s6 + $0x360] sm:$0xff]
    %v1642 = vld [vmem:[%s6 + $0x368] sm:$0xff]
    %v1643 = vld [vmem:[%s6 + $0x370] sm:$0xff]
    %v1644 = vld [vmem:[%s6 + $0x378] sm:$0xff]
    %v1645 = vld [vmem:[%s6 + $0x380] sm:$0xff]
    %v1646 = vld [vmem:[%s6 + $0x388] sm:$0xff]
    %v1647 = vld [vmem:[%s6 + $0x390] sm:$0xff]
    %v1648 = vld [vmem:[%s6 + $0x398] sm:$0xff]
    %v1649 = vld [vmem:[%s6 + $0x3a0] sm:$0xff]
    %v1650 = vld [vmem:[%s6 + $0x3a8] sm:$0xff]
    %v1651 = vld [vmem:[%s6 + $0x3b0] sm:$0xff]
    %v1652 = vld [vmem:[%s6 + $0x3b8] sm:$0xff]
    %v1653 = vld [vmem:[%s6 + $0x3c0] sm:$0xff]
    %v1654 = vld [vmem:[%s6 + $0x3c8] sm:$0xff]
    %v1655 = vld [vmem:[%s6 + $0x3d0] sm:$0xff]
    %v1656 = vld [vmem:[%s6 + $0x3d8] sm:$0xff]
    %v1657 = vld [vmem:[%s6 + $0x3e0] sm:$0xff]
    %v1658 = vld [vmem:[%s6 + $0x3e8] sm:$0xff]
    %v1659 = vld [vmem:[%s6 + $0x3f0] sm:$0xff]
    %v1660 = vld [vmem:[%s6 + $0x3f8] sm:$0xff]
    %v1661 = vld [vmem:[%s6 + $0x400] sm:$0xff]
    %v1662 = vld [vmem:[%s6 + $0x408] sm:$0xff]
    %v1663 = vld [vmem:[%s6 + $0x410] sm:$0xff]
    %v1664 = vld [vmem:[%s6 + $0x418] sm:$0xff]
    %v1665 = vld [vmem:[%s6 + $0x420] sm:$0xff]
    %v1666 = vld [vmem:[%s6 + $0x428] sm:$0xff]
    %v1667 = vld [vmem:[%s6 + $0x430] sm:$0xff]
    %v1668 = vld [vmem:[%s6 + $0x438] sm:$0xff]
    %v1669 = vld [vmem:[%s6 + $0x440] sm:$0xff]
    %v1670 = vld [vmem:[%s6 + $0x448] sm:$0xff]
    %v1671 = vld [vmem:[%s6 + $0x450] sm:$0xff]
    %v1672 = vld [vmem:[%s6 + $0x458] sm:$0xff]
    %v1673 = vld [vmem:[%s6 + $0x460] sm:$0xff]
    %v1674 = vld [vmem:[%s6 + $0x468] sm:$0xff]
    %v1675 = vld [vmem:[%s6 + $0x470] sm:$0xff]
    %v1676 = vld [vmem:[%s6 + $0x478] sm:$0xff]
    %v1677 = vld [vmem:[%s6 + $0x480] sm:$0xff]
    %v1678 = vld [vmem:[%s6 + $0x488] sm:$0xff]
    %v1679 = vld [vmem:[%s6 + $0x490] sm:$0xff]
    %v1680 = vld [vmem:[%s6 + $0x498] sm:$0xff]
    %v1681 = vld [vmem:[%s6 + $0x4a0] sm:$0xff]
    %v1682 = vld [vmem:[%s6 + $0x4a8] sm:$0xff]
    %v1683 = vld [vmem:[%s6 + $0x4b0] sm:$0xff]
    %v1684 = vld [vmem:[%s6 + $0x4b8] sm:$0xff]
    %v1685 = vld [vmem:[%s6 + $0x4c0] sm:$0xff]
    %v1686 = vld [vmem:[%s6 + $0x4c8] sm:$0xff]
    %v1687 = vld [vmem:[%s6 + $0x4d0] sm:$0xff]
    %v1688 = vld [vmem:[%s6 + $0x4d8] sm:$0xff]
    %v1689 = vld [vmem:[%s6 + $0x4e0] sm:$0xff]
    %v1690 = vld [vmem:[%s6 + $0x4e8] sm:$0xff]
    %v1691 = vld [vmem:[%s6 + $0x4f0] sm:$0xff]
    %v1692 = vld [vmem:[%s6 + $0x4f8] sm:$0xff]
    %v1693 = vld [vmem:[%s6 + $0x500] sm:$0xff]
    %v1694 = vld [vmem:[%s6 + $0x508] sm:$0xff]
    %v1695 = vld [vmem:[%s6 + $0x510] sm:$0xff]
    %v1696 = vld [vmem:[%s6 + $0x518] sm:$0xff]
    %v1697 = vld [vmem:[%s6 + $0x520] sm:$0xff]
    %v1698 = vld [vmem:[%s6 + $0x528] sm:$0xff]
    %v1699 = vld [vmem:[%s6 + $0x530] sm:$0xff]
    %v1700 = vld [vmem:[%s6 + $0x538] sm:$0xff]
    %v1701 = vld [vmem:[%s6 + $0x540] sm:$0xff]
    %v1702 = vld [vmem:[%s6 + $0x548] sm:$0xff]
    %v1703 = vld [vmem:[%s6 + $0x550] sm:$0xff]
    %v1704 = vld [vmem:[%s6 + $0x558] sm:$0xff]
    %v1705 = vld [vmem:[%s6 + $0x560] sm:$0xff]
    %v1706 = vld [vmem:[%s6 + $0x568] sm:$0xff]
    %v1707 = vld [vmem:[%s6 + $0x570] sm:$0xff]
    %v1708 = vld [vmem:[%s6 + $0x578] sm:$0xff]
    %v1709 = vld [vmem:[%s6 + $0x580] sm:$0xff]
    %v1710 = vld [vmem:[%s6 + $0x588] sm:$0xff]
    %v1711 = vld [vmem:[%s6 + $0x590] sm:$0xff]
    %v1712 = vld [vmem:[%s6 + $0x598] sm:$0xff]
    %v1713 = vld [vmem:[%s6 + $0x5a0] sm:$0xff]
    %v1714 = vld [vmem:[%s6 + $0x5a8] sm:$0xff]
    %v1715 = vld [vmem:[%s6 + $0x5b0] sm:$0xff]
    %v1716 = vld [vmem:[%s6 + $0x5b8] sm:$0xff]
    %v1717 = vld [vmem:[%s6 + $0x5c0] sm:$0xff]
    %v1718 = vld [vmem:[%s6 + $0x5c8] sm:$0xff]
    %v1719 = vld [vmem:[%s6 + $0x5d0] sm:$0xff]
    %v1720 = vld [vmem:[%s6 + $0x5d8] sm:$0xff]
    %v1721 = vld [vmem:[%s6 + $0x5e0] sm:$0xff]
    %v1722 = vld [vmem:[%s6 + $0x5e8] sm:$0xff]
    %v1723 = vld [vmem:[%s6 + $0x5f0] sm:$0xff]
    %v1724 = vld [vmem:[%s6 + $0x5f8] sm:$0xff]
    %v1725 = vld [vmem:[%s6 + $0x600] sm:$0xff]
    %v1726 = vld [vmem:[%s6 + $0x608] sm:$0xff]
    %v1727 = vld [vmem:[%s6 + $0x610] sm:$0xff]
    %v1728 = vld [vmem:[%s6 + $0x618] sm:$0xff]
    %v1729 = vld [vmem:[%s6 + $0x620] sm:$0xff]
    %v1730 = vld [vmem:[%s6 + $0x628] sm:$0xff]
    %v1731 = vld [vmem:[%s6 + $0x630] sm:$0xff]
    %v1732 = vld [vmem:[%s6 + $0x638] sm:$0xff]
    %v1733 = vld [vmem:[%s6 + $0x640] sm:$0xff]
    %v1734 = vld [vmem:[%s6 + $0x648] sm:$0xff]
    %v1735 = vld [vmem:[%s6 + $0x650] sm:$0xff]
    %v1736 = vld [vmem:[%s6 + $0x658] sm:$0xff]
    %v1737 = vld [vmem:[%s6 + $0x660] sm:$0xff]
    %v1738 = vld [vmem:[%s6 + $0x668] sm:$0xff]
    %v1739 = vld [vmem:[%s6 + $0x670] sm:$0xff]
    %v1740 = vld [vmem:[%s6 + $0x678] sm:$0xff]
    %v1741 = vld [vmem:[%s6 + $0x680] sm:$0xff]
    %v1742 = vld [vmem:[%s6 + $0x688] sm:$0xff]
    %v1743 = vld [vmem:[%s6 + $0x690] sm:$0xff]
    %v1744 = vld [vmem:[%s6 + $0x698] sm:$0xff]
    %v1745 = vld [vmem:[%s6 + $0x6a0] sm:$0xff]
    %v1746 = vld [vmem:[%s6 + $0x6a8] sm:$0xff]
    %v1747 = vld [vmem:[%s6 + $0x6b0] sm:$0xff]
    %v1748 = vld [vmem:[%s6 + $0x6b8] sm:$0xff]
    %v1749 = vld [vmem:[%s6 + $0x6c0] sm:$0xff]
    %v1750 = vld [vmem:[%s6 + $0x6c8] sm:$0xff]
    %v1751 = vld [vmem:[%s6 + $0x6d0] sm:$0xff]
    %v1752 = vld [vmem:[%s6 + $0x6d8] sm:$0xff]
    %v1753 = vld [vmem:[%s6 + $0x6e0] sm:$0xff]
    %v1754 = vld [vmem:[%s6 + $0x6e8] sm:$0xff]
    %v1755 = vld [vmem:[%s6 + $0x6f0] sm:$0xff]
    %v1756 = vld [vmem:[%s6 + $0x6f8] sm:$0xff]
    %v1757 = vld [vmem:[%s6 + $0x700] sm:$0xff]
    %v1758 = vld [vmem:[%s6 + $0x708] sm:$0xff]
    %v1759 = vld [vmem:[%s6 + $0x710] sm:$0xff]
    %v1760 = vld [vmem:[%s6 + $0x718] sm:$0xff]
    %v1761 = vld [vmem:[%s6 + $0x720] sm:$0xff]
    %v1762 = vld [vmem:[%s6 + $0x728] sm:$0xff]
    %v1763 = vld [vmem:[%s6 + $0x730] sm:$0xff]
    %v1764 = vld [vmem:[%s6 + $0x738] sm:$0xff]
    %v1765 = vld [vmem:[%s6 + $0x740] sm:$0xff]
    %v1766 = vld [vmem:[%s6 + $0x748] sm:$0xff]
    %v1767 = vld [vmem:[%s6 + $0x750] sm:$0xff]
    %v1768 = vld [vmem:[%s6 + $0x758] sm:$0xff]
    %v1769 = vld [vmem:[%s6 + $0x760] sm:$0xff]
    %v1770 = vld [vmem:[%s6 + $0x768] sm:$0xff]
    %v1771 = vld [vmem:[%s6 + $0x770] sm:$0xff]
    %v1772 = vld [vmem:[%s6 + $0x778] sm:$0xff]
    %v1773 = vld [vmem:[%s6 + $0x780] sm:$0xff]
    %v1774 = vld [vmem:[%s6 + $0x788] sm:$0xff]
    %v1775 = vld [vmem:[%s6 + $0x790] sm:$0xff]
    %v1776 = vld [vmem:[%s6 + $0x798] sm:$0xff]
    %v1777 = vld [vmem:[%s6 + $0x7a0] sm:$0xff]
    %v1778 = vld [vmem:[%s6 + $0x7a8] sm:$0xff]
    %v1779 = vld [vmem:[%s6 + $0x7b0] sm:$0xff]
    %v1780 = vld [vmem:[%s6 + $0x7b8] sm:$0xff]
    %v1781 = vld [vmem:[%s6 + $0x7c0] sm:$0xff]
    %v1782 = vld [vmem:[%s6 + $0x7c8] sm:$0xff]
    %v1783 = vld [vmem:[%s6 + $0x7d0] sm:$0xff]
    %v1784 = vld [vmem:[%s6 + $0x7d8] sm:$0xff]
    %v1785 = vld [vmem:[%s6 + $0x7e0] sm:$0xff]
    %v1786 = vld [vmem:[%s6 + $0x7e8] sm:$0xff]
    %v1787 = vld [vmem:[%s6 + $0x7f0] sm:$0xff]
    %v1788 = vld [vmem:[%s6 + $0x7f8] sm:$0xff]
    %v1789 = vld [vmem:[%s6 + $0x800] sm:$0xff]
    %v1790 = vld [vmem:[%s6 + $0x808] sm:$0xff]
    %v1791 = vld [vmem:[%s6 + $0x810] sm:$0xff]
    %v1792 = vld [vmem:[%s6 + $0x818] sm:$0xff]
    %v1793 = vld [vmem:[%s6 + $0x820] sm:$0xff]
    %v1794 = vld [vmem:[%s6 + $0x828] sm:$0xff]
    %v1795 = vld [vmem:[%s6 + $0x830] sm:$0xff]
    %v1796 = vld [vmem:[%s6 + $0x838] sm:$0xff]
    %v1797 = vld [vmem:[%s6 + $0x840] sm:$0xff]
    %v1798 = vld [vmem:[%s6 + $0x848] sm:$0xff]
    %v1799 = vld [vmem:[%s6 + $0x850] sm:$0xff]
    %v1800 = vld [vmem:[%s6 + $0x858] sm:$0xff]
    %v1801 = vld [vmem:[%s6 + $0x860] sm:$0xff]
    %v1802 = vld [vmem:[%s6 + $0x868] sm:$0xff]
    %v1803 = vld [vmem:[%s6 + $0x870] sm:$0xff]
    %v1804 = vld [vmem:[%s6 + $0x878] sm:$0xff]
    %v1805 = vld [vmem:[%s6 + $0x880] sm:$0xff]
    %v1806 = vld [vmem:[%s6 + $0x888] sm:$0xff]
    %v1807 = vld [vmem:[%s6 + $0x890] sm:$0xff]
    %v1808 = vld [vmem:[%s6 + $0x898] sm:$0xff]
    %v1809 = vld [vmem:[%s6 + $0x8a0] sm:$0xff]
    %v1810 = vld [vmem:[%s6 + $0x8a8] sm:$0xff]
    %v1811 = vld [vmem:[%s6 + $0x8b0] sm:$0xff]
    %v1812 = vld [vmem:[%s6 + $0x8b8] sm:$0xff]
    %v1813 = vld [vmem:[%s6 + $0x8c0] sm:$0xff]
    %v1814 = vld [vmem:[%s6 + $0x8c8] sm:$0xff]
    %v1815 = vld [vmem:[%s6 + $0x8d0] sm:$0xff]
    %v1816 = vld [vmem:[%s6 + $0x8d8] sm:$0xff]
    %v1817 = vld [vmem:[%s6 + $0x8e0] sm:$0xff]
    %v1818 = vld [vmem:[%s6 + $0x8e8] sm:$0xff]
    %v1819 = vld [vmem:[%s6 + $0x8f0] sm:$0xff]
    %v1820 = vld [vmem:[%s6 + $0x8f8] sm:$0xff]
    %v1821 = vld [vmem:[%s6 + $0x900] sm:$0xff]
    %v1822 = vld [vmem:[%s6 + $0x908] sm:$0xff]
    %v1823 = vld [vmem:[%s6 + $0x910] sm:$0xff]
    %v1824 = vld [vmem:[%s6 + $0x918] sm:$0xff]
    %v1825 = vld [vmem:[%s6 + $0x920] sm:$0xff]
    %v1826 = vld [vmem:[%s6 + $0x928] sm:$0xff]
    %v1827 = vld [vmem:[%s6 + $0x930] sm:$0xff]
    %v1828 = vld [vmem:[%s6 + $0x938] sm:$0xff]
    %v1829 = vld [vmem:[%s6 + $0x940] sm:$0xff]
    %v1830 = vld [vmem:[%s6 + $0x948] sm:$0xff]
    %v1831 = vld [vmem:[%s6 + $0x950] sm:$0xff]
    %v1832 = vld [vmem:[%s6 + $0x958] sm:$0xff]
    %v1833 = vld [vmem:[%s6 + $0x960] sm:$0xff]
    %v1834 = vld [vmem:[%s6 + $0x968] sm:$0xff]
    %v1835 = vld [vmem:[%s6 + $0x970] sm:$0xff]
    %v1836 = vld [vmem:[%s6 + $0x978] sm:$0xff]
    %v1837 = vld [vmem:[%s6 + $0x980] sm:$0xff]
    %v1838 = vld [vmem:[%s6 + $0x988] sm:$0xff]
    %v1839 = vld [vmem:[%s6 + $0x990] sm:$0xff]
    %v1840 = vld [vmem:[%s6 + $0x998] sm:$0xff]
    %v1841 = vld [vmem:[%s6 + $0x9a0] sm:$0xff]
    %v1842 = vld [vmem:[%s6 + $0x9a8] sm:$0xff]
    %v1843 = vld [vmem:[%s6 + $0x9b0] sm:$0xff]
    %v1844 = vld [vmem:[%s6 + $0x9b8] sm:$0xff]
    %v1845 = vld [vmem:[%s6 + $0x9c0] sm:$0xff]
    %v1846 = vld [vmem:[%s6 + $0x9c8] sm:$0xff]
    %v1847 = vld [vmem:[%s6 + $0x9d0] sm:$0xff]
    %v1848 = vld [vmem:[%s6 + $0x9d8] sm:$0xff]
    %v1849 = vld [vmem:[%s6 + $0x9e0] sm:$0xff]
    %v1850 = vld [vmem:[%s6 + $0x9e8] sm:$0xff]
    %v1851 = vld [vmem:[%s6 + $0x9f0] sm:$0xff]
    %v1852 = vld [vmem:[%s6 + $0x9f8] sm:$0xff]
    %v1853 = vpack.c.bf16 %v1518, %v1517
    %v1854 = vpack.c.bf16 %v1520, %v1519
    %v1855 = vpack.c.bf16 %v1522, %v1521
    %v1856 = vpack.c.bf16 %v1524, %v1523
    %v1857 = vpack.c.bf16 %v1526, %v1525
    %v1858 = vpack.c.bf16 %v1528, %v1527
    %v1859 = vpack.c.bf16 %v1530, %v1529
    %v1860 = vpack.c.bf16 %v1532, %v1531
    %v1861 = vpack.c.bf16 %v1537, %v1533
    %v1862 = vpack.c.bf16 %v1538, %v1534
    %v1863 = vpack.c.bf16 %v1539, %v1535
    %v1864 = vpack.c.bf16 %v1540, %v1536
    %v1865 = vpack.c.bf16 %v1545, %v1541
    %v1866 = vpack.c.bf16 %v1546, %v1542
    %v1867 = vpack.c.bf16 %v1547, %v1543
    %v1868 = vpack.c.bf16 %v1548, %v1544
    %v1869 = vpack.c.bf16 %v1553, %v1549
    %v1870 = vpack.c.bf16 %v1554, %v1550
    %v1871 = vpack.c.bf16 %v1555, %v1551
    %v1872 = vpack.c.bf16 %v1556, %v1552
    %v1873 = vpack.c.bf16 %v1561, %v1557
    %v1874 = vpack.c.bf16 %v1562, %v1558
    %v1875 = vpack.c.bf16 %v1563, %v1559
    %v1876 = vpack.c.bf16 %v1564, %v1560
    %v1877 = vpack.c.bf16 %v1569, %v1565
    %v1878 = vpack.c.bf16 %v1570, %v1566
    %v1879 = vpack.c.bf16 %v1571, %v1567
    %v1880 = vpack.c.bf16 %v1572, %v1568
    %v1881 = vpack.c.bf16 %v1577, %v1573
    %v1882 = vpack.c.bf16 %v1578, %v1574
    %v1883 = vpack.c.bf16 %v1579, %v1575
    %v1884 = vpack.c.bf16 %v1580, %v1576
    %v1885 = vpack.c.bf16 %v1585, %v1581
    %v1886 = vpack.c.bf16 %v1586, %v1582
    %v1887 = vpack.c.bf16 %v1587, %v1583
    %v1888 = vpack.c.bf16 %v1588, %v1584
    %v1889 = vpack.c.bf16 %v1593, %v1589
    %v1890 = vpack.c.bf16 %v1594, %v1590
    %v1891 = vpack.c.bf16 %v1595, %v1591
    %v1892 = vpack.c.bf16 %v1596, %v1592
    %v1893 = vpack.c.bf16 %v1601, %v1597
    %v1894 = vpack.c.bf16 %v1602, %v1598
    %v1895 = vpack.c.bf16 %v1603, %v1599
    %v1896 = vpack.c.bf16 %v1604, %v1600
    %v1897 = vpack.c.bf16 %v1609, %v1605
    %v1898 = vpack.c.bf16 %v1610, %v1606
    %v1899 = vpack.c.bf16 %v1611, %v1607
    %v1900 = vpack.c.bf16 %v1612, %v1608
    %v1901 = vpack.c.bf16 %v1617, %v1613
    %v1902 = vpack.c.bf16 %v1618, %v1614
    %v1903 = vpack.c.bf16 %v1619, %v1615
    %v1904 = vpack.c.bf16 %v1620, %v1616
    %v1905 = vpack.c.bf16 %v1625, %v1621
    %v1906 = vpack.c.bf16 %v1626, %v1622
    %v1907 = vpack.c.bf16 %v1627, %v1623
    %v1908 = vpack.c.bf16 %v1628, %v1624
    %v1909 = vpack.c.bf16 %v1633, %v1629
    %v1910 = vpack.c.bf16 %v1634, %v1630
    %v1911 = vpack.c.bf16 %v1635, %v1631
    %v1912 = vpack.c.bf16 %v1636, %v1632
    %v1913 = vpack.c.bf16 %v1641, %v1637
    %v1914 = vpack.c.bf16 %v1642, %v1638
    %v1915 = vpack.c.bf16 %v1643, %v1639
    %v1916 = vpack.c.bf16 %v1644, %v1640
    %v1917 = vpack.c.bf16 %v1649, %v1645
    %v1918 = vpack.c.bf16 %v1650, %v1646
    %v1919 = vpack.c.bf16 %v1651, %v1647
    %v1920 = vpack.c.bf16 %v1652, %v1648
    %v1921 = vpack.c.bf16 %v1657, %v1653
    %v1922 = vpack.c.bf16 %v1658, %v1654
    %v1923 = vpack.c.bf16 %v1659, %v1655
    %v1924 = vpack.c.bf16 %v1660, %v1656
    %v1925 = vpack.c.bf16 %v1665, %v1661
    %v1926 = vpack.c.bf16 %v1666, %v1662
    %v1927 = vpack.c.bf16 %v1667, %v1663
    %v1928 = vpack.c.bf16 %v1668, %v1664
    %v1929 = vpack.c.bf16 %v1673, %v1669
    %v1930 = vpack.c.bf16 %v1674, %v1670
    %v1931 = vpack.c.bf16 %v1675, %v1671
    %v1932 = vpack.c.bf16 %v1676, %v1672
    %v1933 = vpack.c.bf16 %v1681, %v1677
    %v1934 = vpack.c.bf16 %v1682, %v1678
    %v1935 = vpack.c.bf16 %v1683, %v1679
    %v1936 = vpack.c.bf16 %v1684, %v1680
    %v1937 = vpack.c.bf16 %v1689, %v1685
    %v1938 = vpack.c.bf16 %v1690, %v1686
    %v1939 = vpack.c.bf16 %v1691, %v1687
    %v1940 = vpack.c.bf16 %v1692, %v1688
    %v1941 = vpack.c.bf16 %v1697, %v1693
    %v1942 = vpack.c.bf16 %v1698, %v1694
    %v1943 = vpack.c.bf16 %v1699, %v1695
    %v1944 = vpack.c.bf16 %v1700, %v1696
    %v1945 = vpack.c.bf16 %v1705, %v1701
    %v1946 = vpack.c.bf16 %v1706, %v1702
    %v1947 = vpack.c.bf16 %v1707, %v1703
    %v1948 = vpack.c.bf16 %v1708, %v1704
    %v1949 = vpack.c.bf16 %v1713, %v1709
    %v1950 = vpack.c.bf16 %v1714, %v1710
    %v1951 = vpack.c.bf16 %v1715, %v1711
    %v1952 = vpack.c.bf16 %v1716, %v1712
    %v1953 = vpack.c.bf16 %v1721, %v1717
    %v1954 = vpack.c.bf16 %v1722, %v1718
    %v1955 = vpack.c.bf16 %v1723, %v1719
    %v1956 = vpack.c.bf16 %v1724, %v1720
    %v1957 = vpack.c.bf16 %v1729, %v1725
    %v1958 = vpack.c.bf16 %v1730, %v1726
    %v1959 = vpack.c.bf16 %v1731, %v1727
    %v1960 = vpack.c.bf16 %v1732, %v1728
    %v1961 = vpack.c.bf16 %v1737, %v1733
    %v1962 = vpack.c.bf16 %v1738, %v1734
    %v1963 = vpack.c.bf16 %v1739, %v1735
    %v1964 = vpack.c.bf16 %v1740, %v1736
    %v1965 = vpack.c.bf16 %v1745, %v1741
    %v1966 = vpack.c.bf16 %v1746, %v1742
    %v1967 = vpack.c.bf16 %v1747, %v1743
    %v1968 = vpack.c.bf16 %v1748, %v1744
    %v1969 = vpack.c.bf16 %v1753, %v1749
    %v1970 = vpack.c.bf16 %v1754, %v1750
    %v1971 = vpack.c.bf16 %v1755, %v1751
    %v1972 = vpack.c.bf16 %v1756, %v1752
    %v1973 = vpack.c.bf16 %v1761, %v1757
    %v1974 = vpack.c.bf16 %v1762, %v1758
    %v1975 = vpack.c.bf16 %v1763, %v1759
    %v1976 = vpack.c.bf16 %v1764, %v1760
    %v1977 = vpack.c.bf16 %v1769, %v1765
    %v1978 = vpack.c.bf16 %v1770, %v1766
    %v1979 = vpack.c.bf16 %v1771, %v1767
    %v1980 = vpack.c.bf16 %v1772, %v1768
    %v1981 = vpack.c.bf16 %v1777, %v1773
    %v1982 = vpack.c.bf16 %v1778, %v1774
    %v1983 = vpack.c.bf16 %v1779, %v1775
    %v1984 = vpack.c.bf16 %v1780, %v1776
    %v1985 = vpack.c.bf16 %v1785, %v1781
    %v1986 = vpack.c.bf16 %v1786, %v1782
    %v1987 = vpack.c.bf16 %v1787, %v1783
    %v1988 = vpack.c.bf16 %v1788, %v1784
    %v1989 = vpack.c.bf16 %v1793, %v1789
    %v1990 = vpack.c.bf16 %v1794, %v1790
    %v1991 = vpack.c.bf16 %v1795, %v1791
    %v1992 = vpack.c.bf16 %v1796, %v1792
    %v1993 = vpack.c.bf16 %v1801, %v1797
    %v1994 = vpack.c.bf16 %v1802, %v1798
    %v1995 = vpack.c.bf16 %v1803, %v1799
    %v1996 = vpack.c.bf16 %v1804, %v1800
    %v1997 = vpack.c.bf16 %v1809, %v1805
    %v1998 = vpack.c.bf16 %v1810, %v1806
    %v1999 = vpack.c.bf16 %v1811, %v1807
    %v2000 = vpack.c.bf16 %v1812, %v1808
    %v2001 = vpack.c.bf16 %v1817, %v1813
    %v2002 = vpack.c.bf16 %v1818, %v1814
    %v2003 = vpack.c.bf16 %v1819, %v1815
    %v2004 = vpack.c.bf16 %v1820, %v1816
    %v2005 = vpack.c.bf16 %v1825, %v1821
    %v2006 = vpack.c.bf16 %v1826, %v1822
    %v2007 = vpack.c.bf16 %v1827, %v1823
    %v2008 = vpack.c.bf16 %v1828, %v1824
    %v2009 = vpack.c.bf16 %v1833, %v1829
    %v2010 = vpack.c.bf16 %v1834, %v1830
    %v2011 = vpack.c.bf16 %v1835, %v1831
    %v2012 = vpack.c.bf16 %v1836, %v1832
    %v2013 = vpack.c.bf16 %v1841, %v1837
    %v2014 = vpack.c.bf16 %v1842, %v1838
    %v2015 = vpack.c.bf16 %v1843, %v1839
    %v2016 = vpack.c.bf16 %v1844, %v1840
    %v2017 = vpack.c.bf16 %v1849, %v1845
    %v2018 = vpack.c.bf16 %v1850, %v1846
    %v2019 = vpack.c.bf16 %v1851, %v1847
    %v2020 = vpack.c.bf16 %v1852, %v1848
    %v2021 = vlaneseq
    %v2022 = vshrl.u32 %v2021, 7
    %v2023 = vadd.s32 %v2022, 8
    %v2024 = vadd.s32 %v2022, 16
    %v2025 = vadd.s32 %v2022, 24
    %v2026 = vadd.s32 %v2022, 32
    %v2027 = vadd.s32 %v2022, 40
    %v2028 = vadd.s32 %v2022, 48
    %v2029 = vadd.s32 %v2022, 56
    %v2030 = vadd.s32 %v2022, 64
    %v2031 = vadd.s32 %v2022, 72
    %v2032 = vadd.s32 %v2022, 80
    %v2033 = vadd.s32 %v2022, 88
    %v2034 = vadd.s32 %v2022, 96
    %v2035 = vadd.s32 %v2022, 104
    %v2036 = vadd.s32 %v2022, 112
    %v2037 = vadd.s32 %v2022, 120
    %v2038 = vadd.s32 %v1036, 128
    %v2039 = vadd.s32 %v1036, 256
    %v2040 = vadd.s32 %v1036, 384
    %vm2041 = vcmp.lt.s32.totalorder %v1036, 256
    %vm2042 = vcmp.lt.s32.totalorder %v2038, 256
    %vm2043 = vcmp.lt.s32.totalorder %v2039, 256
    %vm2044 = vcmp.lt.s32.totalorder %v2040, 256
    %vm2045 = vcmp.lt.s32.totalorder %v2022, 64
    %vm2046 = vcmp.lt.s32.totalorder %v2023, 64
    %vm2047 = vcmp.lt.s32.totalorder %v2024, 64
    %vm2048 = vcmp.lt.s32.totalorder %v2025, 64
    %vm2049 = vcmp.lt.s32.totalorder %v2026, 64
    %vm2050 = vcmp.lt.s32.totalorder %v2027, 64
    %vm2051 = vcmp.lt.s32.totalorder %v2028, 64
    %vm2052 = vcmp.lt.s32.totalorder %v2029, 64
    %vm2053 = vcmp.lt.s32.totalorder %v2030, 64
    %vm2054 = vcmp.lt.s32.totalorder %v2031, 64
    %vm2055 = vcmp.lt.s32.totalorder %v2032, 64
    %vm2056 = vcmp.lt.s32.totalorder %v2033, 64
    %vm2057 = vcmp.lt.s32.totalorder %v2034, 64
    %vm2058 = vcmp.lt.s32.totalorder %v2035, 64
    %vm2059 = vcmp.lt.s32.totalorder %v2036, 64
    %vm2060 = vcmp.lt.s32.totalorder %v2037, 64
    %vm2061 = vmxor %vm2041, %vm2045
    %vm2062 = vmxor %vm2042, %vm2045
    %vm2063 = vmxor %vm2043, %vm2045
    %vm2064 = vmxor %vm2044, %vm2045
    %vm2065 = vmxor %vm2041, %vm2046
    %vm2066 = vmxor %vm2042, %vm2046
    %vm2067 = vmxor %vm2043, %vm2046
    %vm2068 = vmxor %vm2044, %vm2046
    %vm2069 = vmxor %vm2041, %vm2047
    %vm2070 = vmxor %vm2042, %vm2047
    %vm2071 = vmxor %vm2043, %vm2047
    %vm2072 = vmxor %vm2044, %vm2047
    %vm2073 = vmxor %vm2041, %vm2048
    %vm2074 = vmxor %vm2042, %vm2048
    %vm2075 = vmxor %vm2043, %vm2048
    %vm2076 = vmxor %vm2044, %vm2048
    %vm2077 = vmxor %vm2041, %vm2049
    %vm2078 = vmxor %vm2042, %vm2049
    %vm2079 = vmxor %vm2043, %vm2049
    %vm2080 = vmxor %vm2044, %vm2049
    %vm2081 = vmxor %vm2041, %vm2050
    %vm2082 = vmxor %vm2042, %vm2050
    %vm2083 = vmxor %vm2043, %vm2050
    %vm2084 = vmxor %vm2044, %vm2050
    %vm2085 = vmxor %vm2041, %vm2051
    %vm2086 = vmxor %vm2042, %vm2051
    %vm2087 = vmxor %vm2043, %vm2051
    %vm2088 = vmxor %vm2044, %vm2051
    %vm2089 = vmxor %vm2041, %vm2052
    %vm2090 = vmxor %vm2042, %vm2052
    %vm2091 = vmxor %vm2043, %vm2052
    %vm2092 = vmxor %vm2044, %vm2052
    %vm2093 = vmxor %vm2041, %vm2053
    %vm2094 = vmxor %vm2042, %vm2053
    %vm2095 = vmxor %vm2043, %vm2053
    %vm2096 = vmxor %vm2044, %vm2053
    %vm2097 = vmxor %vm2041, %vm2054
    %vm2098 = vmxor %vm2042, %vm2054
    %vm2099 = vmxor %vm2043, %vm2054
    %vm2100 = vmxor %vm2044, %vm2054
    %vm2101 = vmxor %vm2041, %vm2055
    %vm2102 = vmxor %vm2042, %vm2055
    %vm2103 = vmxor %vm2043, %vm2055
    %vm2104 = vmxor %vm2044, %vm2055
    %vm2105 = vmxor %vm2041, %vm2056
    %vm2106 = vmxor %vm2042, %vm2056
    %vm2107 = vmxor %vm2043, %vm2056
    %vm2108 = vmxor %vm2044, %vm2056
    %vm2109 = vmxor %vm2041, %vm2057
    %vm2110 = vmxor %vm2042, %vm2057
    %vm2111 = vmxor %vm2043, %vm2057
    %vm2112 = vmxor %vm2044, %vm2057
    %vm2113 = vmxor %vm2041, %vm2058
    %vm2114 = vmxor %vm2042, %vm2058
    %vm2115 = vmxor %vm2043, %vm2058
    %vm2116 = vmxor %vm2044, %vm2058
    %vm2117 = vmxor %vm2041, %vm2059
    %vm2118 = vmxor %vm2042, %vm2059
    %vm2119 = vmxor %vm2043, %vm2059
    %vm2120 = vmxor %vm2044, %vm2059
    %vm2121 = vmxor %vm2041, %vm2060
    %vm2122 = vmxor %vm2042, %vm2060
    %vm2123 = vmxor %vm2043, %vm2060
    %vm2124 = vmxor %vm2044, %vm2060
    %vm2125 = vmxor %vm2061, 1
    %vm2126 = vmxor %vm2062, 1
    %vm2127 = vmxor %vm2063, 1
    %vm2128 = vmxor %vm2064, 1
    %vm2129 = vmxor %vm2065, 1
    %vm2130 = vmxor %vm2066, 1
    %vm2131 = vmxor %vm2067, 1
    %vm2132 = vmxor %vm2068, 1
    %vm2133 = vmxor %vm2069, 1
    %vm2134 = vmxor %vm2070, 1
    %vm2135 = vmxor %vm2071, 1
    %vm2136 = vmxor %vm2072, 1
    %vm2137 = vmxor %vm2073, 1
    %vm2138 = vmxor %vm2074, 1
    %vm2139 = vmxor %vm2075, 1
    %vm2140 = vmxor %vm2076, 1
    %vm2141 = vmxor %vm2077, 1
    %vm2142 = vmxor %vm2078, 1
    %vm2143 = vmxor %vm2079, 1
    %vm2144 = vmxor %vm2080, 1
    %vm2145 = vmxor %vm2081, 1
    %vm2146 = vmxor %vm2082, 1
    %vm2147 = vmxor %vm2083, 1
    %vm2148 = vmxor %vm2084, 1
    %vm2149 = vmxor %vm2085, 1
    %vm2150 = vmxor %vm2086, 1
    %vm2151 = vmxor %vm2087, 1
    %vm2152 = vmxor %vm2088, 1
    %vm2153 = vmxor %vm2089, 1
    %vm2154 = vmxor %vm2090, 1
    %vm2155 = vmxor %vm2091, 1
    %vm2156 = vmxor %vm2092, 1
    %vm2157 = vmxor %vm2093, 1
    %vm2158 = vmxor %vm2094, 1
    %vm2159 = vmxor %vm2095, 1
    %vm2160 = vmxor %vm2096, 1
    %vm2161 = vmxor %vm2097, 1
    %vm2162 = vmxor %vm2098, 1
    %vm2163 = vmxor %vm2099, 1
    %vm2164 = vmxor %vm2100, 1
    %vm2165 = vmxor %vm2101, 1
    %vm2166 = vmxor %vm2102, 1
    %vm2167 = vmxor %vm2103, 1
    %vm2168 = vmxor %vm2104, 1
    %vm2169 = vmxor %vm2105, 1
    %vm2170 = vmxor %vm2106, 1
    %vm2171 = vmxor %vm2107, 1
    %vm2172 = vmxor %vm2108, 1
    %vm2173 = vmxor %vm2109, 1
    %vm2174 = vmxor %vm2110, 1
    %vm2175 = vmxor %vm2111, 1
    %vm2176 = vmxor %vm2112, 1
    %vm2177 = vmxor %vm2113, 1
    %vm2178 = vmxor %vm2114, 1
    %vm2179 = vmxor %vm2115, 1
    %vm2180 = vmxor %vm2116, 1
    %vm2181 = vmxor %vm2117, 1
    %vm2182 = vmxor %vm2118, 1
    %vm2183 = vmxor %vm2119, 1
    %vm2184 = vmxor %vm2120, 1
    %vm2185 = vmxor %vm2121, 1
    %vm2186 = vmxor %vm2122, 1
    %vm2187 = vmxor %vm2123, 1
    %vm2188 = vmxor %vm2124, 1
    %v2189 = vld [vmem:[%s7] sm:$0xf]
    %v2191 = vlaneseq
    %v2192 = vshrl.u32 %v2191, 7
    %v2193 = vsub.s32 0, %v2192
    %v2194 = vrot.slane %v2189, %v2193
    %v2195 = vlaneseq
    %v2196 = vshrl.u32 %v2195, 7
    %v2197 = vsub.s32 1, %v2196
    %v2198 = vrot.slane %v2189, %v2197
    %v2199 = vlaneseq
    %v2200 = vshrl.u32 %v2199, 7
    %v2201 = vsub.s32 2, %v2200
    %v2202 = vrot.slane %v2189, %v2201
    %v2203 = vlaneseq
    %v2204 = vshrl.u32 %v2203, 7
    %v2205 = vsub.s32 3, %v2204
    %v2206 = vrot.slane %v2189, %v2205
    %2211 = vmatprep.subr.bf16.mxu0 %v1862
    %2212 = vmatpush1.bf16.msra.mxu0 %v1861
    %2213 = vmatprep.subr.bf16.mxu0 %v1866
    %2214 = vmatpush1.bf16.msra.mxu0 %v1865
    %2215 = vmatprep.subr.bf16.mxu0 %v1870
    %2216 = vmatpush1.bf16.msra.mxu0 %v1869
    %2217 = vmatprep.subr.bf16.mxu0 %v1874
    %2218 = vmatpush1.bf16.msra.mxu0 %v1873
    %2219 = vmatprep.subr.bf16.mxu0 %v1878
    %2220 = vmatpush1.bf16.msra.mxu0 %v1877
    %2221 = vmatprep.subr.bf16.mxu0 %v1882
    %2222 = vmatpush1.bf16.msra.mxu0 %v1881
    %2223 = vmatprep.subr.bf16.mxu0 %v1886
    %2224 = vmatpush1.bf16.msra.mxu0 %v1885
    %2225 = vmatprep.subr.bf16.mxu0 %v1890
    %2226 = vmatpush1.bf16.msra.mxu0 %v1889
    %2227 = vmatprep.subr.bf16.mxu0 %v1894
    %2228 = vmatpush1.bf16.msra.mxu0 %v1893
    %2229 = vmatprep.subr.bf16.mxu0 %v1898
    %2230 = vmatpush1.bf16.msra.mxu0 %v1897
    %2231 = vmatprep.subr.bf16.mxu0 %v1902
    %2232 = vmatpush1.bf16.msra.mxu0 %v1901
    %2233 = vmatprep.subr.bf16.mxu0 %v1906
    %2234 = vmatpush1.bf16.msra.mxu0 %v1905
    %2235 = vmatprep.subr.bf16.mxu0 %v1910
    %2236 = vmatpush1.bf16.msra.mxu0 %v1909
    %2237 = vmatprep.subr.bf16.mxu0 %v1914
    %2238 = vmatpush1.bf16.msra.mxu0 %v1913
    %2239 = vmatprep.subr.bf16.mxu0 %v1918
    %2240 = vmatpush1.bf16.msra.mxu0 %v1917
    %2241 = vmatprep.subr.bf16.mxu0 %v1922
    %2242 = vmatpush1.bf16.msra.mxu0 %v1921
    %2243 = vmatprep.mubr.bf16.mxu0 %v1170
    %2244 = vmatmul.mubr.bf16.gmra.mrb[0].mxu0 %v1069
    %v2245 = vpop.f32.mrb[0].mxu0
    %v2246 = vadd.f32 %v2194, %v2245
    %v2247 = vpop.f32.mrb[0].mxu0
    %v2248 = vadd.f32 %v2198, %v2247
    %v2249 = vpop.f32.mrb[0].mxu0
    %v2250 = vadd.f32 %v2194, %v2249
    %v2251 = vpop.f32.mrb[0].mxu0
    %v2252 = vadd.f32 %v2198, %v2251
    %2253 = vmatprep.mubr.bf16.mxu0 %v1171
    %2254 = vmatmul.mubr.bf16.gmra.mrb[0].mxu0 %v1070
    %v2255 = vpop.f32.mrb[0].mxu0
    %v2256 = vadd.f32 %v2194, %v2255
    %v2257 = vpop.f32.mrb[0].mxu0
    %v2258 = vadd.f32 %v2198, %v2257
    %v2259 = vpop.f32.mrb[0].mxu0
    %v2260 = vadd.f32 %v2194, %v2259
    %v2261 = vpop.f32.mrb[0].mxu0
    %v2262 = vadd.f32 %v2198, %v2261
    %2263 = vmatprep.mubr.bf16.mxu0 %v1172
    %2264 = vmatmul.mubr.bf16.gmra.mrb[0].mxu0 %v1071
    %v2265 = vpop.f32.mrb[0].mxu0
    %v2266 = vadd.f32 %v2194, %v2265
    %v2267 = vpop.f32.mrb[0].mxu0
    %v2268 = vadd.f32 %v2198, %v2267
    %v2269 = vpop.f32.mrb[0].mxu0
    %v2270 = vadd.f32 %v2194, %v2269
    %v2271 = vpop.f32.mrb[0].mxu0
    %v2272 = vadd.f32 %v2198, %v2271
    %2273 = vmatprep.mubr.bf16.mxu0 %v1173
    %2274 = vmatmul.mubr.bf16.gmra.mrb[0].mxu0 %v1072
    %v2275 = vpop.f32.mrb[0].mxu0
    %v2276 = vadd.f32 %v2194, %v2275
    %v2277 = vpop.f32.mrb[0].mxu0
    %v2278 = vadd.f32 %v2198, %v2277
    %v2279 = vpop.f32.mrb[0].mxu0
    %v2280 = vadd.f32 %v2194, %v2279
    %v2281 = vpop.f32.mrb[0].mxu0
    %v2282 = vadd.f32 %v2198, %v2281
    %2283 = vmatprep.mubr.bf16.mxu0 %v1174
    %2284 = vmatmul.mubr.bf16.gmra.mrb[0].mxu0 %v1069
    %v2285 = vpop.f32.mrb[0].mxu0
    %v2286 = vadd.f32 %v2194, %v2285
    %v2287 = vpop.f32.mrb[0].mxu0
    %v2288 = vadd.f32 %v2198, %v2287
    %v2289 = vpop.f32.mrb[0].mxu0
    %v2290 = vadd.f32 %v2194, %v2289
    %v2291 = vpop.f32.mrb[0].mxu0
    %v2292 = vadd.f32 %v2198, %v2291
    %2293 = vmatprep.mubr.bf16.mxu0 %v1175
    %2294 = vmatmul.mubr.bf16.gmra.mrb[0].mxu0 %v1070
    %v2295 = vpop.f32.mrb[0].mxu0
    %v2296 = vadd.f32 %v2194, %v2295
    %v2297 = vpop.f32.mrb[0].mxu0
    %v2298 = vadd.f32 %v2198, %v2297
    %v2299 = vpop.f32.mrb[0].mxu0
    %v2300 = vadd.f32 %v2194, %v2299
    %v2301 = vpop.f32.mrb[0].mxu0
    %v2302 = vadd.f32 %v2198, %v2301
    %2303 = vmatprep.mubr.bf16.mxu0 %v1176
    %2304 = vmatmul.mubr.bf16.gmra.mrb[0].mxu0 %v1071
    %v2305 = vpop.f32.mrb[0].mxu0
    %v2306 = vadd.f32 %v2194, %v2305
    %v2307 = vpop.f32.mrb[0].mxu0
    %v2308 = vadd.f32 %v2198, %v2307
    %v2309 = vpop.f32.mrb[0].mxu0
    %v2310 = vadd.f32 %v2194, %v2309
    %v2311 = vpop.f32.mrb[0].mxu0
    %v2312 = vadd.f32 %v2198, %v2311
    %2313 = vmatprep.mubr.bf16.mxu0 %v1177
    %2314 = vmatmul.mubr.bf16.gmra.mrb[0].mxu0 %v1072
    %v2315 = vpop.f32.mrb[0].mxu0
    %v2316 = vadd.f32 %v2194, %v2315
    %v2317 = vpop.f32.mrb[0].mxu0
    %v2318 = vadd.f32 %v2198, %v2317
    %v2319 = vpop.f32.mrb[0].mxu0
    %v2320 = vadd.f32 %v2194, %v2319
    %v2321 = vpop.f32.mrb[0].mxu0
    %v2322 = vadd.f32 %v2198, %v2321
    %2323 = vdwg.mxu0
    %2324 = vmatprep.subr.bf16.mxu0 %v1926
    %2325 = vmatpush1.bf16.msra.mxu0 %v1925
    %2326 = vmatprep.subr.bf16.mxu0 %v1930
    %2327 = vmatpush1.bf16.msra.mxu0 %v1929
    %2328 = vmatprep.subr.bf16.mxu0 %v1934
    %2329 = vmatpush1.bf16.msra.mxu0 %v1933
    %2330 = vmatprep.subr.bf16.mxu0 %v1938
    %2331 = vmatpush1.bf16.msra.mxu0 %v1937
    %2332 = vmatprep.subr.bf16.mxu0 %v1942
    %2333 = vmatpush1.bf16.msra.mxu0 %v1941
    %2334 = vmatprep.subr.bf16.mxu0 %v1946
    %2335 = vmatpush1.bf16.msra.mxu0 %v1945
    %2336 = vmatprep.subr.bf16.mxu0 %v1950
    %2337 = vmatpush1.bf16.msra.mxu0 %v1949
    %2338 = vmatprep.subr.bf16.mxu0 %v1954
    %2339 = vmatpush1.bf16.msra.mxu0 %v1953
    %2340 = vmatprep.subr.bf16.mxu0 %v1958
    %2341 = vmatpush1.bf16.msra.mxu0 %v1957
    %2342 = vmatprep.subr.bf16.mxu0 %v1962
    %2343 = vmatpush1.bf16.msra.mxu0 %v1961
    %2344 = vmatprep.subr.bf16.mxu0 %v1966
    %2345 = vmatpush1.bf16.msra.mxu0 %v1965
    %2346 = vmatprep.subr.bf16.mxu0 %v1970
    %2347 = vmatpush1.bf16.msra.mxu0 %v1969
    %2348 = vmatprep.subr.bf16.mxu0 %v1974
    %2349 = vmatpush1.bf16.msra.mxu0 %v1973
    %2350 = vmatprep.subr.bf16.mxu0 %v1978
    %2351 = vmatpush1.bf16.msra.mxu0 %v1977
    %2352 = vmatprep.subr.bf16.mxu0 %v1982
    %2353 = vmatpush1.bf16.msra.mxu0 %v1981
    %2354 = vmatprep.subr.bf16.mxu0 %v1986
    %2355 = vmatpush1.bf16.msra.mxu0 %v1985
    %2356 = vmatprep.mubr.bf16.mxu0 %v1412
    %2357 = vmatmul.mubr.bf16.gmra.mrb[0].mxu0 %v1291
    %v2358 = vpop.f32.mrb[0].mxu0
    %v2359 = vadd.f32 %v2246, %v2358
    %v2360 = vpop.f32.mrb[0].mxu0
    %v2361 = vadd.f32 %v2248, %v2360
    %v2362 = vpop.f32.mrb[0].mxu0
    %v2363 = vadd.f32 %v2250, %v2362
    %v2364 = vpop.f32.mrb[0].mxu0
    %v2365 = vadd.f32 %v2252, %v2364
    %2366 = vmatprep.mubr.bf16.mxu0 %v1413
    %2367 = vmatmul.mubr.bf16.gmra.mrb[0].mxu0 %v1292
    %v2368 = vpop.f32.mrb[0].mxu0
    %v2369 = vadd.f32 %v2256, %v2368
    %v2370 = vpop.f32.mrb[0].mxu0
    %v2371 = vadd.f32 %v2258, %v2370
    %v2372 = vpop.f32.mrb[0].mxu0
    %v2373 = vadd.f32 %v2260, %v2372
    %v2374 = vpop.f32.mrb[0].mxu0
    %v2375 = vadd.f32 %v2262, %v2374
    %2376 = vmatprep.mubr.bf16.mxu0 %v1414
    %2377 = vmatmul.mubr.bf16.gmra.mrb[0].mxu0 %v1293
    %v2378 = vpop.f32.mrb[0].mxu0
    %v2379 = vadd.f32 %v2266, %v2378
    %v2380 = vpop.f32.mrb[0].mxu0
    %v2381 = vadd.f32 %v2268, %v2380
    %v2382 = vpop.f32.mrb[0].mxu0
    %v2383 = vadd.f32 %v2270, %v2382
    %v2384 = vpop.f32.mrb[0].mxu0
    %v2385 = vadd.f32 %v2272, %v2384
    %2386 = vmatprep.mubr.bf16.mxu0 %v1415
    %2387 = vmatmul.mubr.bf16.gmra.mrb[0].mxu0 %v1294
    %v2388 = vpop.f32.mrb[0].mxu0
    %v2389 = vadd.f32 %v2276, %v2388
    %v2390 = vpop.f32.mrb[0].mxu0
    %v2391 = vadd.f32 %v2278, %v2390
    %v2392 = vpop.f32.mrb[0].mxu0
    %v2393 = vadd.f32 %v2280, %v2392
    %v2394 = vpop.f32.mrb[0].mxu0
    %v2395 = vadd.f32 %v2282, %v2394
    %2396 = vmatprep.mubr.bf16.mxu0 %v1416
    %2397 = vmatmul.mubr.bf16.gmra.mrb[0].mxu0 %v1295
    %v2398 = vpop.f32.mrb[0].mxu0
    %v2399 = vadd.f32 %v2286, %v2398
    %v2400 = vpop.f32.mrb[0].mxu0
    %v2401 = vadd.f32 %v2288, %v2400
    %v2402 = vpop.f32.mrb[0].mxu0
    %v2403 = vadd.f32 %v2290, %v2402
    %v2404 = vpop.f32.mrb[0].mxu0
    %v2405 = vadd.f32 %v2292, %v2404
    %2406 = vmatprep.mubr.bf16.mxu0 %v1417
    %2407 = vmatmul.mubr.bf16.gmra.mrb[0].mxu0 %v1296
    %v2408 = vpop.f32.mrb[0].mxu0
    %v2409 = vadd.f32 %v2296, %v2408
    %v2410 = vpop.f32.mrb[0].mxu0
    %v2411 = vadd.f32 %v2298, %v2410
    %v2412 = vpop.f32.mrb[0].mxu0
    %v2413 = vadd.f32 %v2300, %v2412
    %v2414 = vpop.f32.mrb[0].mxu0
    %v2415 = vadd.f32 %v2302, %v2414
    %2416 = vmatprep.mubr.bf16.mxu0 %v1418
    %2417 = vmatmul.mubr.bf16.gmra.mrb[0].mxu0 %v1297
    %v2418 = vpop.f32.mrb[0].mxu0
    %v2419 = vadd.f32 %v2306, %v2418
    %v2420 = vpop.f32.mrb[0].mxu0
    %v2421 = vadd.f32 %v2308, %v2420
    %v2422 = vpop.f32.mrb[0].mxu0
    %v2423 = vadd.f32 %v2310, %v2422
    %v2424 = vpop.f32.mrb[0].mxu0
    %v2425 = vadd.f32 %v2312, %v2424
    %2426 = vmatprep.mubr.bf16.mxu0 %v1419
    %2427 = vmatmul.mubr.bf16.gmra.mrb[0].mxu0 %v1298
    %v2428 = vpop.f32.mrb[0].mxu0
    %v2429 = vadd.f32 %v2316, %v2428
    %v2430 = vpop.f32.mrb[0].mxu0
    %v2431 = vadd.f32 %v2318, %v2430
    %v2432 = vpop.f32.mrb[0].mxu0
    %v2433 = vadd.f32 %v2320, %v2432
    %v2434 = vpop.f32.mrb[0].mxu0
    %v2435 = vadd.f32 %v2322, %v2434
    %2436 = vdwg.mxu0
    %2437 = vmatprep.subr.bf16.mxu0 %v1990
    %2438 = vmatpush1.bf16.msra.mxu0 %v1989
    %2439 = vmatprep.subr.bf16.mxu0 %v1994
    %2440 = vmatpush1.bf16.msra.mxu0 %v1993
    %2441 = vmatprep.subr.bf16.mxu0 %v1998
    %2442 = vmatpush1.bf16.msra.mxu0 %v1997
    %2443 = vmatprep.subr.bf16.mxu0 %v2002
    %2444 = vmatpush1.bf16.msra.mxu0 %v2001
    %2445 = vmatprep.subr.bf16.mxu0 %v2006
    %2446 = vmatpush1.bf16.msra.mxu0 %v2005
    %2447 = vmatprep.subr.bf16.mxu0 %v2010
    %2448 = vmatpush1.bf16.msra.mxu0 %v2009
    %2449 = vmatprep.subr.bf16.mxu0 %v2014
    %2450 = vmatpush1.bf16.msra.mxu0 %v2013
    %2451 = vmatprep.subr.bf16.mxu0 %v2018
    %2452 = vmatpush1.bf16.msra.mxu0 %v2017
    %2453 = vmatprep.subr.bf16.mxu0 0
    %2454 = vmatpush1.bf16.msra.mxu0 0
    %2455 = vmatprep.subr.bf16.mxu0 0
    %2456 = vmatpush1.bf16.msra.mxu0 0
    %2457 = vmatprep.subr.bf16.mxu0 0
    %2458 = vmatpush1.bf16.msra.mxu0 0
    %2459 = vmatprep.subr.bf16.mxu0 0
    %2460 = vmatpush1.bf16.msra.mxu0 0
    %2461 = vmatprep.subr.bf16.mxu0 0
    %2462 = vmatpush1.bf16.msra.mxu0 0
    %2463 = vmatprep.subr.bf16.mxu0 0
    %2464 = vmatpush1.bf16.msra.mxu0 0
    %2465 = vmatprep.subr.bf16.mxu0 0
    %2466 = vmatpush1.bf16.msra.mxu0 0
    %2467 = vmatprep.subr.bf16.mxu0 0
    %2468 = vmatpush1.bf16.msra.mxu0 0
    %2469 = vmatprep.mubr.bf16.mxu0 0
    %2470 = vmatmul.mubr.bf16.gmra.mrb[0].mxu0 %v1853
    %v2471 = vpop.f32.mrb[0].mxu0
    %v2472 = vadd.f32 %v2359, %v2471
    %v2473 = vpop.f32.mrb[0].mxu0
    %v2474 = vadd.f32 %v2361, %v2473
    %v2475 = vpop.f32.mrb[0].mxu0
    %v2476 = vadd.f32 %v2363, %v2475
    %v2477 = vpop.f32.mrb[0].mxu0
    %v2478 = vadd.f32 %v2365, %v2477
    %2479 = vmatprep.mubr.bf16.mxu0 0
    %2480 = vmatmul.mubr.bf16.gmra.mrb[0].mxu0 %v1854
    %v2481 = vpop.f32.mrb[0].mxu0
    %v2482 = vadd.f32 %v2369, %v2481
    %v2483 = vpop.f32.mrb[0].mxu0
    %v2484 = vadd.f32 %v2371, %v2483
    %v2485 = vpop.f32.mrb[0].mxu0
    %v2486 = vadd.f32 %v2373, %v2485
    %v2487 = vpop.f32.mrb[0].mxu0
    %v2488 = vadd.f32 %v2375, %v2487
    %2489 = vmatprep.mubr.bf16.mxu0 0
    %2490 = vmatmul.mubr.bf16.gmra.mrb[0].mxu0 %v1855
    %v2491 = vpop.f32.mrb[0].mxu0
    %v2492 = vadd.f32 %v2379, %v2491
    %v2493 = vpop.f32.mrb[0].mxu0
    %v2494 = vadd.f32 %v2381, %v2493
    %v2495 = vpop.f32.mrb[0].mxu0
    %v2496 = vadd.f32 %v2383, %v2495
    %v2497 = vpop.f32.mrb[0].mxu0
    %v2498 = vadd.f32 %v2385, %v2497
    %2499 = vmatprep.mubr.bf16.mxu0 0
    %2500 = vmatmul.mubr.bf16.gmra.mrb[0].mxu0 %v1856
    %v2501 = vpop.f32.mrb[0].mxu0
    %v2502 = vadd.f32 %v2389, %v2501
    %v2503 = vpop.f32.mrb[0].mxu0
    %v2504 = vadd.f32 %v2391, %v2503
    %v2505 = vpop.f32.mrb[0].mxu0
    %v2506 = vadd.f32 %v2393, %v2505
    %v2507 = vpop.f32.mrb[0].mxu0
    %v2508 = vadd.f32 %v2395, %v2507
    %2509 = vmatprep.mubr.bf16.mxu0 0
    %2510 = vmatmul.mubr.bf16.gmra.mrb[0].mxu0 %v1857
    %v2511 = vpop.f32.mrb[0].mxu0
    %v2512 = vadd.f32 %v2399, %v2511
    %v2513 = vpop.f32.mrb[0].mxu0
    %v2514 = vadd.f32 %v2401, %v2513
    %v2515 = vpop.f32.mrb[0].mxu0
    %v2516 = vadd.f32 %v2403, %v2515
    %v2517 = vpop.f32.mrb[0].mxu0
    %v2518 = vadd.f32 %v2405, %v2517
    %2519 = vmatprep.mubr.bf16.mxu0 0
    %2520 = vmatmul.mubr.bf16.gmra.mrb[0].mxu0 %v1858
    %v2521 = vpop.f32.mrb[0].mxu0
    %v2522 = vadd.f32 %v2409, %v2521
    %v2523 = vpop.f32.mrb[0].mxu0
    %v2524 = vadd.f32 %v2411, %v2523
    %v2525 = vpop.f32.mrb[0].mxu0
    %v2526 = vadd.f32 %v2413, %v2525
    %v2527 = vpop.f32.mrb[0].mxu0
    %v2528 = vadd.f32 %v2415, %v2527
    %2529 = vmatprep.mubr.bf16.mxu0 0
    %2530 = vmatmul.mubr.bf16.gmra.mrb[0].mxu0 %v1859
    %v2531 = vpop.f32.mrb[0].mxu0
    %v2532 = vadd.f32 %v2419, %v2531
    %v2533 = vpop.f32.mrb[0].mxu0
    %v2534 = vadd.f32 %v2421, %v2533
    %v2535 = vpop.f32.mrb[0].mxu0
    %v2536 = vadd.f32 %v2423, %v2535
    %v2537 = vpop.f32.mrb[0].mxu0
    %v2538 = vadd.f32 %v2425, %v2537
    %2539 = vmatprep.mubr.bf16.mxu0 0
    %2540 = vmatmul.mubr.bf16.gmra.mrb[0].mxu0 %v1860
    %v2541 = vpop.f32.mrb[0].mxu0
    %v2542 = vadd.f32 %v2429, %v2541
    %v2543 = vpop.f32.mrb[0].mxu0
    %v2544 = vadd.f32 %v2431, %v2543
    %v2545 = vpop.f32.mrb[0].mxu0
    %v2546 = vadd.f32 %v2433, %v2545
    %v2547 = vpop.f32.mrb[0].mxu0
    %v2548 = vadd.f32 %v2435, %v2547
    %2549 = vdwg.mxu0
    %2550 = vmatprep.subr.bf16.mxu0 %v1864
    %2551 = vmatpush1.bf16.msra.mxu0 %v1863
    %2552 = vmatprep.subr.bf16.mxu0 %v1868
    %2553 = vmatpush1.bf16.msra.mxu0 %v1867
    %2554 = vmatprep.subr.bf16.mxu0 %v1872
    %2555 = vmatpush1.bf16.msra.mxu0 %v1871
    %2556 = vmatprep.subr.bf16.mxu0 %v1876
    %2557 = vmatpush1.bf16.msra.mxu0 %v1875
    %2558 = vmatprep.subr.bf16.mxu0 %v1880
    %2559 = vmatpush1.bf16.msra.mxu0 %v1879
    %2560 = vmatprep.subr.bf16.mxu0 %v1884
    %2561 = vmatpush1.bf16.msra.mxu0 %v1883
    %2562 = vmatprep.subr.bf16.mxu0 %v1888
    %2563 = vmatpush1.bf16.msra.mxu0 %v1887
    %2564 = vmatprep.subr.bf16.mxu0 %v1892
    %2565 = vmatpush1.bf16.msra.mxu0 %v1891
    %2566 = vmatprep.subr.bf16.mxu0 %v1896
    %2567 = vmatpush1.bf16.msra.mxu0 %v1895
    %2568 = vmatprep.subr.bf16.mxu0 %v1900
    %2569 = vmatpush1.bf16.msra.mxu0 %v1899
    %2570 = vmatprep.subr.bf16.mxu0 %v1904
    %2571 = vmatpush1.bf16.msra.mxu0 %v1903
    %2572 = vmatprep.subr.bf16.mxu0 %v1908
    %2573 = vmatpush1.bf16.msra.mxu0 %v1907
    %2574 = vmatprep.subr.bf16.mxu0 %v1912
    %2575 = vmatpush1.bf16.msra.mxu0 %v1911
    %2576 = vmatprep.subr.bf16.mxu0 %v1916
    %2577 = vmatpush1.bf16.msra.mxu0 %v1915
    %2578 = vmatprep.subr.bf16.mxu0 %v1920
    %2579 = vmatpush1.bf16.msra.mxu0 %v1919
    %2580 = vmatprep.subr.bf16.mxu0 %v1924
    %2581 = vmatpush1.bf16.msra.mxu0 %v1923
    %2582 = vmatprep.mubr.bf16.mxu0 %v1170
    %2583 = vmatmul.mubr.bf16.gmra.mrb[0].mxu0 %v1069
    %v2584 = vpop.f32.mrb[0].mxu0
    %v2585 = vadd.f32 %v2202, %v2584
    %v2586 = vpop.f32.mrb[0].mxu0
    %v2587 = vadd.f32 %v2206, %v2586
    %v2588 = vpop.f32.mrb[0].mxu0
    %v2589 = vadd.f32 %v2202, %v2588
    %v2590 = vpop.f32.mrb[0].mxu0
    %v2591 = vadd.f32 %v2206, %v2590
    %2592 = vmatprep.mubr.bf16.mxu0 %v1171
    %2593 = vmatmul.mubr.bf16.gmra.mrb[0].mxu0 %v1070
    %v2594 = vpop.f32.mrb[0].mxu0
    %v2595 = vadd.f32 %v2202, %v2594
    %v2596 = vpop.f32.mrb[0].mxu0
    %v2597 = vadd.f32 %v2206, %v2596
    %v2598 = vpop.f32.mrb[0].mxu0
    %v2599 = vadd.f32 %v2202, %v2598
    %v2600 = vpop.f32.mrb[0].mxu0
    %v2601 = vadd.f32 %v2206, %v2600
    %2602 = vmatprep.mubr.bf16.mxu0 %v1172
    %2603 = vmatmul.mubr.bf16.gmra.mrb[0].mxu0 %v1071
    %v2604 = vpop.f32.mrb[0].mxu0
    %v2605 = vadd.f32 %v2202, %v2604
    %v2606 = vpop.f32.mrb[0].mxu0
    %v2607 = vadd.f32 %v2206, %v2606
    %v2608 = vpop.f32.mrb[0].mxu0
    %v2609 = vadd.f32 %v2202, %v2608
    %v2610 = vpop.f32.mrb[0].mxu0
    %v2611 = vadd.f32 %v2206, %v2610
    %2612 = vmatprep.mubr.bf16.mxu0 %v1173
    %2613 = vmatmul.mubr.bf16.gmra.mrb[0].mxu0 %v1072
    %v2614 = vpop.f32.mrb[0].mxu0
    %v2615 = vadd.f32 %v2202, %v2614
    %v2616 = vpop.f32.mrb[0].mxu0
    %v2617 = vadd.f32 %v2206, %v2616
    %v2618 = vpop.f32.mrb[0].mxu0
    %v2619 = vadd.f32 %v2202, %v2618
    %v2620 = vpop.f32.mrb[0].mxu0
    %v2621 = vadd.f32 %v2206, %v2620
    %2622 = vmatprep.mubr.bf16.mxu0 %v1174
    %2623 = vmatmul.mubr.bf16.gmra.mrb[0].mxu0 %v1069
    %v2624 = vpop.f32.mrb[0].mxu0
    %v2625 = vadd.f32 %v2202, %v2624
    %v2626 = vpop.f32.mrb[0].mxu0
    %v2627 = vadd.f32 %v2206, %v2626
    %v2628 = vpop.f32.mrb[0].mxu0
    %v2629 = vadd.f32 %v2202, %v2628
    %v2630 = vpop.f32.mrb[0].mxu0
    %v2631 = vadd.f32 %v2206, %v2630
    %2632 = vmatprep.mubr.bf16.mxu0 %v1175
    %2633 = vmatmul.mubr.bf16.gmra.mrb[0].mxu0 %v1070
    %v2634 = vpop.f32.mrb[0].mxu0
    %v2635 = vadd.f32 %v2202, %v2634
    %v2636 = vpop.f32.mrb[0].mxu0
    %v2637 = vadd.f32 %v2206, %v2636
    %v2638 = vpop.f32.mrb[0].mxu0
    %v2639 = vadd.f32 %v2202, %v2638
    %v2640 = vpop.f32.mrb[0].mxu0
    %v2641 = vadd.f32 %v2206, %v2640
    %2642 = vmatprep.mubr.bf16.mxu0 %v1176
    %2643 = vmatmul.mubr.bf16.gmra.mrb[0].mxu0 %v1071
    %v2644 = vpop.f32.mrb[0].mxu0
    %v2645 = vadd.f32 %v2202, %v2644
    %v2646 = vpop.f32.mrb[0].mxu0
    %v2647 = vadd.f32 %v2206, %v2646
    %v2648 = vpop.f32.mrb[0].mxu0
    %v2649 = vadd.f32 %v2202, %v2648
    %v2650 = vpop.f32.mrb[0].mxu0
    %v2651 = vadd.f32 %v2206, %v2650
    %2652 = vmatprep.mubr.bf16.mxu0 %v1177
    %2653 = vmatmul.mubr.bf16.gmra.mrb[0].mxu0 %v1072
    %v2654 = vpop.f32.mrb[0].mxu0
    %v2655 = vadd.f32 %v2202, %v2654
    %v2656 = vpop.f32.mrb[0].mxu0
    %v2657 = vadd.f32 %v2206, %v2656
    %v2658 = vpop.f32.mrb[0].mxu0
    %v2659 = vadd.f32 %v2202, %v2658
    %v2660 = vpop.f32.mrb[0].mxu0
    %v2661 = vadd.f32 %v2206, %v2660
    %2662 = vdwg.mxu0
    %2663 = vmatprep.subr.bf16.mxu0 %v1928
    %2664 = vmatpush1.bf16.msra.mxu0 %v1927
    %2665 = vmatprep.subr.bf16.mxu0 %v1932
    %2666 = vmatpush1.bf16.msra.mxu0 %v1931
    %2667 = vmatprep.subr.bf16.mxu0 %v1936
    %2668 = vmatpush1.bf16.msra.mxu0 %v1935
    %2669 = vmatprep.subr.bf16.mxu0 %v1940
    %2670 = vmatpush1.bf16.msra.mxu0 %v1939
    %2671 = vmatprep.subr.bf16.mxu0 %v1944
    %2672 = vmatpush1.bf16.msra.mxu0 %v1943
    %2673 = vmatprep.subr.bf16.mxu0 %v1948
    %2674 = vmatpush1.bf16.msra.mxu0 %v1947
    %2675 = vmatprep.subr.bf16.mxu0 %v1952
    %2676 = vmatpush1.bf16.msra.mxu0 %v1951
    %2677 = vmatprep.subr.bf16.mxu0 %v1956
    %2678 = vmatpush1.bf16.msra.mxu0 %v1955
    %2679 = vmatprep.subr.bf16.mxu0 %v1960
    %2680 = vmatpush1.bf16.msra.mxu0 %v1959
    %2681 = vmatprep.subr.bf16.mxu0 %v1964
    %2682 = vmatpush1.bf16.msra.mxu0 %v1963
    %2683 = vmatprep.subr.bf16.mxu0 %v1968
    %2684 = vmatpush1.bf16.msra.mxu0 %v1967
    %2685 = vmatprep.subr.bf16.mxu0 %v1972
    %2686 = vmatpush1.bf16.msra.mxu0 %v1971
    %2687 = vmatprep.subr.bf16.mxu0 %v1976
    %2688 = vmatpush1.bf16.msra.mxu0 %v1975
    %2689 = vmatprep.subr.bf16.mxu0 %v1980
    %2690 = vmatpush1.bf16.msra.mxu0 %v1979
    %2691 = vmatprep.subr.bf16.mxu0 %v1984
    %2692 = vmatpush1.bf16.msra.mxu0 %v1983
    %2693 = vmatprep.subr.bf16.mxu0 %v1988
    %2694 = vmatpush1.bf16.msra.mxu0 %v1987
    %2695 = vmatprep.mubr.bf16.mxu0 %v1412
    %2696 = vmatmul.mubr.bf16.gmra.mrb[0].mxu0 %v1291
    %v2697 = vpop.f32.mrb[0].mxu0
    %v2698 = vadd.f32 %v2585, %v2697
    %v2699 = vpop.f32.mrb[0].mxu0
    %v2700 = vadd.f32 %v2587, %v2699
    %v2701 = vpop.f32.mrb[0].mxu0
    %v2702 = vadd.f32 %v2589, %v2701
    %v2703 = vpop.f32.mrb[0].mxu0
    %v2704 = vadd.f32 %v2591, %v2703
    %2705 = vmatprep.mubr.bf16.mxu0 %v1413
    %2706 = vmatmul.mubr.bf16.gmra.mrb[0].mxu0 %v1292
    %v2707 = vpop.f32.mrb[0].mxu0
    %v2708 = vadd.f32 %v2595, %v2707
    %v2709 = vpop.f32.mrb[0].mxu0
    %v2710 = vadd.f32 %v2597, %v2709
    %v2711 = vpop.f32.mrb[0].mxu0
    %v2712 = vadd.f32 %v2599, %v2711
    %v2713 = vpop.f32.mrb[0].mxu0
    %v2714 = vadd.f32 %v2601, %v2713
    %2715 = vmatprep.mubr.bf16.mxu0 %v1414
    %2716 = vmatmul.mubr.bf16.gmra.mrb[0].mxu0 %v1293
    %v2717 = vpop.f32.mrb[0].mxu0
    %v2718 = vadd.f32 %v2605, %v2717
    %v2719 = vpop.f32.mrb[0].mxu0
    %v2720 = vadd.f32 %v2607, %v2719
    %v2721 = vpop.f32.mrb[0].mxu0
    %v2722 = vadd.f32 %v2609, %v2721
    %v2723 = vpop.f32.mrb[0].mxu0
    %v2724 = vadd.f32 %v2611, %v2723
    %2725 = vmatprep.mubr.bf16.mxu0 %v1415
    %2726 = vmatmul.mubr.bf16.gmra.mrb[0].mxu0 %v1294
    %v2727 = vpop.f32.mrb[0].mxu0
    %v2728 = vadd.f32 %v2615, %v2727
    %v2729 = vpop.f32.mrb[0].mxu0
    %v2730 = vadd.f32 %v2617, %v2729
    %v2731 = vpop.f32.mrb[0].mxu0
    %v2732 = vadd.f32 %v2619, %v2731
    %v2733 = vpop.f32.mrb[0].mxu0
    %v2734 = vadd.f32 %v2621, %v2733
    %2735 = vmatprep.mubr.bf16.mxu0 %v1416
    %2736 = vmatmul.mubr.bf16.gmra.mrb[0].mxu0 %v1295
    %v2737 = vpop.f32.mrb[0].mxu0
    %v2738 = vadd.f32 %v2625, %v2737
    %v2739 = vpop.f32.mrb[0].mxu0
    %v2740 = vadd.f32 %v2627, %v2739
    %v2741 = vpop.f32.mrb[0].mxu0
    %v2742 = vadd.f32 %v2629, %v2741
    %v2743 = vpop.f32.mrb[0].mxu0
    %v2744 = vadd.f32 %v2631, %v2743
    %2745 = vmatprep.mubr.bf16.mxu0 %v1417
    %2746 = vmatmul.mubr.bf16.gmra.mrb[0].mxu0 %v1296
    %v2747 = vpop.f32.mrb[0].mxu0
    %v2748 = vadd.f32 %v2635, %v2747
    %v2749 = vpop.f32.mrb[0].mxu0
    %v2750 = vadd.f32 %v2637, %v2749
    %v2751 = vpop.f32.mrb[0].mxu0
    %v2752 = vadd.f32 %v2639, %v2751
    %v2753 = vpop.f32.mrb[0].mxu0
    %v2754 = vadd.f32 %v2641, %v2753
    %2755 = vmatprep.mubr.bf16.mxu0 %v1418
    %2756 = vmatmul.mubr.bf16.gmra.mrb[0].mxu0 %v1297
    %v2757 = vpop.f32.mrb[0].mxu0
    %v2758 = vadd.f32 %v2645, %v2757
    %v2759 = vpop.f32.mrb[0].mxu0
    %v2760 = vadd.f32 %v2647, %v2759
    %v2761 = vpop.f32.mrb[0].mxu0
    %v2762 = vadd.f32 %v2649, %v2761
    %v2763 = vpop.f32.mrb[0].mxu0
    %v2764 = vadd.f32 %v2651, %v2763
    %2765 = vmatprep.mubr.bf16.mxu0 %v1419
    %2766 = vmatmul.mubr.bf16.gmra.mrb[0].mxu0 %v1298
    %v2767 = vpop.f32.mrb[0].mxu0
    %v2768 = vadd.f32 %v2655, %v2767
    %v2769 = vpop.f32.mrb[0].mxu0
    %v2770 = vadd.f32 %v2657, %v2769
    %v2771 = vpop.f32.mrb[0].mxu0
    %v2772 = vadd.f32 %v2659, %v2771
    %v2773 = vpop.f32.mrb[0].mxu0
    %v2774 = vadd.f32 %v2661, %v2773
    %2775 = vdwg.mxu0
    %2776 = vmatprep.subr.bf16.mxu0 %v1992
    %2777 = vmatpush1.bf16.msra.mxu0 %v1991
    %2778 = vmatprep.subr.bf16.mxu0 %v1996
    %2779 = vmatpush1.bf16.msra.mxu0 %v1995
    %2780 = vmatprep.subr.bf16.mxu0 %v2000
    %2781 = vmatpush1.bf16.msra.mxu0 %v1999
    %2782 = vmatprep.subr.bf16.mxu0 %v2004
    %2783 = vmatpush1.bf16.msra.mxu0 %v2003
    %2784 = vmatprep.subr.bf16.mxu0 %v2008
    %2785 = vmatpush1.bf16.msra.mxu0 %v2007
    %2786 = vmatprep.subr.bf16.mxu0 %v2012
    %2787 = vmatpush1.bf16.msra.mxu0 %v2011
    %2788 = vmatprep.subr.bf16.mxu0 %v2016
    %2789 = vmatpush1.bf16.msra.mxu0 %v2015
    %2790 = vmatprep.subr.bf16.mxu0 %v2020
    %2791 = vmatpush1.bf16.msra.mxu0 %v2019
    %2792 = vmatprep.subr.bf16.mxu0 0
    %2793 = vmatpush1.bf16.msra.mxu0 0
    %2794 = vmatprep.subr.bf16.mxu0 0
    %2795 = vmatpush1.bf16.msra.mxu0 0
    %2796 = vmatprep.subr.bf16.mxu0 0
    %2797 = vmatpush1.bf16.msra.mxu0 0
    %2798 = vmatprep.subr.bf16.mxu0 0
    %2799 = vmatpush1.bf16.msra.mxu0 0
    %2800 = vmatprep.subr.bf16.mxu0 0
    %2801 = vmatpush1.bf16.msra.mxu0 0
    %2802 = vmatprep.subr.bf16.mxu0 0
    %2803 = vmatpush1.bf16.msra.mxu0 0
    %2804 = vmatprep.subr.bf16.mxu0 0
    %2805 = vmatpush1.bf16.msra.mxu0 0
    %2806 = vmatprep.subr.bf16.mxu0 0
    %2807 = vmatpush1.bf16.msra.mxu0 0
    %2808 = vmatprep.mubr.bf16.mxu0 0
    %2809 = vmatmul.mubr.bf16.gmra.mrb[0].mxu0 %v1853
    %v2810 = vpop.f32.mrb[0].mxu0
    %v2811 = vadd.f32 %v2698, %v2810
    %v2812 = vpop.f32.mrb[0].mxu0
    %v2813 = vadd.f32 %v2700, %v2812
    %v2814 = vpop.f32.mrb[0].mxu0
    %v2815 = vadd.f32 %v2702, %v2814
    %v2816 = vpop.f32.mrb[0].mxu0
    %v2817 = vadd.f32 %v2704, %v2816
    %2818 = vmatprep.mubr.bf16.mxu0 0
    %2819 = vmatmul.mubr.bf16.gmra.mrb[0].mxu0 %v1854
    %v2820 = vpop.f32.mrb[0].mxu0
    %v2821 = vadd.f32 %v2708, %v2820
    %v2822 = vpop.f32.mrb[0].mxu0
    %v2823 = vadd.f32 %v2710, %v2822
    %v2824 = vpop.f32.mrb[0].mxu0
    %v2825 = vadd.f32 %v2712, %v2824
    %v2826 = vpop.f32.mrb[0].mxu0
    %v2827 = vadd.f32 %v2714, %v2826
    %2828 = vmatprep.mubr.bf16.mxu0 0
    %2829 = vmatmul.mubr.bf16.gmra.mrb[0].mxu0 %v1855
    %v2830 = vpop.f32.mrb[0].mxu0
    %v2831 = vadd.f32 %v2718, %v2830
    %v2832 = vpop.f32.mrb[0].mxu0
    %v2833 = vadd.f32 %v2720, %v2832
    %v2834 = vpop.f32.mrb[0].mxu0
    %v2835 = vadd.f32 %v2722, %v2834
    %v2836 = vpop.f32.mrb[0].mxu0
    %v2837 = vadd.f32 %v2724, %v2836
    %2838 = vmatprep.mubr.bf16.mxu0 0
    %2839 = vmatmul.mubr.bf16.gmra.mrb[0].mxu0 %v1856
    %v2840 = vpop.f32.mrb[0].mxu0
    %v2841 = vadd.f32 %v2728, %v2840
    %v2842 = vpop.f32.mrb[0].mxu0
    %v2843 = vadd.f32 %v2730, %v2842
    %v2844 = vpop.f32.mrb[0].mxu0
    %v2845 = vadd.f32 %v2732, %v2844
    %v2846 = vpop.f32.mrb[0].mxu0
    %v2847 = vadd.f32 %v2734, %v2846
    %2848 = vmatprep.mubr.bf16.mxu0 0
    %2849 = vmatmul.mubr.bf16.gmra.mrb[0].mxu0 %v1857
    %v2850 = vpop.f32.mrb[0].mxu0
    %v2851 = vadd.f32 %v2738, %v2850
    %v2852 = vpop.f32.mrb[0].mxu0
    %v2853 = vadd.f32 %v2740, %v2852
    %v2854 = vpop.f32.mrb[0].mxu0
    %v2855 = vadd.f32 %v2742, %v2854
    %v2856 = vpop.f32.mrb[0].mxu0
    %v2857 = vadd.f32 %v2744, %v2856
    %2858 = vmatprep.mubr.bf16.mxu0 0
    %2859 = vmatmul.mubr.bf16.gmra.mrb[0].mxu0 %v1858
    %v2860 = vpop.f32.mrb[0].mxu0
    %v2861 = vadd.f32 %v2748, %v2860
    %v2862 = vpop.f32.mrb[0].mxu0
    %v2863 = vadd.f32 %v2750, %v2862
    %v2864 = vpop.f32.mrb[0].mxu0
    %v2865 = vadd.f32 %v2752, %v2864
    %v2866 = vpop.f32.mrb[0].mxu0
    %v2867 = vadd.f32 %v2754, %v2866
    %2868 = vmatprep.mubr.bf16.mxu0 0
    %2869 = vmatmul.mubr.bf16.gmra.mrb[0].mxu0 %v1859
    %v2870 = vpop.f32.mrb[0].mxu0
    %v2871 = vadd.f32 %v2758, %v2870
    %v2872 = vpop.f32.mrb[0].mxu0
    %v2873 = vadd.f32 %v2760, %v2872
    %v2874 = vpop.f32.mrb[0].mxu0
    %v2875 = vadd.f32 %v2762, %v2874
    %v2876 = vpop.f32.mrb[0].mxu0
    %v2877 = vadd.f32 %v2764, %v2876
    %2878 = vmatprep.mubr.bf16.mxu0 0
    %2879 = vmatmul.mubr.bf16.gmra.mrb[0].mxu0 %v1860
    %v2880 = vpop.f32.mrb[0].mxu0
    %v2881 = vadd.f32 %v2768, %v2880
    %v2882 = vpop.f32.mrb[0].mxu0
    %v2883 = vadd.f32 %v2770, %v2882
    %v2884 = vpop.f32.mrb[0].mxu0
    %v2885 = vadd.f32 %v2772, %v2884
    %v2886 = vpop.f32.mrb[0].mxu0
    %v2887 = vadd.f32 %v2774, %v2886
    %2888 = vdwg.mxu0
    %v2889 = vmax.f32 %v2472, 0.0
    %v2890 = vmax.f32 %v2474, 0.0
    %v2891 = vmax.f32 %v2811, 0.0
    %v2892 = vmax.f32 %v2813, 0.0
    %v2893 = vmax.f32 %v2476, 0.0
    %v2894 = vmax.f32 %v2478, 0.0
    %v2895 = vmax.f32 %v2815, 0.0
    %v2896 = vmax.f32 %v2817, 0.0
    %v2897 = vmax.f32 %v2482, 0.0
    %v2898 = vmax.f32 %v2484, 0.0
    %v2899 = vmax.f32 %v2821, 0.0
    %v2900 = vmax.f32 %v2823, 0.0
    %v2901 = vmax.f32 %v2486, 0.0
    %v2902 = vmax.f32 %v2488, 0.0
    %v2903 = vmax.f32 %v2825, 0.0
    %v2904 = vmax.f32 %v2827, 0.0
    %v2905 = vmax.f32 %v2492, 0.0
    %v2906 = vmax.f32 %v2494, 0.0
    %v2907 = vmax.f32 %v2831, 0.0
    %v2908 = vmax.f32 %v2833, 0.0
    %v2909 = vmax.f32 %v2496, 0.0
    %v2910 = vmax.f32 %v2498, 0.0
    %v2911 = vmax.f32 %v2835, 0.0
    %v2912 = vmax.f32 %v2837, 0.0
    %v2913 = vmax.f32 %v2502, 0.0
    %v2914 = vmax.f32 %v2504, 0.0
    %v2915 = vmax.f32 %v2841, 0.0
    %v2916 = vmax.f32 %v2843, 0.0
    %v2917 = vmax.f32 %v2506, 0.0
    %v2918 = vmax.f32 %v2508, 0.0
    %v2919 = vmax.f32 %v2845, 0.0
    %v2920 = vmax.f32 %v2847, 0.0
    %v2921 = vmax.f32 %v2512, 0.0
    %v2922 = vmax.f32 %v2514, 0.0
    %v2923 = vmax.f32 %v2851, 0.0
    %v2924 = vmax.f32 %v2853, 0.0
    %v2925 = vmax.f32 %v2516, 0.0
    %v2926 = vmax.f32 %v2518, 0.0
    %v2927 = vmax.f32 %v2855, 0.0
    %v2928 = vmax.f32 %v2857, 0.0
    %v2929 = vmax.f32 %v2522, 0.0
    %v2930 = vmax.f32 %v2524, 0.0
    %v2931 = vmax.f32 %v2861, 0.0
    %v2932 = vmax.f32 %v2863, 0.0
    %v2933 = vmax.f32 %v2526, 0.0
    %v2934 = vmax.f32 %v2528, 0.0
    %v2935 = vmax.f32 %v2865, 0.0
    %v2936 = vmax.f32 %v2867, 0.0
    %v2937 = vmax.f32 %v2532, 0.0
    %v2938 = vmax.f32 %v2534, 0.0
    %v2939 = vmax.f32 %v2871, 0.0
    %v2940 = vmax.f32 %v2873, 0.0
    %v2941 = vmax.f32 %v2536, 0.0
    %v2942 = vmax.f32 %v2538, 0.0
    %v2943 = vmax.f32 %v2875, 0.0
    %v2944 = vmax.f32 %v2877, 0.0
    %v2945 = vmax.f32 %v2542, 0.0
    %v2946 = vmax.f32 %v2544, 0.0
    %v2947 = vmax.f32 %v2881, 0.0
    %v2948 = vmax.f32 %v2883, 0.0
    %v2949 = vmax.f32 %v2546, 0.0
    %v2950 = vmax.f32 %v2548, 0.0
    %v2951 = vmax.f32 %v2885, 0.0
    %v2952 = vmax.f32 %v2887, 0.0
    %v2953 = vsel %vm2125, %v2889, 0.0
    %v2954 = vsel %vm2126, %v2890, 0.0
    %v2955 = vsel %vm2127, %v2891, 0.0
    %v2956 = vsel %vm2128, %v2892, 0.0
    %v2957 = vsel %vm2129, %v2893, 0.0
    %v2958 = vsel %vm2130, %v2894, 0.0
    %v2959 = vsel %vm2131, %v2895, 0.0
    %v2960 = vsel %vm2132, %v2896, 0.0
    %v2961 = vsel %vm2133, %v2897, 0.0
    %v2962 = vsel %vm2134, %v2898, 0.0
    %v2963 = vsel %vm2135, %v2899, 0.0
    %v2964 = vsel %vm2136, %v2900, 0.0
    %v2965 = vsel %vm2137, %v2901, 0.0
    %v2966 = vsel %vm2138, %v2902, 0.0
    %v2967 = vsel %vm2139, %v2903, 0.0
    %v2968 = vsel %vm2140, %v2904, 0.0
    %v2969 = vsel %vm2141, %v2905, 0.0
    %v2970 = vsel %vm2142, %v2906, 0.0
    %v2971 = vsel %vm2143, %v2907, 0.0
    %v2972 = vsel %vm2144, %v2908, 0.0
    %v2973 = vsel %vm2145, %v2909, 0.0
    %v2974 = vsel %vm2146, %v2910, 0.0
    %v2975 = vsel %vm2147, %v2911, 0.0
    %v2976 = vsel %vm2148, %v2912, 0.0
    %v2977 = vsel %vm2149, %v2913, 0.0
    %v2978 = vsel %vm2150, %v2914, 0.0
    %v2979 = vsel %vm2151, %v2915, 0.0
    %v2980 = vsel %vm2152, %v2916, 0.0
    %v2981 = vsel %vm2153, %v2917, 0.0
    %v2982 = vsel %vm2154, %v2918, 0.0
    %v2983 = vsel %vm2155, %v2919, 0.0
    %v2984 = vsel %vm2156, %v2920, 0.0
    %v2985 = vsel %vm2157, %v2921, 0.0
    %v2986 = vsel %vm2158, %v2922, 0.0
    %v2987 = vsel %vm2159, %v2923, 0.0
    %v2988 = vsel %vm2160, %v2924, 0.0
    %v2989 = vsel %vm2161, %v2925, 0.0
    %v2990 = vsel %vm2162, %v2926, 0.0
    %v2991 = vsel %vm2163, %v2927, 0.0
    %v2992 = vsel %vm2164, %v2928, 0.0
    %v2993 = vsel %vm2165, %v2929, 0.0
    %v2994 = vsel %vm2166, %v2930, 0.0
    %v2995 = vsel %vm2167, %v2931, 0.0
    %v2996 = vsel %vm2168, %v2932, 0.0
    %v2997 = vsel %vm2169, %v2933, 0.0
    %v2998 = vsel %vm2170, %v2934, 0.0
    %v2999 = vsel %vm2171, %v2935, 0.0
    %v3000 = vsel %vm2172, %v2936, 0.0
    %v3001 = vsel %vm2173, %v2937, 0.0
    %v3002 = vsel %vm2174, %v2938, 0.0
    %v3003 = vsel %vm2175, %v2939, 0.0
    %v3004 = vsel %vm2176, %v2940, 0.0
    %v3005 = vsel %vm2177, %v2941, 0.0
    %v3006 = vsel %vm2178, %v2942, 0.0
    %v3007 = vsel %vm2179, %v2943, 0.0
    %v3008 = vsel %vm2180, %v2944, 0.0
    %v3009 = vsel %vm2181, %v2945, 0.0
    %v3010 = vsel %vm2182, %v2946, 0.0
    %v3011 = vsel %vm2183, %v2947, 0.0
    %v3012 = vsel %vm2184, %v2948, 0.0
    %v3013 = vsel %vm2185, %v2949, 0.0
    %v3014 = vsel %vm2186, %v2950, 0.0
    %v3015 = vsel %vm2187, %v2951, 0.0
    %v3016 = vsel %vm2188, %v2952, 0.0
    %v3017 = vld [vmem:[%s3] sm:$0x3]
    %v3018 = vpack.c.bf16 %v3017, %v3017
    %v3019 = vpack.c.bf16 %v2957, %v2953
    %v3020 = vpack.c.bf16 %v2958, %v2954
    %v3021 = vpack.c.bf16 %v2959, %v2955
    %v3022 = vpack.c.bf16 %v2960, %v2956
    %v3023 = vpack.c.bf16 %v2965, %v2961
    %v3024 = vpack.c.bf16 %v2966, %v2962
    %v3025 = vpack.c.bf16 %v2967, %v2963
    %v3026 = vpack.c.bf16 %v2968, %v2964
    %v3027 = vpack.c.bf16 %v2973, %v2969
    %v3028 = vpack.c.bf16 %v2974, %v2970
    %v3029 = vpack.c.bf16 %v2975, %v2971
    %v3030 = vpack.c.bf16 %v2976, %v2972
    %v3031 = vpack.c.bf16 %v2981, %v2977
    %v3032 = vpack.c.bf16 %v2982, %v2978
    %v3033 = vpack.c.bf16 %v2983, %v2979
    %v3034 = vpack.c.bf16 %v2984, %v2980
    %v3035 = vpack.c.bf16 %v2989, %v2985
    %v3036 = vpack.c.bf16 %v2990, %v2986
    %v3037 = vpack.c.bf16 %v2991, %v2987
    %v3038 = vpack.c.bf16 %v2992, %v2988
    %v3039 = vpack.c.bf16 %v2997, %v2993
    %v3040 = vpack.c.bf16 %v2998, %v2994
    %v3041 = vpack.c.bf16 %v2999, %v2995
    %v3042 = vpack.c.bf16 %v3000, %v2996
    %v3043 = vpack.c.bf16 %v3005, %v3001
    %v3044 = vpack.c.bf16 %v3006, %v3002
    %v3045 = vpack.c.bf16 %v3007, %v3003
    %v3046 = vpack.c.bf16 %v3008, %v3004
    %v3047 = vpack.c.bf16 %v3013, %v3009
    %v3048 = vpack.c.bf16 %v3014, %v3010
    %v3049 = vpack.c.bf16 %v3015, %v3011
    %v3050 = vpack.c.bf16 %v3016, %v3012
    %3051 = vmatprep.subr.bf16.mxu0 %v3020
    %3052 = vmatpush1.bf16.msra.mxu0 %v3019
    %3053 = vmatprep.subr.bf16.mxu0 %v3024
    %3054 = vmatpush1.bf16.msra.mxu0 %v3023
    %3055 = vmatprep.subr.bf16.mxu0 %v3028
    %3056 = vmatpush1.bf16.msra.mxu0 %v3027
    %3057 = vmatprep.subr.bf16.mxu0 %v3032
    %3058 = vmatpush1.bf16.msra.mxu0 %v3031
    %3059 = vmatprep.subr.bf16.mxu0 %v3036
    %3060 = vmatpush1.bf16.msra.mxu0 %v3035
    %3061 = vmatprep.subr.bf16.mxu0 %v3040
    %3062 = vmatpush1.bf16.msra.mxu0 %v3039
    %3063 = vmatprep.subr.bf16.mxu0 %v3044
    %3064 = vmatpush1.bf16.msra.mxu0 %v3043
    %3065 = vmatprep.subr.bf16.mxu0 %v3048
    %3066 = vmatpush1.bf16.msra.mxu0 %v3047
    %3067 = vmatprep.subr.bf16.mxu0 0
    %3068 = vmatpush1.bf16.msra.mxu0 0
    %3069 = vmatprep.subr.bf16.mxu0 0
    %3070 = vmatpush1.bf16.msra.mxu0 0
    %3071 = vmatprep.subr.bf16.mxu0 0
    %3072 = vmatpush1.bf16.msra.mxu0 0
    %3073 = vmatprep.subr.bf16.mxu0 0
    %3074 = vmatpush1.bf16.msra.mxu0 0
    %3075 = vmatprep.subr.bf16.mxu0 0
    %3076 = vmatpush1.bf16.msra.mxu0 0
    %3077 = vmatprep.subr.bf16.mxu0 0
    %3078 = vmatpush1.bf16.msra.mxu0 0
    %3079 = vmatprep.subr.bf16.mxu0 0
    %3080 = vmatpush1.bf16.msra.mxu0 0
    %3081 = vmatprep.subr.bf16.mxu0 0
    %3082 = vmatpush1.bf16.msra.mxu0 0
    %3083 = vmatprep.mubr.bf16.mxu0 0
    %3084 = vmatmul.mubr.bf16.gmra.mrb[0].mxu0 %v3018
    %v3085 = vpop.f32.mrb[0].mxu0
    %v3086 = vadd.f32 0.0, %v3085
    %v3087 = vpop.f32.mrb[0].mxu0
    %v3088 = vadd.f32 0.0, %v3087
    %v3089 = vpop.f32.mrb[0].mxu0
    %v3090 = vpop.f32.mrb[0].mxu0
    %3091 = vdwg.mxu0
    %3092 = vmatprep.subr.bf16.mxu0 %v3022
    %3093 = vmatpush1.bf16.msra.mxu0 %v3021
    %3094 = vmatprep.subr.bf16.mxu0 %v3026
    %3095 = vmatpush1.bf16.msra.mxu0 %v3025
    %3096 = vmatprep.subr.bf16.mxu0 %v3030
    %3097 = vmatpush1.bf16.msra.mxu0 %v3029
    %3098 = vmatprep.subr.bf16.mxu0 %v3034
    %3099 = vmatpush1.bf16.msra.mxu0 %v3033
    %3100 = vmatprep.subr.bf16.mxu0 %v3038
    %3101 = vmatpush1.bf16.msra.mxu0 %v3037
    %3102 = vmatprep.subr.bf16.mxu0 %v3042
    %3103 = vmatpush1.bf16.msra.mxu0 %v3041
    %3104 = vmatprep.subr.bf16.mxu0 %v3046
    %3105 = vmatpush1.bf16.msra.mxu0 %v3045
    %3106 = vmatprep.subr.bf16.mxu0 %v3050
    %3107 = vmatpush1.bf16.msra.mxu0 %v3049
    %3108 = vmatprep.subr.bf16.mxu0 0
    %3109 = vmatpush1.bf16.msra.mxu0 0
    %3110 = vmatprep.subr.bf16.mxu0 0
    %3111 = vmatpush1.bf16.msra.mxu0 0
    %3112 = vmatprep.subr.bf16.mxu0 0
    %3113 = vmatpush1.bf16.msra.mxu0 0
    %3114 = vmatprep.subr.bf16.mxu0 0
    %3115 = vmatpush1.bf16.msra.mxu0 0
    %3116 = vmatprep.subr.bf16.mxu0 0
    %3117 = vmatpush1.bf16.msra.mxu0 0
    %3118 = vmatprep.subr.bf16.mxu0 0
    %3119 = vmatpush1.bf16.msra.mxu0 0
    %3120 = vmatprep.subr.bf16.mxu0 0
    %3121 = vmatpush1.bf16.msra.mxu0 0
    %3122 = vmatprep.subr.bf16.mxu0 0
    %3123 = vmatpush1.bf16.msra.mxu0 0
    %3124 = vmatprep.mubr.bf16.mxu0 0
    %3125 = vmatmul.mubr.bf16.gmra.mrb[0].mxu0 %v3018
    %v3126 = vpop.f32.mrb[0].mxu0
    %v3127 = vadd.f32 0.0, %v3126
    %v3128 = vpop.f32.mrb[0].mxu0
    %v3129 = vadd.f32 0.0, %v3128
    %v3130 = vpop.f32.mrb[0].mxu0
    %v3131 = vpop.f32.mrb[0].mxu0
    %3132 = vdwg.mxu0
    %v3133 = vld [vmem:[%s8] sm:$0xff]
    %v3134 = vld [vmem:[%s8 + $0x8] sm:$0xff]
    %v3135 = vld [vmem:[%s8 + $0x10] sm:$0xff]
    %v3136 = vld [vmem:[%s8 + $0x18] sm:$0xff]
    %v3137 = vld [vmem:[%s8 + $0x20] sm:$0xff]
    %v3138 = vld [vmem:[%s8 + $0x28] sm:$0xff]
    %v3139 = vld [vmem:[%s8 + $0x30] sm:$0xff]
    %v3140 = vld [vmem:[%s8 + $0x38] sm:$0xff]
    %v3141 = vld [vmem:[%s8 + $0x40] sm:$0xff]
    %v3142 = vld [vmem:[%s8 + $0x48] sm:$0xff]
    %v3143 = vld [vmem:[%s8 + $0x50] sm:$0xff]
    %v3144 = vld [vmem:[%s8 + $0x58] sm:$0xff]
    %v3145 = vld [vmem:[%s8 + $0x60] sm:$0xff]
    %v3146 = vld [vmem:[%s8 + $0x68] sm:$0xff]
    %v3147 = vld [vmem:[%s8 + $0x70] sm:$0xff]
    %v3148 = vld [vmem:[%s8 + $0x78] sm:$0xff]
    %v3149 = vld [vmem:[%s8 + $0x80] sm:$0xff]
    %v3150 = vld [vmem:[%s8 + $0x88] sm:$0xff]
    %v3151 = vld [vmem:[%s8 + $0x90] sm:$0xff]
    %v3152 = vld [vmem:[%s8 + $0x98] sm:$0xff]
    %v3153 = vld [vmem:[%s8 + $0xa0] sm:$0xff]
    %v3154 = vld [vmem:[%s8 + $0xa8] sm:$0xff]
    %v3155 = vld [vmem:[%s8 + $0xb0] sm:$0xff]
    %v3156 = vld [vmem:[%s8 + $0xb8] sm:$0xff]
    %v3157 = vld [vmem:[%s8 + $0xc0] sm:$0xff]
    %v3158 = vld [vmem:[%s8 + $0xc8] sm:$0xff]
    %v3159 = vld [vmem:[%s8 + $0xd0] sm:$0xff]
    %v3160 = vld [vmem:[%s8 + $0xd8] sm:$0xff]
    %v3161 = vld [vmem:[%s8 + $0xe0] sm:$0xff]
    %v3162 = vld [vmem:[%s8 + $0xe8] sm:$0xff]
    %v3163 = vld [vmem:[%s8 + $0xf0] sm:$0xff]
    %v3164 = vld [vmem:[%s8 + $0xf8] sm:$0xff]
    %v3165 = vld [vmem:[%s8 + $0x100] sm:$0xff]
    %v3166 = vld [vmem:[%s8 + $0x108] sm:$0xff]
    %v3167 = vld [vmem:[%s8 + $0x110] sm:$0xff]
    %v3168 = vld [vmem:[%s8 + $0x118] sm:$0xff]
    %v3169 = vld [vmem:[%s8 + $0x120] sm:$0xff]
    %v3170 = vld [vmem:[%s8 + $0x128] sm:$0xff]
    %v3171 = vld [vmem:[%s8 + $0x130] sm:$0xff]
    %v3172 = vld [vmem:[%s8 + $0x138] sm:$0xff]
    %v3173 = vld [vmem:[%s8 + $0x140] sm:$0xff]
    %v3174 = vld [vmem:[%s8 + $0x148] sm:$0xff]
    %v3175 = vld [vmem:[%s8 + $0x150] sm:$0xff]
    %v3176 = vld [vmem:[%s8 + $0x158] sm:$0xff]
    %v3177 = vld [vmem:[%s8 + $0x160] sm:$0xff]
    %v3178 = vld [vmem:[%s8 + $0x168] sm:$0xff]
    %v3179 = vld [vmem:[%s8 + $0x170] sm:$0xff]
    %v3180 = vld [vmem:[%s8 + $0x178] sm:$0xff]
    %v3181 = vld [vmem:[%s8 + $0x180] sm:$0xff]
    %v3182 = vld [vmem:[%s8 + $0x188] sm:$0xff]
    %v3183 = vld [vmem:[%s8 + $0x190] sm:$0xff]
    %v3184 = vld [vmem:[%s8 + $0x198] sm:$0xff]
    %v3185 = vld [vmem:[%s8 + $0x1a0] sm:$0xff]
    %v3186 = vld [vmem:[%s8 + $0x1a8] sm:$0xff]
    %v3187 = vld [vmem:[%s8 + $0x1b0] sm:$0xff]
    %v3188 = vld [vmem:[%s8 + $0x1b8] sm:$0xff]
    %v3189 = vld [vmem:[%s8 + $0x1c0] sm:$0xff]
    %v3190 = vld [vmem:[%s8 + $0x1c8] sm:$0xff]
    %v3191 = vld [vmem:[%s8 + $0x1d0] sm:$0xff]
    %v3192 = vld [vmem:[%s8 + $0x1d8] sm:$0xff]
    %v3193 = vld [vmem:[%s8 + $0x1e0] sm:$0xff]
    %v3194 = vld [vmem:[%s8 + $0x1e8] sm:$0xff]
    %v3195 = vld [vmem:[%s8 + $0x1f0] sm:$0xff]
    %v3196 = vld [vmem:[%s8 + $0x1f8] sm:$0xff]
    %v3197 = vpack.c.bf16 %v3086, %v3086
    %v3198 = vpack.c.bf16 %v3088, %v3088
    %v3199 = vpack.c.bf16 %v3127, %v3127
    %v3200 = vpack.c.bf16 %v3129, %v3129
    %v3201 = vpack.c.bf16 %v3134, %v3133
    %v3202 = vpack.c.bf16 %v3136, %v3135
    %v3203 = vpack.c.bf16 %v3138, %v3137
    %v3204 = vpack.c.bf16 %v3140, %v3139
    %v3205 = vpack.c.bf16 %v3142, %v3141
    %v3206 = vpack.c.bf16 %v3144, %v3143
    %v3207 = vpack.c.bf16 %v3146, %v3145
    %v3208 = vpack.c.bf16 %v3148, %v3147
    %v3209 = vpack.c.bf16 %v3150, %v3149
    %v3210 = vpack.c.bf16 %v3152, %v3151
    %v3211 = vpack.c.bf16 %v3154, %v3153
    %v3212 = vpack.c.bf16 %v3156, %v3155
    %v3213 = vpack.c.bf16 %v3158, %v3157
    %v3214 = vpack.c.bf16 %v3160, %v3159
    %v3215 = vpack.c.bf16 %v3162, %v3161
    %v3216 = vpack.c.bf16 %v3164, %v3163
    %v3217 = vpack.c.bf16 %v3166, %v3165
    %v3218 = vpack.c.bf16 %v3168, %v3167
    %v3219 = vpack.c.bf16 %v3170, %v3169
    %v3220 = vpack.c.bf16 %v3172, %v3171
    %v3221 = vpack.c.bf16 %v3174, %v3173
    %v3222 = vpack.c.bf16 %v3176, %v3175
    %v3223 = vpack.c.bf16 %v3178, %v3177
    %v3224 = vpack.c.bf16 %v3180, %v3179
    %v3225 = vpack.c.bf16 %v3182, %v3181
    %v3226 = vpack.c.bf16 %v3184, %v3183
    %v3227 = vpack.c.bf16 %v3186, %v3185
    %v3228 = vpack.c.bf16 %v3188, %v3187
    %v3229 = vpack.c.bf16 %v3190, %v3189
    %v3230 = vpack.c.bf16 %v3192, %v3191
    %v3231 = vpack.c.bf16 %v3194, %v3193
    %v3232 = vpack.c.bf16 %v3196, %v3195
    %v3233 = vld [vmem:[%s9] sm:$0x1]
    %v3235 = vlaneseq
    %v3236 = vshrl.u32 %v3235, 7
    %v3237 = vsub.s32 0, %v3236
    %v3238 = vrot.slane %v3233, %v3237
    %3240 = vmatprep.subr.bf16.mxu0 0
    %3241 = vmatpush1.bf16.msra.mxu0 %v3201
    %3242 = vmatprep.subr.bf16.mxu0 0
    %3243 = vmatpush1.bf16.msra.mxu0 %v3202
    %3244 = vmatprep.subr.bf16.mxu0 0
    %3245 = vmatpush1.bf16.msra.mxu0 %v3203
    %3246 = vmatprep.subr.bf16.mxu0 0
    %3247 = vmatpush1.bf16.msra.mxu0 %v3204
    %3248 = vmatprep.subr.bf16.mxu0 0
    %3249 = vmatpush1.bf16.msra.mxu0 %v3205
    %3250 = vmatprep.subr.bf16.mxu0 0
    %3251 = vmatpush1.bf16.msra.mxu0 %v3206
    %3252 = vmatprep.subr.bf16.mxu0 0
    %3253 = vmatpush1.bf16.msra.mxu0 %v3207
    %3254 = vmatprep.subr.bf16.mxu0 0
    %3255 = vmatpush1.bf16.msra.mxu0 %v3208
    %3256 = vmatprep.subr.bf16.mxu0 0
    %3257 = vmatpush1.bf16.msra.mxu0 %v3209
    %3258 = vmatprep.subr.bf16.mxu0 0
    %3259 = vmatpush1.bf16.msra.mxu0 %v3210
    %3260 = vmatprep.subr.bf16.mxu0 0
    %3261 = vmatpush1.bf16.msra.mxu0 %v3211
    %3262 = vmatprep.subr.bf16.mxu0 0
    %3263 = vmatpush1.bf16.msra.mxu0 %v3212
    %3264 = vmatprep.subr.bf16.mxu0 0
    %3265 = vmatpush1.bf16.msra.mxu0 %v3213
    %3266 = vmatprep.subr.bf16.mxu0 0
    %3267 = vmatpush1.bf16.msra.mxu0 %v3214
    %3268 = vmatprep.subr.bf16.mxu0 0
    %3269 = vmatpush1.bf16.msra.mxu0 %v3215
    %3270 = vmatprep.subr.bf16.mxu0 0
    %3271 = vmatpush1.bf16.msra.mxu0 %v3216
    %3272 = vmatprep.mubr.bf16.mxu0 %v3198
    %3273 = vmatmul.mubr.bf16.gmra.mrb[0].mxu0 %v3197
    %v3274 = vpop.f32.mrb[0].mxu0
    %v3275 = vadd.f32 %v3238, %v3274
    %v3276 = vpop.f32.mrb[0].mxu0
    %v3277 = vpop.f32.mrb[0].mxu0
    %v3278 = vpop.f32.mrb[0].mxu0
    %3279 = vdwg.mxu0
    %3280 = vmatprep.subr.bf16.mxu0 0
    %3281 = vmatpush1.bf16.msra.mxu0 %v3217
    %3282 = vmatprep.subr.bf16.mxu0 0
    %3283 = vmatpush1.bf16.msra.mxu0 %v3218
    %3284 = vmatprep.subr.bf16.mxu0 0
    %3285 = vmatpush1.bf16.msra.mxu0 %v3219
    %3286 = vmatprep.subr.bf16.mxu0 0
    %3287 = vmatpush1.bf16.msra.mxu0 %v3220
    %3288 = vmatprep.subr.bf16.mxu0 0
    %3289 = vmatpush1.bf16.msra.mxu0 %v3221
    %3290 = vmatprep.subr.bf16.mxu0 0
    %3291 = vmatpush1.bf16.msra.mxu0 %v3222
    %3292 = vmatprep.subr.bf16.mxu0 0
    %3293 = vmatpush1.bf16.msra.mxu0 %v3223
    %3294 = vmatprep.subr.bf16.mxu0 0
    %3295 = vmatpush1.bf16.msra.mxu0 %v3224
    %3296 = vmatprep.subr.bf16.mxu0 0
    %3297 = vmatpush1.bf16.msra.mxu0 %v3225
    %3298 = vmatprep.subr.bf16.mxu0 0
    %3299 = vmatpush1.bf16.msra.mxu0 %v3226
    %3300 = vmatprep.subr.bf16.mxu0 0
    %3301 = vmatpush1.bf16.msra.mxu0 %v3227
    %3302 = vmatprep.subr.bf16.mxu0 0
    %3303 = vmatpush1.bf16.msra.mxu0 %v3228
    %3304 = vmatprep.subr.bf16.mxu0 0
    %3305 = vmatpush1.bf16.msra.mxu0 %v3229
    %3306 = vmatprep.subr.bf16.mxu0 0
    %3307 = vmatpush1.bf16.msra.mxu0 %v3230
    %3308 = vmatprep.subr.bf16.mxu0 0
    %3309 = vmatpush1.bf16.msra.mxu0 %v3231
    %3310 = vmatprep.subr.bf16.mxu0 0
    %3311 = vmatpush1.bf16.msra.mxu0 %v3232
    %3312 = vmatprep.mubr.bf16.mxu0 %v3200
    %3313 = vmatmul.mubr.bf16.gmra.mrb[0].mxu0 %v3199
    %v3314 = vpop.f32.mrb[0].mxu0
    %v3315 = vadd.f32 %v3275, %v3314
    %v3316 = vpop.f32.mrb[0].mxu0
    %v3317 = vpop.f32.mrb[0].mxu0
    %v3318 = vpop.f32.mrb[0].mxu0
    %3319 = vdwg.mxu0
    %vm3320 = vcmask 25600
    %v3321 = vsel %vm3320, %v3315, -inf
    %3322 = vmax.xlane.f32.xlu0 %v3321
    %v3323 = vpop.xlane.xlu0 %3322
    %v3324 = vsub.f32 %v3315, %v3323
    %v3325 = vmul.f32 %v3324, 1.442695
    %v3326 = vpow.pop %v3325
    %v3327 = vsel %vm3320, %v3326, 0.0
    %3328 = vadd.xlane.f32.xlu0 %v3327
    %v3329 = vpop.xlane.xlu0 %3328
    %v3330 = vlog2.pop %v3329
    %v3331 = vmul.f32 %v3330, 0.6931472
    %v3332 = vsub.f32 %v3324, %v3331
    %3333 = vst.msk [vmem:[#allocation2] sm:$0x3] %vm3320, %v3332
    // Predicated region
    $region42: #{multi_adj_net_forward.1} parent=1 // pred_check
      _
    $region43: #{multi_adj_net_forward.1} parent=1 // pred_check_branch
      %3335 = sbr.rel (0) target = $region45
    $region44: #{multi_adj_net_forward.1} parent=1 // pred_region
      %s3337 = ssub.s32 32, 32
      %3338 = vsyncadd [#allocation3], %s3337
      %s3340 = sshll.u32 [#allocation2], 4
      %s3341 = int_to_ptr.vmem [resolvable:$true] %s3340
      %3343 = dma.vmem_to_hbm [thread:$0]  %s3341, 32, %s10, [#allocation3]
    $region45: #{multi_adj_net_forward.1} parent=1 // pred_fallthru
      _
    // Predicated region
    $region46: #{multi_adj_net_forward.1} parent=1 // pred_check
      _
    $region47: #{multi_adj_net_forward.1} parent=1 // pred_check_branch
      %3345 = sbr.rel (0) target = $region49
    $region48: #{multi_adj_net_forward.1} parent=1 // pred_region
      %3346 = dma.done [#allocation3], 32
    $region49: #{multi_adj_net_forward.1} parent=1 // pred_fallthru
      _
    %3347 = vsyncpa [#allocation3], 1

</llo_original>
